<compile_context>
chip_gen: v6e
topology: v6e:2x2x1
jax: 0.10.0
libtpu: 0.0.40
codegen_flags: <defaults>
</compile_context>

<pallas_src>
import jax
import jax.numpy as jnp
import numpy as np
from jax.experimental import pallas as pl
from jax.experimental.pallas import tpu as pltpu

# --------------------------- model hyperparameters ---------------------------
INPUT_DIM = 4       # -> takes the "input_dim == 4" autoregressive branch
HIDDEN_DIM = 32
NUM_LAYERS = 2
OUTPUT_DIM = 3
BATCH = 2
SEQ_LEN = 8
FUTURE_STEPS = 2


# ------------------------------ Pallas kernel --------------------------------
def fused_lstm_kernel(x_ref, tnext_ref,
                      wih0_ref, whh0_ref, b0_ref,
                      wih1_ref, whh1_ref, b1_ref,
                      pw_ref, pb_ref,
                      out_ref):
    """Entire LSTMNetwork forward (eval mode) in one kernel invocation.

    x_ref     : (T*B, D)    time-major input, flattened over (t, b)
    tnext_ref : (B, 1)      x[:, -1, 3] + 60 (constant time feature)
    wih{l}    : (D_in, 4H)  fused input weights (PyTorch gate order i,f,g,o)
    whh{l}    : (H, 4H)     fused recurrent weights
    b{l}      : (1, 4H)     fused bias (b_ih + b_hh folded)
    pw, pb    : (H, O), (1, O) output projection
    out_ref   : (F*B, O)    predictions, time-major rows (reshaped outside)
    """
    TB, D = x_ref.shape
    H = whh0_ref.shape[0]
    H4 = whh0_ref.shape[1]
    B = tnext_ref.shape[0]
    FB, O = out_ref.shape
    F = FB // B
    T = TB // B
    f32 = jnp.float32

    def mm(a, b):
        # bf16-operand option (v6e/v5e): jnp.dot(a.astype(jnp.bfloat16),
        # b.astype(jnp.bfloat16), preferred_element_type=f32)
        return jnp.dot(a, b, preferred_element_type=f32)

    # Load all weights once; they stay resident in VMEM/vregs (<50 KB total).
    wih0 = wih0_ref[...]
    whh0 = whh0_ref[...]
    b0 = b0_ref[...]
    wih1 = wih1_ref[...]
    whh1 = whh1_ref[...]
    b1 = b1_ref[...]
    pw = pw_ref[...]
    pb = pb_ref[...]
    tnext = tnext_ref[...]                                    # (B, 1)

    def gates(z, c):
        # z: (B, 4H) fused pre-activation.  Nonlinearities are applied
        # lane-dense (full 128 lanes); only the (B, H) combine is narrow.
        sg = jax.nn.sigmoid(z)
        th = jnp.tanh(z)
        i_g = sg[:, 0:H]
        f_g = sg[:, H:2 * H]
        g_g = th[:, 2 * H:3 * H]
        o_g = sg[:, 3 * H:4 * H]
        c_new = f_g * c + i_g * g_g
        h_new = o_g * jnp.tanh(c_new)
        return h_new, c_new

    # ---- hoisted layer-0 input projection: one lane-dense matmul for all T --
    xz0_all = mm(x_ref[...], wih0) + b0                       # (T*B, 4H)
    # Pre-slice per timestep; these depend only on x / weights, so they sit
    # entirely off the recurrent dependency chain.
    xz0 = [xz0_all[t * B:(t + 1) * B, :] for t in range(T)]

    h0 = jnp.zeros((B, H), f32)
    c0 = jnp.zeros((B, H), f32)
    h1 = jnp.zeros((B, H), f32)
    c1 = jnp.zeros((B, H), f32)

    # ---------------------- interleaved 2-layer encode -----------------------
    for t in range(T):                                        # fully unrolled
        h0, c0 = gates(xz0[t] + mm(h0, whh0), c0)
        h1, c1 = gates(mm(h0, wih1) + b1 + mm(h1, whh1), c1)

    # ---------------------------- autoregressive decode ----------------------
    # Feedback concat([out, next_time]) @ W_ih folded into gate algebra:
    #   out @ W_ih[0:O] + next_time * W_ih[D-1] + b
    wih0_out = wih0[0:O, :]                                   # (O, 4H)
    if D == 4:
        feed_time = tnext * wih0[D - 1:D, :]                  # (B, 4H), const
    else:
        # zero padding in the original module -> no extra contribution
        feed_time = jnp.zeros((B, H4), f32)

    # First decode step re-feeds x[:, -1, :]; reuse its hoisted projection.
    cur_xz0 = xz0[T - 1]

    outs = []
    for step in range(F):
        h0, c0 = gates(cur_xz0 + mm(h0, whh0), c0)
        h1, c1 = gates(mm(h0, wih1) + b1 + mm(h1, whh1), c1)
        out = mm(h1, pw) + pb                                 # (B, O)
        outs.append(out)
        if step + 1 < F:
            cur_xz0 = mm(out, wih0_out) + feed_time + b0

    # Single contiguous store of all predictions (time-major rows).
    out_ref[...] = jnp.concatenate(outs, axis=0)              # (F*B, O)


# ------------------------------ Pallas wrapper --------------------------------
def lstm_network_forward(x, lstm_params, proj_w, proj_b,
                         future_steps=FUTURE_STEPS):
    """Equivalent of LSTMNetwork.forward(x, future_steps) in eval mode."""
    assert NUM_LAYERS == 2, "kernel is specialized to num_layers == 2"
    B, T, D = x.shape
    O = proj_w.shape[-1]

    # time-major + flatten(t, b): the only per-call glue (tiny, one-off)
    x_flat = jnp.transpose(x, (1, 0, 2)).reshape(T * B, D).astype(jnp.float32)
    if D == 4:
        tnext = (x[:, -1, 3:4] + 60.0).astype(jnp.float32)    # (B, 1)
    else:
        tnext = jnp.zeros((B, 1), jnp.float32)

    # Weights are consumed in their natural fused layout -> no per-call
    # reshapes/transposes of parameters.
    (wih0, whh0, b0), (wih1, whh1, b1) = lstm_params

    vmem = pl.BlockSpec(memory_space=pltpu.MemorySpace.VMEM)
    out = pl.pallas_call(
        fused_lstm_kernel,
        out_shape=jax.ShapeDtypeStruct((future_steps * B, O), jnp.float32),
        in_specs=[vmem] * 10,
        out_specs=vmem,
    )(x_flat, tnext, wih0, whh0, b0, wih1, whh1, b1, proj_w, proj_b)

    # (F*B, O) time-major rows -> (B, F, O); 12-element reshape+transpose.
    return jnp.transpose(out.reshape(future_steps, B, O), (1, 0, 2))


# ------------------------ pure-JAX reference (for check) ---------------------
def _lstm_cell_ref(x_t, h, c, wih, whh, b):
    z = x_t @ wih + h @ whh + b
    H = h.shape[-1]
    i_g = jax.nn.sigmoid(z[:, :H])
    f_g = jax.nn.sigmoid(z[:, H:2 * H])
    g_g = jnp.tanh(z[:, 2 * H:3 * H])
    o_g = jax.nn.sigmoid(z[:, 3 * H:])
    c_new = f_g * c + i_g * g_g
    return o_g * jnp.tanh(c_new), c_new


def _stack_ref(x_tm, lstm_params, h0s, c0s):
    seq = x_tm
    hs, cs = [], []
    for layer in range(NUM_LAYERS):
        wih, whh, b = lstm_params[layer]
        h, c = h0s[layer], c0s[layer]
        outs = []
        for t in range(seq.shape[0]):
            h, c = _lstm_cell_ref(seq[t], h, c, wih, whh, b)
            outs.append(h)
        seq = jnp.stack(outs, axis=0)
        hs.append(h)
        cs.append(c)
    return seq, hs, cs


def forward_ref(x, lstm_params, proj_w, proj_b):
    B = x.shape[0]
    x_tm = jnp.transpose(x, (1, 0, 2))
    zeros = jnp.zeros((B, HIDDEN_DIM), jnp.float32)
    _, h_n, c_n = _stack_ref(x_tm, lstm_params, [zeros] * NUM_LAYERS,
                             [zeros] * NUM_LAYERS)
    preds = []
    hh, cc = h_n, c_n
    cur = x[:, -1:, :]
    for _ in range(FUTURE_STEPS):
        seq1, hh, cc = _stack_ref(jnp.transpose(cur, (1, 0, 2)),
                                  lstm_params, hh, cc)
        out = (seq1[0] @ proj_w + proj_b)[:, None, :]
        preds.append(out)
        next_time = x[:, -1, 3:4] + 60.0
        cur = jnp.concatenate([out, next_time[:, None, :]], axis=-1)
    return jnp.concatenate(preds, axis=1)


# ------------------------------ param init -----------------------------------
def init_params(key):
    scale = 1.0 / float(np.sqrt(HIDDEN_DIM))
    lstm_params = []
    for layer in range(NUM_LAYERS):
        in_l = INPUT_DIM if layer == 0 else HIDDEN_DIM
        key, k1, k2, k3 = jax.random.split(key, 4)
        wih = jax.random.uniform(k1, (in_l, 4 * HIDDEN_DIM), jnp.float32,
                                 -scale, scale)
        whh = jax.random.uniform(k2, (HIDDEN_DIM, 4 * HIDDEN_DIM), jnp.float32,
                                 -scale, scale)
        # b_ih + b_hh folded into a single bias vector (same forward math)
        b = jax.random.uniform(k3, (1, 4 * HIDDEN_DIM), jnp.float32,
                               -scale, scale)
        lstm_params.append((wih, whh, b))
    key, kw, kb = jax.random.split(key, 3)
    proj_w = jax.random.uniform(kw, (HIDDEN_DIM, OUTPUT_DIM), jnp.float32,
                                -scale, scale)
    proj_b = jax.random.uniform(kb, (1, OUTPUT_DIM), jnp.float32,
                                -scale, scale)
    return lstm_params, proj_w, proj_b


# --------------------------------- main ---------------------------------------
if __name__ == "__main__":
    key = jax.random.PRNGKey(0)
    key, kx = jax.random.split(key)
    x = jax.random.normal(kx, (BATCH, SEQ_LEN, INPUT_DIM), jnp.float32)

    lstm_params, proj_w, proj_b = init_params(key)

    fwd = jax.jit(lstm_network_forward)
    out = fwd(x, lstm_params, proj_w, proj_b)
    out = jax.block_until_ready(out)

    assert out.shape == (BATCH, FUTURE_STEPS, OUTPUT_DIM), out.shape
    assert bool(jnp.all(jnp.isfinite(out)))

    ref = forward_ref(x, lstm_params, proj_w, proj_b)
    np.testing.assert_allclose(np.asarray(out), np.asarray(ref),
                               rtol=1e-2, atol=1e-2)

    print("KERNEL_OK")
</pallas_src>

<mosaic_0001>
module attributes {stable_mosaic.version = 11 : i64} {
  func.func @fused_lstm_kernel(%arg0: memref<16x4xf32, #tpu.memory_space<vmem>>, %arg1: memref<2x1xf32, #tpu.memory_space<vmem>>, %arg2: memref<4x128xf32, #tpu.memory_space<vmem>>, %arg3: memref<32x128xf32, #tpu.memory_space<vmem>>, %arg4: memref<1x128xf32, #tpu.memory_space<vmem>>, %arg5: memref<32x128xf32, #tpu.memory_space<vmem>>, %arg6: memref<32x128xf32, #tpu.memory_space<vmem>>, %arg7: memref<1x128xf32, #tpu.memory_space<vmem>>, %arg8: memref<32x3xf32, #tpu.memory_space<vmem>>, %arg9: memref<1x3xf32, #tpu.memory_space<vmem>>, %arg10: memref<4x3xf32, #tpu.memory_space<vmem>>) attributes {dimension_semantics = [], scalar_prefetch = 0 : i64, scratch_operands = 0 : i64, tpu.core_type = #tpu.core_type<tc>} {
    %c0 = arith.constant 0 : index
    %c0_0 = arith.constant 0 : index
    %0 = vector.load %arg2[%c0, %c0_0] : memref<4x128xf32, #tpu.memory_space<vmem>>, vector<4x128xf32>
    %c0_1 = arith.constant 0 : index
    %c0_2 = arith.constant 0 : index
    %1 = vector.load %arg3[%c0_1, %c0_2] : memref<32x128xf32, #tpu.memory_space<vmem>>, vector<32x128xf32>
    %c0_3 = arith.constant 0 : index
    %c0_4 = arith.constant 0 : index
    %2 = vector.load %arg4[%c0_3, %c0_4] : memref<1x128xf32, #tpu.memory_space<vmem>>, vector<1x128xf32>
    %c0_5 = arith.constant 0 : index
    %c0_6 = arith.constant 0 : index
    %3 = vector.load %arg5[%c0_5, %c0_6] : memref<32x128xf32, #tpu.memory_space<vmem>>, vector<32x128xf32>
    %c0_7 = arith.constant 0 : index
    %c0_8 = arith.constant 0 : index
    %4 = vector.load %arg6[%c0_7, %c0_8] : memref<32x128xf32, #tpu.memory_space<vmem>>, vector<32x128xf32>
    %c0_9 = arith.constant 0 : index
    %c0_10 = arith.constant 0 : index
    %5 = vector.load %arg7[%c0_9, %c0_10] : memref<1x128xf32, #tpu.memory_space<vmem>>, vector<1x128xf32>
    %c0_11 = arith.constant 0 : index
    %c0_12 = arith.constant 0 : index
    %6 = vector.load %arg8[%c0_11, %c0_12] : memref<32x3xf32, #tpu.memory_space<vmem>>, vector<32x3xf32>
    %c0_13 = arith.constant 0 : index
    %c0_14 = arith.constant 0 : index
    %7 = vector.load %arg9[%c0_13, %c0_14] : memref<1x3xf32, #tpu.memory_space<vmem>>, vector<1x3xf32>
    %c0_15 = arith.constant 0 : index
    %c0_16 = arith.constant 0 : index
    %8 = vector.load %arg1[%c0_15, %c0_16] : memref<2x1xf32, #tpu.memory_space<vmem>>, vector<2x1xf32>
    %c0_17 = arith.constant 0 : index
    %c0_18 = arith.constant 0 : index
    %9 = vector.load %arg0[%c0_17, %c0_18] : memref<16x4xf32, #tpu.memory_space<vmem>>, vector<16x4xf32>
    %cst = arith.constant dense<0.000000e+00> : vector<16x128xf32>
    %10 = tpu.matmul %9, %0, %cst {dimension_numbers = #tpu.dot_dimension_numbers<[1], [0], [0], [1], [0, 0, 1, 1], [], []>} : vector<16x4xf32>, vector<4x128xf32>, vector<16x128xf32> -> vector<16x128xf32>
    %11 = vector.broadcast %2 : vector<1x128xf32> to vector<16x128xf32>
    %12 = arith.addf %10, %11 : vector<16x128xf32>
    %13 = vector.extract_strided_slice %12 {offsets = [0, 0], sizes = [2, 128], strides = [1, 1]} : vector<16x128xf32> to vector<2x128xf32>
    %14 = vector.extract_strided_slice %12 {offsets = [2, 0], sizes = [2, 128], strides = [1, 1]} : vector<16x128xf32> to vector<2x128xf32>
    %15 = vector.extract_strided_slice %12 {offsets = [4, 0], sizes = [2, 128], strides = [1, 1]} : vector<16x128xf32> to vector<2x128xf32>
    %16 = vector.extract_strided_slice %12 {offsets = [6, 0], sizes = [2, 128], strides = [1, 1]} : vector<16x128xf32> to vector<2x128xf32>
    %17 = vector.extract_strided_slice %12 {offsets = [8, 0], sizes = [2, 128], strides = [1, 1]} : vector<16x128xf32> to vector<2x128xf32>
    %18 = vector.extract_strided_slice %12 {offsets = [10, 0], sizes = [2, 128], strides = [1, 1]} : vector<16x128xf32> to vector<2x128xf32>
    %19 = vector.extract_strided_slice %12 {offsets = [12, 0], sizes = [2, 128], strides = [1, 1]} : vector<16x128xf32> to vector<2x128xf32>
    %20 = vector.extract_strided_slice %12 {offsets = [14, 0], sizes = [2, 128], strides = [1, 1]} : vector<16x128xf32> to vector<2x128xf32>
    %cst_19 = arith.constant 0.000000e+00 : f32
    %21 = vector.broadcast %cst_19 : f32 to vector<2x32xf32>
    %cst_20 = arith.constant 0.000000e+00 : f32
    %22 = vector.broadcast %cst_20 : f32 to vector<2x32xf32>
    %cst_21 = arith.constant 0.000000e+00 : f32
    %23 = vector.broadcast %cst_21 : f32 to vector<2x32xf32>
    %cst_22 = arith.constant 0.000000e+00 : f32
    %24 = vector.broadcast %cst_22 : f32 to vector<2x32xf32>
    %cst_23 = arith.constant dense<0.000000e+00> : vector<2x128xf32>
    %25 = tpu.matmul %21, %1, %cst_23 {dimension_numbers = #tpu.dot_dimension_numbers<[1], [0], [0], [1], [0, 0, 1, 1], [], []>} : vector<2x32xf32>, vector<32x128xf32>, vector<2x128xf32> -> vector<2x128xf32>
    %26 = arith.addf %13, %25 : vector<2x128xf32>
    %27 = arith.negf %26 : vector<2x128xf32>
    %28 = math.exp %27 : vector<2x128xf32>
    %cst_24 = arith.constant 1.000000e+00 : f32
    %29 = vector.broadcast %cst_24 : f32 to vector<2x128xf32>
    %30 = arith.addf %29, %28 : vector<2x128xf32>
    %31 = arith.divf %29, %30 : vector<2x128xf32>
    %32 = math.tanh %26 : vector<2x128xf32>
    %33 = vector.extract_strided_slice %31 {offsets = [0, 0], sizes = [2, 32], strides = [1, 1]} : vector<2x128xf32> to vector<2x32xf32>
    %34 = vector.extract_strided_slice %31 {offsets = [0, 32], sizes = [2, 32], strides = [1, 1]} : vector<2x128xf32> to vector<2x32xf32>
    %35 = vector.extract_strided_slice %32 {offsets = [0, 64], sizes = [2, 32], strides = [1, 1]} : vector<2x128xf32> to vector<2x32xf32>
    %36 = vector.extract_strided_slice %31 {offsets = [0, 96], sizes = [2, 32], strides = [1, 1]} : vector<2x128xf32> to vector<2x32xf32>
    %37 = arith.mulf %34, %22 : vector<2x32xf32>
    %38 = arith.mulf %33, %35 : vector<2x32xf32>
    %39 = arith.addf %37, %38 : vector<2x32xf32>
    %40 = math.tanh %39 : vector<2x32xf32>
    %41 = arith.mulf %36, %40 : vector<2x32xf32>
    %cst_25 = arith.constant dense<0.000000e+00> : vector<2x128xf32>
    %42 = tpu.matmul %41, %3, %cst_25 {dimension_numbers = #tpu.dot_dimension_numbers<[1], [0], [0], [1], [0, 0, 1, 1], [], []>} : vector<2x32xf32>, vector<32x128xf32>, vector<2x128xf32> -> vector<2x128xf32>
    %43 = vector.broadcast %5 : vector<1x128xf32> to vector<2x128xf32>
    %44 = arith.addf %42, %43 : vector<2x128xf32>
    %cst_26 = arith.constant dense<0.000000e+00> : vector<2x128xf32>
    %45 = tpu.matmul %23, %4, %cst_26 {dimension_numbers = #tpu.dot_dimension_numbers<[1], [0], [0], [1], [0, 0, 1, 1], [], []>} : vector<2x32xf32>, vector<32x128xf32>, vector<2x128xf32> -> vector<2x128xf32>
    %46 = arith.addf %44, %45 : vector<2x128xf32>
    %47 = arith.negf %46 : vector<2x128xf32>
    %48 = math.exp %47 : vector<2x128xf32>
    %cst_27 = arith.constant 1.000000e+00 : f32
    %49 = vector.broadcast %cst_27 : f32 to vector<2x128xf32>
    %50 = arith.addf %49, %48 : vector<2x128xf32>
    %51 = arith.divf %49, %50 : vector<2x128xf32>
    %52 = math.tanh %46 : vector<2x128xf32>
    %53 = vector.extract_strided_slice %51 {offsets = [0, 0], sizes = [2, 32], strides = [1, 1]} : vector<2x128xf32> to vector<2x32xf32>
    %54 = vector.extract_strided_slice %51 {offsets = [0, 32], sizes = [2, 32], strides = [1, 1]} : vector<2x128xf32> to vector<2x32xf32>
    %55 = vector.extract_strided_slice %52 {offsets = [0, 64], sizes = [2, 32], strides = [1, 1]} : vector<2x128xf32> to vector<2x32xf32>
    %56 = vector.extract_strided_slice %51 {offsets = [0, 96], sizes = [2, 32], strides = [1, 1]} : vector<2x128xf32> to vector<2x32xf32>
    %57 = arith.mulf %54, %24 : vector<2x32xf32>
    %58 = arith.mulf %53, %55 : vector<2x32xf32>
    %59 = arith.addf %57, %58 : vector<2x32xf32>
    %60 = math.tanh %59 : vector<2x32xf32>
    %61 = arith.mulf %56, %60 : vector<2x32xf32>
    %cst_28 = arith.constant dense<0.000000e+00> : vector<2x128xf32>
    %62 = tpu.matmul %41, %1, %cst_28 {dimension_numbers = #tpu.dot_dimension_numbers<[1], [0], [0], [1], [0, 0, 1, 1], [], []>} : vector<2x32xf32>, vector<32x128xf32>, vector<2x128xf32> -> vector<2x128xf32>
    %63 = arith.addf %14, %62 : vector<2x128xf32>
    %64 = arith.negf %63 : vector<2x128xf32>
    %65 = math.exp %64 : vector<2x128xf32>
    %cst_29 = arith.constant 1.000000e+00 : f32
    %66 = vector.broadcast %cst_29 : f32 to vector<2x128xf32>
    %67 = arith.addf %66, %65 : vector<2x128xf32>
    %68 = arith.divf %66, %67 : vector<2x128xf32>
    %69 = math.tanh %63 : vector<2x128xf32>
    %70 = vector.extract_strided_slice %68 {offsets = [0, 0], sizes = [2, 32], strides = [1, 1]} : vector<2x128xf32> to vector<2x32xf32>
    %71 = vector.extract_strided_slice %68 {offsets = [0, 32], sizes = [2, 32], strides = [1, 1]} : vector<2x128xf32> to vector<2x32xf32>
    %72 = vector.extract_strided_slice %69 {offsets = [0, 64], sizes = [2, 32], strides = [1, 1]} : vector<2x128xf32> to vector<2x32xf32>
    %73 = vector.extract_strided_slice %68 {offsets = [0, 96], sizes = [2, 32], strides = [1, 1]} : vector<2x128xf32> to vector<2x32xf32>
    %74 = arith.mulf %71, %39 : vector<2x32xf32>
    %75 = arith.mulf %70, %72 : vector<2x32xf32>
    %76 = arith.addf %74, %75 : vector<2x32xf32>
    %77 = math.tanh %76 : vector<2x32xf32>
    %78 = arith.mulf %73, %77 : vector<2x32xf32>
    %cst_30 = arith.constant dense<0.000000e+00> : vector<2x128xf32>
    %79 = tpu.matmul %78, %3, %cst_30 {dimension_numbers = #tpu.dot_dimension_numbers<[1], [0], [0], [1], [0, 0, 1, 1], [], []>} : vector<2x32xf32>, vector<32x128xf32>, vector<2x128xf32> -> vector<2x128xf32>
    %80 = vector.broadcast %5 : vector<1x128xf32> to vector<2x128xf32>
    %81 = arith.addf %79, %80 : vector<2x128xf32>
    %cst_31 = arith.constant dense<0.000000e+00> : vector<2x128xf32>
    %82 = tpu.matmul %61, %4, %cst_31 {dimension_numbers = #tpu.dot_dimension_numbers<[1], [0], [0], [1], [0, 0, 1, 1], [], []>} : vector<2x32xf32>, vector<32x128xf32>, vector<2x128xf32> -> vector<2x128xf32>
    %83 = arith.addf %81, %82 : vector<2x128xf32>
    %84 = arith.negf %83 : vector<2x128xf32>
    %85 = math.exp %84 : vector<2x128xf32>
    %cst_32 = arith.constant 1.000000e+00 : f32
    %86 = vector.broadcast %cst_32 : f32 to vector<2x128xf32>
    %87 = arith.addf %86, %85 : vector<2x128xf32>
    %88 = arith.divf %86, %87 : vector<2x128xf32>
    %89 = math.tanh %83 : vector<2x128xf32>
    %90 = vector.extract_strided_slice %88 {offsets = [0, 0], sizes = [2, 32], strides = [1, 1]} : vector<2x128xf32> to vector<2x32xf32>
    %91 = vector.extract_strided_slice %88 {offsets = [0, 32], sizes = [2, 32], strides = [1, 1]} : vector<2x128xf32> to vector<2x32xf32>
    %92 = vector.extract_strided_slice %89 {offsets = [0, 64], sizes = [2, 32], strides = [1, 1]} : vector<2x128xf32> to vector<2x32xf32>
    %93 = vector.extract_strided_slice %88 {offsets = [0, 96], sizes = [2, 32], strides = [1, 1]} : vector<2x128xf32> to vector<2x32xf32>
    %94 = arith.mulf %91, %59 : vector<2x32xf32>
    %95 = arith.mulf %90, %92 : vector<2x32xf32>
    %96 = arith.addf %94, %95 : vector<2x32xf32>
    %97 = math.tanh %96 : vector<2x32xf32>
    %98 = arith.mulf %93, %97 : vector<2x32xf32>
    %cst_33 = arith.constant dense<0.000000e+00> : vector<2x128xf32>
    %99 = tpu.matmul %78, %1, %cst_33 {dimension_numbers = #tpu.dot_dimension_numbers<[1], [0], [0], [1], [0, 0, 1, 1], [], []>} : vector<2x32xf32>, vector<32x128xf32>, vector<2x128xf32> -> vector<2x128xf32>
    %100 = arith.addf %15, %99 : vector<2x128xf32>
    %101 = arith.negf %100 : vector<2x128xf32>
    %102 = math.exp %101 : vector<2x128xf32>
    %cst_34 = arith.constant 1.000000e+00 : f32
    %103 = vector.broadcast %cst_34 : f32 to vector<2x128xf32>
    %104 = arith.addf %103, %102 : vector<2x128xf32>
    %105 = arith.divf %103, %104 : vector<2x128xf32>
    %106 = math.tanh %100 : vector<2x128xf32>
    %107 = vector.extract_strided_slice %105 {offsets = [0, 0], sizes = [2, 32], strides = [1, 1]} : vector<2x128xf32> to vector<2x32xf32>
    %108 = vector.extract_strided_slice %105 {offsets = [0, 32], sizes = [2, 32], strides = [1, 1]} : vector<2x128xf32> to vector<2x32xf32>
    %109 = vector.extract_strided_slice %106 {offsets = [0, 64], sizes = [2, 32], strides = [1, 1]} : vector<2x128xf32> to vector<2x32xf32>
    %110 = vector.extract_strided_slice %105 {offsets = [0, 96], sizes = [2, 32], strides = [1, 1]} : vector<2x128xf32> to vector<2x32xf32>
    %111 = arith.mulf %108, %76 : vector<2x32xf32>
    %112 = arith.mulf %107, %109 : vector<2x32xf32>
    %113 = arith.addf %111, %112 : vector<2x32xf32>
    %114 = math.tanh %113 : vector<2x32xf32>
    %115 = arith.mulf %110, %114 : vector<2x32xf32>
    %cst_35 = arith.constant dense<0.000000e+00> : vector<2x128xf32>
    %116 = tpu.matmul %115, %3, %cst_35 {dimension_numbers = #tpu.dot_dimension_numbers<[1], [0], [0], [1], [0, 0, 1, 1], [], []>} : vector<2x32xf32>, vector<32x128xf32>, vector<2x128xf32> -> vector<2x128xf32>
    %117 = vector.broadcast %5 : vector<1x128xf32> to vector<2x128xf32>
    %118 = arith.addf %116, %117 : vector<2x128xf32>
    %cst_36 = arith.constant dense<0.000000e+00> : vector<2x128xf32>
    %119 = tpu.matmul %98, %4, %cst_36 {dimension_numbers = #tpu.dot_dimension_numbers<[1], [0], [0], [1], [0, 0, 1, 1], [], []>} : vector<2x32xf32>, vector<32x128xf32>, vector<2x128xf32> -> vector<2x128xf32>
    %120 = arith.addf %118, %119 : vector<2x128xf32>
    %121 = arith.negf %120 : vector<2x128xf32>
    %122 = math.exp %121 : vector<2x128xf32>
    %cst_37 = arith.constant 1.000000e+00 : f32
    %123 = vector.broadcast %cst_37 : f32 to vector<2x128xf32>
    %124 = arith.addf %123, %122 : vector<2x128xf32>
    %125 = arith.divf %123, %124 : vector<2x128xf32>
    %126 = math.tanh %120 : vector<2x128xf32>
    %127 = vector.extract_strided_slice %125 {offsets = [0, 0], sizes = [2, 32], strides = [1, 1]} : vector<2x128xf32> to vector<2x32xf32>
    %128 = vector.extract_strided_slice %125 {offsets = [0, 32], sizes = [2, 32], strides = [1, 1]} : vector<2x128xf32> to vector<2x32xf32>
    %129 = vector.extract_strided_slice %126 {offsets = [0, 64], sizes = [2, 32], strides = [1, 1]} : vector<2x128xf32> to vector<2x32xf32>
    %130 = vector.extract_strided_slice %125 {offsets = [0, 96], sizes = [2, 32], strides = [1, 1]} : vector<2x128xf32> to vector<2x32xf32>
    %131 = arith.mulf %128, %96 : vector<2x32xf32>
    %132 = arith.mulf %127, %129 : vector<2x32xf32>
    %133 = arith.addf %131, %132 : vector<2x32xf32>
    %134 = math.tanh %133 : vector<2x32xf32>
    %135 = arith.mulf %130, %134 : vector<2x32xf32>
    %cst_38 = arith.constant dense<0.000000e+00> : vector<2x128xf32>
    %136 = tpu.matmul %115, %1, %cst_38 {dimension_numbers = #tpu.dot_dimension_numbers<[1], [0], [0], [1], [0, 0, 1, 1], [], []>} : vector<2x32xf32>, vector<32x128xf32>, vector<2x128xf32> -> vector<2x128xf32>
    %137 = arith.addf %16, %136 : vector<2x128xf32>
    %138 = arith.negf %137 : vector<2x128xf32>
    %139 = math.exp %138 : vector<2x128xf32>
    %cst_39 = arith.constant 1.000000e+00 : f32
    %140 = vector.broadcast %cst_39 : f32 to vector<2x128xf32>
    %141 = arith.addf %140, %139 : vector<2x128xf32>
    %142 = arith.divf %140, %141 : vector<2x128xf32>
    %143 = math.tanh %137 : vector<2x128xf32>
    %144 = vector.extract_strided_slice %142 {offsets = [0, 0], sizes = [2, 32], strides = [1, 1]} : vector<2x128xf32> to vector<2x32xf32>
    %145 = vector.extract_strided_slice %142 {offsets = [0, 32], sizes = [2, 32], strides = [1, 1]} : vector<2x128xf32> to vector<2x32xf32>
    %146 = vector.extract_strided_slice %143 {offsets = [0, 64], sizes = [2, 32], strides = [1, 1]} : vector<2x128xf32> to vector<2x32xf32>
    %147 = vector.extract_strided_slice %142 {offsets = [0, 96], sizes = [2, 32], strides = [1, 1]} : vector<2x128xf32> to vector<2x32xf32>
    %148 = arith.mulf %145, %113 : vector<2x32xf32>
    %149 = arith.mulf %144, %146 : vector<2x32xf32>
    %150 = arith.addf %148, %149 : vector<2x32xf32>
    %151 = math.tanh %150 : vector<2x32xf32>
    %152 = arith.mulf %147, %151 : vector<2x32xf32>
    %cst_40 = arith.constant dense<0.000000e+00> : vector<2x128xf32>
    %153 = tpu.matmul %152, %3, %cst_40 {dimension_numbers = #tpu.dot_dimension_numbers<[1], [0], [0], [1], [0, 0, 1, 1], [], []>} : vector<2x32xf32>, vector<32x128xf32>, vector<2x128xf32> -> vector<2x128xf32>
    %154 = vector.broadcast %5 : vector<1x128xf32> to vector<2x128xf32>
    %155 = arith.addf %153, %154 : vector<2x128xf32>
    %cst_41 = arith.constant dense<0.000000e+00> : vector<2x128xf32>
    %156 = tpu.matmul %135, %4, %cst_41 {dimension_numbers = #tpu.dot_dimension_numbers<[1], [0], [0], [1], [0, 0, 1, 1], [], []>} : vector<2x32xf32>, vector<32x128xf32>, vector<2x128xf32> -> vector<2x128xf32>
    %157 = arith.addf %155, %156 : vector<2x128xf32>
    %158 = arith.negf %157 : vector<2x128xf32>
    %159 = math.exp %158 : vector<2x128xf32>
    %cst_42 = arith.constant 1.000000e+00 : f32
    %160 = vector.broadcast %cst_42 : f32 to vector<2x128xf32>
    %161 = arith.addf %160, %159 : vector<2x128xf32>
    %162 = arith.divf %160, %161 : vector<2x128xf32>
    %163 = math.tanh %157 : vector<2x128xf32>
    %164 = vector.extract_strided_slice %162 {offsets = [0, 0], sizes = [2, 32], strides = [1, 1]} : vector<2x128xf32> to vector<2x32xf32>
    %165 = vector.extract_strided_slice %162 {offsets = [0, 32], sizes = [2, 32], strides = [1, 1]} : vector<2x128xf32> to vector<2x32xf32>
    %166 = vector.extract_strided_slice %163 {offsets = [0, 64], sizes = [2, 32], strides = [1, 1]} : vector<2x128xf32> to vector<2x32xf32>
    %167 = vector.extract_strided_slice %162 {offsets = [0, 96], sizes = [2, 32], strides = [1, 1]} : vector<2x128xf32> to vector<2x32xf32>
    %168 = arith.mulf %165, %133 : vector<2x32xf32>
    %169 = arith.mulf %164, %166 : vector<2x32xf32>
    %170 = arith.addf %168, %169 : vector<2x32xf32>
    %171 = math.tanh %170 : vector<2x32xf32>
    %172 = arith.mulf %167, %171 : vector<2x32xf32>
    %cst_43 = arith.constant dense<0.000000e+00> : vector<2x128xf32>
    %173 = tpu.matmul %152, %1, %cst_43 {dimension_numbers = #tpu.dot_dimension_numbers<[1], [0], [0], [1], [0, 0, 1, 1], [], []>} : vector<2x32xf32>, vector<32x128xf32>, vector<2x128xf32> -> vector<2x128xf32>
    %174 = arith.addf %17, %173 : vector<2x128xf32>
    %175 = arith.negf %174 : vector<2x128xf32>
    %176 = math.exp %175 : vector<2x128xf32>
    %cst_44 = arith.constant 1.000000e+00 : f32
    %177 = vector.broadcast %cst_44 : f32 to vector<2x128xf32>
    %178 = arith.addf %177, %176 : vector<2x128xf32>
    %179 = arith.divf %177, %178 : vector<2x128xf32>
    %180 = math.tanh %174 : vector<2x128xf32>
    %181 = vector.extract_strided_slice %179 {offsets = [0, 0], sizes = [2, 32], strides = [1, 1]} : vector<2x128xf32> to vector<2x32xf32>
    %182 = vector.extract_strided_slice %179 {offsets = [0, 32], sizes = [2, 32], strides = [1, 1]} : vector<2x128xf32> to vector<2x32xf32>
    %183 = vector.extract_strided_slice %180 {offsets = [0, 64], sizes = [2, 32], strides = [1, 1]} : vector<2x128xf32> to vector<2x32xf32>
    %184 = vector.extract_strided_slice %179 {offsets = [0, 96], sizes = [2, 32], strides = [1, 1]} : vector<2x128xf32> to vector<2x32xf32>
    %185 = arith.mulf %182, %150 : vector<2x32xf32>
    %186 = arith.mulf %181, %183 : vector<2x32xf32>
    %187 = arith.addf %185, %186 : vector<2x32xf32>
    %188 = math.tanh %187 : vector<2x32xf32>
    %189 = arith.mulf %184, %188 : vector<2x32xf32>
    %cst_45 = arith.constant dense<0.000000e+00> : vector<2x128xf32>
    %190 = tpu.matmul %189, %3, %cst_45 {dimension_numbers = #tpu.dot_dimension_numbers<[1], [0], [0], [1], [0, 0, 1, 1], [], []>} : vector<2x32xf32>, vector<32x128xf32>, vector<2x128xf32> -> vector<2x128xf32>
    %191 = vector.broadcast %5 : vector<1x128xf32> to vector<2x128xf32>
    %192 = arith.addf %190, %191 : vector<2x128xf32>
    %cst_46 = arith.constant dense<0.000000e+00> : vector<2x128xf32>
    %193 = tpu.matmul %172, %4, %cst_46 {dimension_numbers = #tpu.dot_dimension_numbers<[1], [0], [0], [1], [0, 0, 1, 1], [], []>} : vector<2x32xf32>, vector<32x128xf32>, vector<2x128xf32> -> vector<2x128xf32>
    %194 = arith.addf %192, %193 : vector<2x128xf32>
    %195 = arith.negf %194 : vector<2x128xf32>
    %196 = math.exp %195 : vector<2x128xf32>
    %cst_47 = arith.constant 1.000000e+00 : f32
    %197 = vector.broadcast %cst_47 : f32 to vector<2x128xf32>
    %198 = arith.addf %197, %196 : vector<2x128xf32>
    %199 = arith.divf %197, %198 : vector<2x128xf32>
    %200 = math.tanh %194 : vector<2x128xf32>
    %201 = vector.extract_strided_slice %199 {offsets = [0, 0], sizes = [2, 32], strides = [1, 1]} : vector<2x128xf32> to vector<2x32xf32>
    %202 = vector.extract_strided_slice %199 {offsets = [0, 32], sizes = [2, 32], strides = [1, 1]} : vector<2x128xf32> to vector<2x32xf32>
    %203 = vector.extract_strided_slice %200 {offsets = [0, 64], sizes = [2, 32], strides = [1, 1]} : vector<2x128xf32> to vector<2x32xf32>
    %204 = vector.extract_strided_slice %199 {offsets = [0, 96], sizes = [2, 32], strides = [1, 1]} : vector<2x128xf32> to vector<2x32xf32>
    %205 = arith.mulf %202, %170 : vector<2x32xf32>
    %206 = arith.mulf %201, %203 : vector<2x32xf32>
    %207 = arith.addf %205, %206 : vector<2x32xf32>
    %208 = math.tanh %207 : vector<2x32xf32>
    %209 = arith.mulf %204, %208 : vector<2x32xf32>
    %cst_48 = arith.constant dense<0.000000e+00> : vector<2x128xf32>
    %210 = tpu.matmul %189, %1, %cst_48 {dimension_numbers = #tpu.dot_dimension_numbers<[1], [0], [0], [1], [0, 0, 1, 1], [], []>} : vector<2x32xf32>, vector<32x128xf32>, vector<2x128xf32> -> vector<2x128xf32>
    %211 = arith.addf %18, %210 : vector<2x128xf32>
    %212 = arith.negf %211 : vector<2x128xf32>
    %213 = math.exp %212 : vector<2x128xf32>
    %cst_49 = arith.constant 1.000000e+00 : f32
    %214 = vector.broadcast %cst_49 : f32 to vector<2x128xf32>
    %215 = arith.addf %214, %213 : vector<2x128xf32>
    %216 = arith.divf %214, %215 : vector<2x128xf32>
    %217 = math.tanh %211 : vector<2x128xf32>
    %218 = vector.extract_strided_slice %216 {offsets = [0, 0], sizes = [2, 32], strides = [1, 1]} : vector<2x128xf32> to vector<2x32xf32>
    %219 = vector.extract_strided_slice %216 {offsets = [0, 32], sizes = [2, 32], strides = [1, 1]} : vector<2x128xf32> to vector<2x32xf32>
    %220 = vector.extract_strided_slice %217 {offsets = [0, 64], sizes = [2, 32], strides = [1, 1]} : vector<2x128xf32> to vector<2x32xf32>
    %221 = vector.extract_strided_slice %216 {offsets = [0, 96], sizes = [2, 32], strides = [1, 1]} : vector<2x128xf32> to vector<2x32xf32>
    %222 = arith.mulf %219, %187 : vector<2x32xf32>
    %223 = arith.mulf %218, %220 : vector<2x32xf32>
    %224 = arith.addf %222, %223 : vector<2x32xf32>
    %225 = math.tanh %224 : vector<2x32xf32>
    %226 = arith.mulf %221, %225 : vector<2x32xf32>
    %cst_50 = arith.constant dense<0.000000e+00> : vector<2x128xf32>
    %227 = tpu.matmul %226, %3, %cst_50 {dimension_numbers = #tpu.dot_dimension_numbers<[1], [0], [0], [1], [0, 0, 1, 1], [], []>} : vector<2x32xf32>, vector<32x128xf32>, vector<2x128xf32> -> vector<2x128xf32>
    %228 = vector.broadcast %5 : vector<1x128xf32> to vector<2x128xf32>
    %229 = arith.addf %227, %228 : vector<2x128xf32>
    %cst_51 = arith.constant dense<0.000000e+00> : vector<2x128xf32>
    %230 = tpu.matmul %209, %4, %cst_51 {dimension_numbers = #tpu.dot_dimension_numbers<[1], [0], [0], [1], [0, 0, 1, 1], [], []>} : vector<2x32xf32>, vector<32x128xf32>, vector<2x128xf32> -> vector<2x128xf32>
    %231 = arith.addf %229, %230 : vector<2x128xf32>
    %232 = arith.negf %231 : vector<2x128xf32>
    %233 = math.exp %232 : vector<2x128xf32>
    %cst_52 = arith.constant 1.000000e+00 : f32
    %234 = vector.broadcast %cst_52 : f32 to vector<2x128xf32>
    %235 = arith.addf %234, %233 : vector<2x128xf32>
    %236 = arith.divf %234, %235 : vector<2x128xf32>
    %237 = math.tanh %231 : vector<2x128xf32>
    %238 = vector.extract_strided_slice %236 {offsets = [0, 0], sizes = [2, 32], strides = [1, 1]} : vector<2x128xf32> to vector<2x32xf32>
    %239 = vector.extract_strided_slice %236 {offsets = [0, 32], sizes = [2, 32], strides = [1, 1]} : vector<2x128xf32> to vector<2x32xf32>
    %240 = vector.extract_strided_slice %237 {offsets = [0, 64], sizes = [2, 32], strides = [1, 1]} : vector<2x128xf32> to vector<2x32xf32>
    %241 = vector.extract_strided_slice %236 {offsets = [0, 96], sizes = [2, 32], strides = [1, 1]} : vector<2x128xf32> to vector<2x32xf32>
    %242 = arith.mulf %239, %207 : vector<2x32xf32>
    %243 = arith.mulf %238, %240 : vector<2x32xf32>
    %244 = arith.addf %242, %243 : vector<2x32xf32>
    %245 = math.tanh %244 : vector<2x32xf32>
    %246 = arith.mulf %241, %245 : vector<2x32xf32>
    %cst_53 = arith.constant dense<0.000000e+00> : vector<2x128xf32>
    %247 = tpu.matmul %226, %1, %cst_53 {dimension_numbers = #tpu.dot_dimension_numbers<[1], [0], [0], [1], [0, 0, 1, 1], [], []>} : vector<2x32xf32>, vector<32x128xf32>, vector<2x128xf32> -> vector<2x128xf32>
    %248 = arith.addf %19, %247 : vector<2x128xf32>
    %249 = arith.negf %248 : vector<2x128xf32>
    %250 = math.exp %249 : vector<2x128xf32>
    %cst_54 = arith.constant 1.000000e+00 : f32
    %251 = vector.broadcast %cst_54 : f32 to vector<2x128xf32>
    %252 = arith.addf %251, %250 : vector<2x128xf32>
    %253 = arith.divf %251, %252 : vector<2x128xf32>
    %254 = math.tanh %248 : vector<2x128xf32>
    %255 = vector.extract_strided_slice %253 {offsets = [0, 0], sizes = [2, 32], strides = [1, 1]} : vector<2x128xf32> to vector<2x32xf32>
    %256 = vector.extract_strided_slice %253 {offsets = [0, 32], sizes = [2, 32], strides = [1, 1]} : vector<2x128xf32> to vector<2x32xf32>
    %257 = vector.extract_strided_slice %254 {offsets = [0, 64], sizes = [2, 32], strides = [1, 1]} : vector<2x128xf32> to vector<2x32xf32>
    %258 = vector.extract_strided_slice %253 {offsets = [0, 96], sizes = [2, 32], strides = [1, 1]} : vector<2x128xf32> to vector<2x32xf32>
    %259 = arith.mulf %256, %224 : vector<2x32xf32>
    %260 = arith.mulf %255, %257 : vector<2x32xf32>
    %261 = arith.addf %259, %260 : vector<2x32xf32>
    %262 = math.tanh %261 : vector<2x32xf32>
    %263 = arith.mulf %258, %262 : vector<2x32xf32>
    %cst_55 = arith.constant dense<0.000000e+00> : vector<2x128xf32>
    %264 = tpu.matmul %263, %3, %cst_55 {dimension_numbers = #tpu.dot_dimension_numbers<[1], [0], [0], [1], [0, 0, 1, 1], [], []>} : vector<2x32xf32>, vector<32x128xf32>, vector<2x128xf32> -> vector<2x128xf32>
    %265 = vector.broadcast %5 : vector<1x128xf32> to vector<2x128xf32>
    %266 = arith.addf %264, %265 : vector<2x128xf32>
    %cst_56 = arith.constant dense<0.000000e+00> : vector<2x128xf32>
    %267 = tpu.matmul %246, %4, %cst_56 {dimension_numbers = #tpu.dot_dimension_numbers<[1], [0], [0], [1], [0, 0, 1, 1], [], []>} : vector<2x32xf32>, vector<32x128xf32>, vector<2x128xf32> -> vector<2x128xf32>
    %268 = arith.addf %266, %267 : vector<2x128xf32>
    %269 = arith.negf %268 : vector<2x128xf32>
    %270 = math.exp %269 : vector<2x128xf32>
    %cst_57 = arith.constant 1.000000e+00 : f32
    %271 = vector.broadcast %cst_57 : f32 to vector<2x128xf32>
    %272 = arith.addf %271, %270 : vector<2x128xf32>
    %273 = arith.divf %271, %272 : vector<2x128xf32>
    %274 = math.tanh %268 : vector<2x128xf32>
    %275 = vector.extract_strided_slice %273 {offsets = [0, 0], sizes = [2, 32], strides = [1, 1]} : vector<2x128xf32> to vector<2x32xf32>
    %276 = vector.extract_strided_slice %273 {offsets = [0, 32], sizes = [2, 32], strides = [1, 1]} : vector<2x128xf32> to vector<2x32xf32>
    %277 = vector.extract_strided_slice %274 {offsets = [0, 64], sizes = [2, 32], strides = [1, 1]} : vector<2x128xf32> to vector<2x32xf32>
    %278 = vector.extract_strided_slice %273 {offsets = [0, 96], sizes = [2, 32], strides = [1, 1]} : vector<2x128xf32> to vector<2x32xf32>
    %279 = arith.mulf %276, %244 : vector<2x32xf32>
    %280 = arith.mulf %275, %277 : vector<2x32xf32>
    %281 = arith.addf %279, %280 : vector<2x32xf32>
    %282 = math.tanh %281 : vector<2x32xf32>
    %283 = arith.mulf %278, %282 : vector<2x32xf32>
    %cst_58 = arith.constant dense<0.000000e+00> : vector<2x128xf32>
    %284 = tpu.matmul %263, %1, %cst_58 {dimension_numbers = #tpu.dot_dimension_numbers<[1], [0], [0], [1], [0, 0, 1, 1], [], []>} : vector<2x32xf32>, vector<32x128xf32>, vector<2x128xf32> -> vector<2x128xf32>
    %285 = arith.addf %20, %284 : vector<2x128xf32>
    %286 = arith.negf %285 : vector<2x128xf32>
    %287 = math.exp %286 : vector<2x128xf32>
    %cst_59 = arith.constant 1.000000e+00 : f32
    %288 = vector.broadcast %cst_59 : f32 to vector<2x128xf32>
    %289 = arith.addf %288, %287 : vector<2x128xf32>
    %290 = arith.divf %288, %289 : vector<2x128xf32>
    %291 = math.tanh %285 : vector<2x128xf32>
    %292 = vector.extract_strided_slice %290 {offsets = [0, 0], sizes = [2, 32], strides = [1, 1]} : vector<2x128xf32> to vector<2x32xf32>
    %293 = vector.extract_strided_slice %290 {offsets = [0, 32], sizes = [2, 32], strides = [1, 1]} : vector<2x128xf32> to vector<2x32xf32>
    %294 = vector.extract_strided_slice %291 {offsets = [0, 64], sizes = [2, 32], strides = [1, 1]} : vector<2x128xf32> to vector<2x32xf32>
    %295 = vector.extract_strided_slice %290 {offsets = [0, 96], sizes = [2, 32], strides = [1, 1]} : vector<2x128xf32> to vector<2x32xf32>
    %296 = arith.mulf %293, %261 : vector<2x32xf32>
    %297 = arith.mulf %292, %294 : vector<2x32xf32>
    %298 = arith.addf %296, %297 : vector<2x32xf32>
    %299 = math.tanh %298 : vector<2x32xf32>
    %300 = arith.mulf %295, %299 : vector<2x32xf32>
    %cst_60 = arith.constant dense<0.000000e+00> : vector<2x128xf32>
    %301 = tpu.matmul %300, %3, %cst_60 {dimension_numbers = #tpu.dot_dimension_numbers<[1], [0], [0], [1], [0, 0, 1, 1], [], []>} : vector<2x32xf32>, vector<32x128xf32>, vector<2x128xf32> -> vector<2x128xf32>
    %302 = vector.broadcast %5 : vector<1x128xf32> to vector<2x128xf32>
    %303 = arith.addf %301, %302 : vector<2x128xf32>
    %cst_61 = arith.constant dense<0.000000e+00> : vector<2x128xf32>
    %304 = tpu.matmul %283, %4, %cst_61 {dimension_numbers = #tpu.dot_dimension_numbers<[1], [0], [0], [1], [0, 0, 1, 1], [], []>} : vector<2x32xf32>, vector<32x128xf32>, vector<2x128xf32> -> vector<2x128xf32>
    %305 = arith.addf %303, %304 : vector<2x128xf32>
    %306 = arith.negf %305 : vector<2x128xf32>
    %307 = math.exp %306 : vector<2x128xf32>
    %cst_62 = arith.constant 1.000000e+00 : f32
    %308 = vector.broadcast %cst_62 : f32 to vector<2x128xf32>
    %309 = arith.addf %308, %307 : vector<2x128xf32>
    %310 = arith.divf %308, %309 : vector<2x128xf32>
    %311 = math.tanh %305 : vector<2x128xf32>
    %312 = vector.extract_strided_slice %310 {offsets = [0, 0], sizes = [2, 32], strides = [1, 1]} : vector<2x128xf32> to vector<2x32xf32>
    %313 = vector.extract_strided_slice %310 {offsets = [0, 32], sizes = [2, 32], strides = [1, 1]} : vector<2x128xf32> to vector<2x32xf32>
    %314 = vector.extract_strided_slice %311 {offsets = [0, 64], sizes = [2, 32], strides = [1, 1]} : vector<2x128xf32> to vector<2x32xf32>
    %315 = vector.extract_strided_slice %310 {offsets = [0, 96], sizes = [2, 32], strides = [1, 1]} : vector<2x128xf32> to vector<2x32xf32>
    %316 = arith.mulf %313, %281 : vector<2x32xf32>
    %317 = arith.mulf %312, %314 : vector<2x32xf32>
    %318 = arith.addf %316, %317 : vector<2x32xf32>
    %319 = math.tanh %318 : vector<2x32xf32>
    %320 = arith.mulf %315, %319 : vector<2x32xf32>
    %321 = vector.extract_strided_slice %0 {offsets = [0, 0], sizes = [3, 128], strides = [1, 1]} : vector<4x128xf32> to vector<3x128xf32>
    %322 = vector.extract_strided_slice %0 {offsets = [3, 0], sizes = [1, 128], strides = [1, 1]} : vector<4x128xf32> to vector<1x128xf32>
    %323 = vector.broadcast %8 : vector<2x1xf32> to vector<2x128xf32>
    %324 = vector.broadcast %322 : vector<1x128xf32> to vector<2x128xf32>
    %325 = arith.mulf %323, %324 : vector<2x128xf32>
    %cst_63 = arith.constant dense<0.000000e+00> : vector<2x128xf32>
    %326 = tpu.matmul %300, %1, %cst_63 {dimension_numbers = #tpu.dot_dimension_numbers<[1], [0], [0], [1], [0, 0, 1, 1], [], []>} : vector<2x32xf32>, vector<32x128xf32>, vector<2x128xf32> -> vector<2x128xf32>
    %327 = arith.addf %20, %326 : vector<2x128xf32>
    %328 = arith.negf %327 : vector<2x128xf32>
    %329 = math.exp %328 : vector<2x128xf32>
    %cst_64 = arith.constant 1.000000e+00 : f32
    %330 = vector.broadcast %cst_64 : f32 to vector<2x128xf32>
    %331 = arith.addf %330, %329 : vector<2x128xf32>
    %332 = arith.divf %330, %331 : vector<2x128xf32>
    %333 = math.tanh %327 : vector<2x128xf32>
    %334 = vector.extract_strided_slice %332 {offsets = [0, 0], sizes = [2, 32], strides = [1, 1]} : vector<2x128xf32> to vector<2x32xf32>
    %335 = vector.extract_strided_slice %332 {offsets = [0, 32], sizes = [2, 32], strides = [1, 1]} : vector<2x128xf32> to vector<2x32xf32>
    %336 = vector.extract_strided_slice %333 {offsets = [0, 64], sizes = [2, 32], strides = [1, 1]} : vector<2x128xf32> to vector<2x32xf32>
    %337 = vector.extract_strided_slice %332 {offsets = [0, 96], sizes = [2, 32], strides = [1, 1]} : vector<2x128xf32> to vector<2x32xf32>
    %338 = arith.mulf %335, %298 : vector<2x32xf32>
    %339 = arith.mulf %334, %336 : vector<2x32xf32>
    %340 = arith.addf %338, %339 : vector<2x32xf32>
    %341 = math.tanh %340 : vector<2x32xf32>
    %342 = arith.mulf %337, %341 : vector<2x32xf32>
    %cst_65 = arith.constant dense<0.000000e+00> : vector<2x128xf32>
    %343 = tpu.matmul %342, %3, %cst_65 {dimension_numbers = #tpu.dot_dimension_numbers<[1], [0], [0], [1], [0, 0, 1, 1], [], []>} : vector<2x32xf32>, vector<32x128xf32>, vector<2x128xf32> -> vector<2x128xf32>
    %344 = vector.broadcast %5 : vector<1x128xf32> to vector<2x128xf32>
    %345 = arith.addf %343, %344 : vector<2x128xf32>
    %cst_66 = arith.constant dense<0.000000e+00> : vector<2x128xf32>
    %346 = tpu.matmul %320, %4, %cst_66 {dimension_numbers = #tpu.dot_dimension_numbers<[1], [0], [0], [1], [0, 0, 1, 1], [], []>} : vector<2x32xf32>, vector<32x128xf32>, vector<2x128xf32> -> vector<2x128xf32>
    %347 = arith.addf %345, %346 : vector<2x128xf32>
    %348 = arith.negf %347 : vector<2x128xf32>
    %349 = math.exp %348 : vector<2x128xf32>
    %cst_67 = arith.constant 1.000000e+00 : f32
    %350 = vector.broadcast %cst_67 : f32 to vector<2x128xf32>
    %351 = arith.addf %350, %349 : vector<2x128xf32>
    %352 = arith.divf %350, %351 : vector<2x128xf32>
    %353 = math.tanh %347 : vector<2x128xf32>
    %354 = vector.extract_strided_slice %352 {offsets = [0, 0], sizes = [2, 32], strides = [1, 1]} : vector<2x128xf32> to vector<2x32xf32>
    %355 = vector.extract_strided_slice %352 {offsets = [0, 32], sizes = [2, 32], strides = [1, 1]} : vector<2x128xf32> to vector<2x32xf32>
    %356 = vector.extract_strided_slice %353 {offsets = [0, 64], sizes = [2, 32], strides = [1, 1]} : vector<2x128xf32> to vector<2x32xf32>
    %357 = vector.extract_strided_slice %352 {offsets = [0, 96], sizes = [2, 32], strides = [1, 1]} : vector<2x128xf32> to vector<2x32xf32>
    %358 = arith.mulf %355, %318 : vector<2x32xf32>
    %359 = arith.mulf %354, %356 : vector<2x32xf32>
    %360 = arith.addf %358, %359 : vector<2x32xf32>
    %361 = math.tanh %360 : vector<2x32xf32>
    %362 = arith.mulf %357, %361 : vector<2x32xf32>
    %cst_68 = arith.constant dense<0.000000e+00> : vector<2x3xf32>
    %363 = tpu.matmul %362, %6, %cst_68 {dimension_numbers = #tpu.dot_dimension_numbers<[1], [0], [0], [1], [0, 0, 1, 1], [], []>} : vector<2x32xf32>, vector<32x3xf32>, vector<2x3xf32> -> vector<2x3xf32>
    %364 = vector.broadcast %7 : vector<1x3xf32> to vector<2x3xf32>
    %365 = arith.addf %363, %364 : vector<2x3xf32>
    %cst_69 = arith.constant dense<0.000000e+00> : vector<2x128xf32>
    %366 = tpu.matmul %365, %321, %cst_69 {dimension_numbers = #tpu.dot_dimension_numbers<[1], [0], [0], [1], [0, 0, 1, 1], [], []>} : vector<2x3xf32>, vector<3x128xf32>, vector<2x128xf32> -> vector<2x128xf32>
    %367 = arith.addf %366, %325 : vector<2x128xf32>
    %368 = vector.broadcast %2 : vector<1x128xf32> to vector<2x128xf32>
    %369 = arith.addf %367, %368 : vector<2x128xf32>
    %cst_70 = arith.constant dense<0.000000e+00> : vector<2x128xf32>
    %370 = tpu.matmul %342, %1, %cst_70 {dimension_numbers = #tpu.dot_dimension_numbers<[1], [0], [0], [1], [0, 0, 1, 1], [], []>} : vector<2x32xf32>, vector<32x128xf32>, vector<2x128xf32> -> vector<2x128xf32>
    %371 = arith.addf %369, %370 : vector<2x128xf32>
    %372 = arith.negf %371 : vector<2x128xf32>
    %373 = math.exp %372 : vector<2x128xf32>
    %cst_71 = arith.constant 1.000000e+00 : f32
    %374 = vector.broadcast %cst_71 : f32 to vector<2x128xf32>
    %375 = arith.addf %374, %373 : vector<2x128xf32>
    %376 = arith.divf %374, %375 : vector<2x128xf32>
    %377 = math.tanh %371 : vector<2x128xf32>
    %378 = vector.extract_strided_slice %376 {offsets = [0, 0], sizes = [2, 32], strides = [1, 1]} : vector<2x128xf32> to vector<2x32xf32>
    %379 = vector.extract_strided_slice %376 {offsets = [0, 32], sizes = [2, 32], strides = [1, 1]} : vector<2x128xf32> to vector<2x32xf32>
    %380 = vector.extract_strided_slice %377 {offsets = [0, 64], sizes = [2, 32], strides = [1, 1]} : vector<2x128xf32> to vector<2x32xf32>
    %381 = vector.extract_strided_slice %376 {offsets = [0, 96], sizes = [2, 32], strides = [1, 1]} : vector<2x128xf32> to vector<2x32xf32>
    %382 = arith.mulf %379, %340 : vector<2x32xf32>
    %383 = arith.mulf %378, %380 : vector<2x32xf32>
    %384 = arith.addf %382, %383 : vector<2x32xf32>
    %385 = math.tanh %384 : vector<2x32xf32>
    %386 = arith.mulf %381, %385 : vector<2x32xf32>
    %cst_72 = arith.constant dense<0.000000e+00> : vector<2x128xf32>
    %387 = tpu.matmul %386, %3, %cst_72 {dimension_numbers = #tpu.dot_dimension_numbers<[1], [0], [0], [1], [0, 0, 1, 1], [], []>} : vector<2x32xf32>, vector<32x128xf32>, vector<2x128xf32> -> vector<2x128xf32>
    %388 = vector.broadcast %5 : vector<1x128xf32> to vector<2x128xf32>
    %389 = arith.addf %387, %388 : vector<2x128xf32>
    %cst_73 = arith.constant dense<0.000000e+00> : vector<2x128xf32>
    %390 = tpu.matmul %362, %4, %cst_73 {dimension_numbers = #tpu.dot_dimension_numbers<[1], [0], [0], [1], [0, 0, 1, 1], [], []>} : vector<2x32xf32>, vector<32x128xf32>, vector<2x128xf32> -> vector<2x128xf32>
    %391 = arith.addf %389, %390 : vector<2x128xf32>
    %392 = arith.negf %391 : vector<2x128xf32>
    %393 = math.exp %392 : vector<2x128xf32>
    %cst_74 = arith.constant 1.000000e+00 : f32
    %394 = vector.broadcast %cst_74 : f32 to vector<2x128xf32>
    %395 = arith.addf %394, %393 : vector<2x128xf32>
    %396 = arith.divf %394, %395 : vector<2x128xf32>
    %397 = math.tanh %391 : vector<2x128xf32>
    %398 = vector.extract_strided_slice %396 {offsets = [0, 0], sizes = [2, 32], strides = [1, 1]} : vector<2x128xf32> to vector<2x32xf32>
    %399 = vector.extract_strided_slice %396 {offsets = [0, 32], sizes = [2, 32], strides = [1, 1]} : vector<2x128xf32> to vector<2x32xf32>
    %400 = vector.extract_strided_slice %397 {offsets = [0, 64], sizes = [2, 32], strides = [1, 1]} : vector<2x128xf32> to vector<2x32xf32>
    %401 = vector.extract_strided_slice %396 {offsets = [0, 96], sizes = [2, 32], strides = [1, 1]} : vector<2x128xf32> to vector<2x32xf32>
    %402 = arith.mulf %399, %360 : vector<2x32xf32>
    %403 = arith.mulf %398, %400 : vector<2x32xf32>
    %404 = arith.addf %402, %403 : vector<2x32xf32>
    %405 = math.tanh %404 : vector<2x32xf32>
    %406 = arith.mulf %401, %405 : vector<2x32xf32>
    %cst_75 = arith.constant dense<0.000000e+00> : vector<2x3xf32>
    %407 = tpu.matmul %406, %6, %cst_75 {dimension_numbers = #tpu.dot_dimension_numbers<[1], [0], [0], [1], [0, 0, 1, 1], [], []>} : vector<2x32xf32>, vector<32x3xf32>, vector<2x3xf32> -> vector<2x3xf32>
    %408 = vector.broadcast %7 : vector<1x3xf32> to vector<2x3xf32>
    %409 = arith.addf %407, %408 : vector<2x3xf32>
    %410 = tpu.concatenate %365, %409 in 0 : vector<2x3xf32>, vector<2x3xf32> -> vector<4x3xf32>
    %c0_76 = arith.constant 0 : index
    %c0_77 = arith.constant 0 : index
    %411 = vector.load %arg10[%c0_76, %c0_77] : memref<4x3xf32, #tpu.memory_space<vmem>>, vector<4x3xf32>
    tpu.vector_store %arg10[%c0_76, %c0_77], %410 {strides = array<i32>} : memref<4x3xf32, #tpu.memory_space<vmem>>, vector<4x3xf32>,
    return
  }
}

</mosaic_0001>

<llo_original>
// kernel: lstm_network_forward.1
$region0: #{lstm_network_forward.1}
  #allocation0 [shape = 'u32[]', space=smem, size = 0x4, offset = 0x4, fixed_abs, tag = 'smem constant byte address 0x4 - core index']
  #allocation1 [shape = 'u32[144,128]{1,0:T(1,128)}', space=vmem, size = 0x12000, scoped, tag = 'internal scratch']
  %s0 = inlined_call_operand.vmem [shape: f32[16,4], index: 0, kind: input, shape index: {}]
  %s1 = inlined_call_operand.vmem [shape: f32[2,1], index: 1, kind: input, shape index: {}]
  %s2 = inlined_call_operand.hbm [shape: f32[4,128], index: 2, kind: input, shape index: {}]
  %s3 = inlined_call_operand.vmem [shape: f32[32,128], index: 3, kind: input, shape index: {}]
  %s4 = inlined_call_operand.vmem [shape: f32[1,128], index: 4, kind: input, shape index: {}]
  %s5 = inlined_call_operand.vmem [shape: f32[32,128], index: 5, kind: input, shape index: {}]
  %s6 = inlined_call_operand.hbm [shape: f32[32,128], index: 6, kind: input, shape index: {}]
  %s7 = inlined_call_operand.vmem [shape: f32[1,128], index: 7, kind: input, shape index: {}]
  %s8 = inlined_call_operand.vmem [shape: f32[32,3], index: 8, kind: input, shape index: {}]
  %s9 = inlined_call_operand.vmem [shape: f32[1,3], index: 9, kind: input, shape index: {}]
  %s10 = inlined_call_operand.vmem [shape: f32[4,3], index: 10, kind: output, shape index: {}]
  %s11 = sld [smem:[#allocation0]]
  $region58: #{lstm_network_forward.1} parent=0
    _
  %s13 = ssub.s32 1, %s11
  %s14 = scalar_select 0, %s13, %s11
  $region1: #{lstm_network_forward.1} parent=0
    #allocation2 [shape = 'u8[2048]{0}', space=vmem, size = 0x800, scoped, tag = 'input window, operand 2, single buffered']
    #allocation3 [shape = 's32[1]{0}', space=sflag, size = 0x4, scoped, tag = 'scoped memory for lstm_network_forward.1']
    #allocation4 [shape = 'u8[16384]{0}', space=vmem, size = 0x4000, scoped, tag = 'input window, operand 6, single buffered']
    #allocation5 [shape = 's32[1]{0}', space=sflag, size = 0x4, scoped, tag = 'scoped memory for lstm_network_forward.1']
    %15 = vsyncpa [#allocation3], 0
    %16 = vsyncpa [#allocation5], 0
    // Predicated region
    $region2: #{lstm_network_forward.1} parent=1 // pred_check
      _
    $region3: #{lstm_network_forward.1} parent=1 // pred_check_branch
      %18 = sbr.rel (0) target = $region5
    $region4: #{lstm_network_forward.1} parent=1 // pred_region
      _
    $region5: #{lstm_network_forward.1} parent=1 // pred_fallthru
      _
    // Predicated region
    $region6: #{lstm_network_forward.1} parent=1 // pred_check
      _
    $region7: #{lstm_network_forward.1} parent=1 // pred_check_branch
      %20 = sbr.rel (0) target = $region9
    $region8: #{lstm_network_forward.1} parent=1 // pred_region
      _
    $region9: #{lstm_network_forward.1} parent=1 // pred_fallthru
      _
    // Predicated region
    $region10: #{lstm_network_forward.1} parent=1 // pred_check
      _
    $region11: #{lstm_network_forward.1} parent=1 // pred_check_branch
      %22 = sbr.rel (0) target = $region13
    $region12: #{lstm_network_forward.1} parent=1 // pred_region
      %s24 = ssub.s32 64, 64
      %25 = vsyncadd [#allocation3], %s24
      %s27 = sshll.u32 [#allocation2], 4
      %s28 = int_to_ptr.vmem [resolvable:$true] %s27
      %30 = dma.hbm_to_vmem [thread:$0]  %s2, 64, %s28, [#allocation3]
    $region13: #{lstm_network_forward.1} parent=1 // pred_fallthru
      _
    // Predicated region
    $region14: #{lstm_network_forward.1} parent=1 // pred_check
      _
    $region15: #{lstm_network_forward.1} parent=1 // pred_check_branch
      %32 = sbr.rel (0) target = $region17
    $region16: #{lstm_network_forward.1} parent=1 // pred_region
      _
    $region17: #{lstm_network_forward.1} parent=1 // pred_fallthru
      _
    // Predicated region
    $region18: #{lstm_network_forward.1} parent=1 // pred_check
      _
    $region19: #{lstm_network_forward.1} parent=1 // pred_check_branch
      %34 = sbr.rel (0) target = $region21
    $region20: #{lstm_network_forward.1} parent=1 // pred_region
      _
    $region21: #{lstm_network_forward.1} parent=1 // pred_fallthru
      _
    // Predicated region
    $region22: #{lstm_network_forward.1} parent=1 // pred_check
      _
    $region23: #{lstm_network_forward.1} parent=1 // pred_check_branch
      %36 = sbr.rel (0) target = $region25
    $region24: #{lstm_network_forward.1} parent=1 // pred_region
      _
    $region25: #{lstm_network_forward.1} parent=1 // pred_fallthru
      _
    // Predicated region
    $region26: #{lstm_network_forward.1} parent=1 // pred_check
      _
    $region27: #{lstm_network_forward.1} parent=1 // pred_check_branch
      %38 = sbr.rel (0) target = $region29
    $region28: #{lstm_network_forward.1} parent=1 // pred_region
      %s40 = ssub.s32 512, 512
      %41 = vsyncadd [#allocation5], %s40
      %s42 = sshll.u32 [#allocation4], 4
      %s43 = int_to_ptr.vmem [resolvable:$true] %s42
      %48 = dma.hbm_to_vmem [thread:$0]  %s6, 512, %s43, [#allocation5], 128, 128, 8
    $region29: #{lstm_network_forward.1} parent=1 // pred_fallthru
      _
    // Predicated region
    $region30: #{lstm_network_forward.1} parent=1 // pred_check
      _
    $region31: #{lstm_network_forward.1} parent=1 // pred_check_branch
      %50 = sbr.rel (0) target = $region33
    $region32: #{lstm_network_forward.1} parent=1 // pred_region
      _
    $region33: #{lstm_network_forward.1} parent=1 // pred_fallthru
      _
    // Predicated region
    $region34: #{lstm_network_forward.1} parent=1 // pred_check
      _
    $region35: #{lstm_network_forward.1} parent=1 // pred_check_branch
      %52 = sbr.rel (0) target = $region37
    $region36: #{lstm_network_forward.1} parent=1 // pred_region
      _
    $region37: #{lstm_network_forward.1} parent=1 // pred_fallthru
      _
    // Predicated region
    $region38: #{lstm_network_forward.1} parent=1 // pred_check
      _
    $region39: #{lstm_network_forward.1} parent=1 // pred_check_branch
      %54 = sbr.rel (0) target = $region41
    $region40: #{lstm_network_forward.1} parent=1 // pred_region
      _
    $region41: #{lstm_network_forward.1} parent=1 // pred_fallthru
      _
    // Predicated region
    $region42: #{lstm_network_forward.1} parent=1 // pred_check
      _
    $region43: #{lstm_network_forward.1} parent=1 // pred_check_branch
      %56 = sbr.rel (0) target = $region45
    $region44: #{lstm_network_forward.1} parent=1 // pred_region
      %57 = dma.done [#allocation3], 64
    $region45: #{lstm_network_forward.1} parent=1 // pred_fallthru
      _
    // Predicated region
    $region46: #{lstm_network_forward.1} parent=1 // pred_check
      _
    $region47: #{lstm_network_forward.1} parent=1 // pred_check_branch
      %59 = sbr.rel (0) target = $region49
    $region48: #{lstm_network_forward.1} parent=1 // pred_region
      %60 = dma.done [#allocation5], 512
    $region49: #{lstm_network_forward.1} parent=1 // pred_fallthru
      _
    %v61 = vld [vmem:[#allocation2] sm:$0xf]
    %v62 = vld [vmem:[%s3] sm:$0xff]
    %v63 = vld [vmem:[%s3 + $0x8] sm:$0xff]
    %v64 = vld [vmem:[%s3 + $0x10] sm:$0xff]
    %v65 = vld [vmem:[%s3 + $0x18] sm:$0xff]
    %v66 = vld [vmem:[%s4] sm:$0x1]
    %v67 = vld [vmem:[%s5] sm:$0xff]
    %v68 = vld [vmem:[%s5 + $0x8] sm:$0xff]
    %v69 = vld [vmem:[%s5 + $0x10] sm:$0xff]
    %v70 = vld [vmem:[%s5 + $0x18] sm:$0xff]
    %v71 = vld [vmem:[#allocation4] sm:$0xff]
    %v72 = vld [vmem:[#allocation4 + $0x8] sm:$0xff]
    %v73 = vld [vmem:[#allocation4 + $0x10] sm:$0xff]
    %v74 = vld [vmem:[#allocation4 + $0x18] sm:$0xff]
    %v75 = vld [vmem:[%s7] sm:$0x1]
    %v76 = vld [vmem:[%s8] sm:$0xff]
    %v77 = vld [vmem:[%s8 + $0x8] sm:$0xff]
    %v78 = vld [vmem:[%s8 + $0x10] sm:$0xff]
    %v79 = vld [vmem:[%s8 + $0x18] sm:$0xff]
    %v80 = vld [vmem:[%s9] sm:$0x1]
    %v81 = vld [vmem:[%s1] sm:$0x3]
    %v82 = vld [vmem:[%s0] sm:$0xff]
    %v83 = vld [vmem:[%s0 + $0x8] sm:$0xff]
    %v85 = vlaneseq
    %v86 = vshrl.u32 %v85, 7
    %v87 = vsub.s32 0, %v86
    %v88 = vrot.slane %v66, %v87
    %vm90 = vcmask 31744
    %v92 = vsel %vm90, %v82, 0
    %v95 = vsel %vm90, %v83, 0
    %vm97 = vcmask 1043456
    %v99 = vsel %vm97, %v61, 0
    %101 = vmatprep.subr.mxu0 0.0
    %102 = vmatpush1.msra.mxu0 0.0
    %103 = vmatprep.subr.mxu0 0.0
    %104 = vmatpush1.msra.mxu0 0.0
    %105 = vmatprep.subr.mxu0 0.0
    %106 = vmatpush1.msra.mxu0 0.0
    %107 = vmatprep.subr.mxu0 0.0
    %108 = vmatpush1.msra.mxu0 0.0
    %109 = vmatprep.subr.mxu0 0.0
    %110 = vmatpush1.msra.mxu0 0.0
    %111 = vmatprep.subr.mxu0 0.0
    %112 = vmatpush1.msra.mxu0 0.0
    %113 = vmatprep.subr.mxu0 0.0
    %114 = vmatpush1.msra.mxu0 0.0
    %115 = vmatprep.subr.mxu0 0.0
    %116 = vmatpush1.msra.mxu0 0.0
    %117 = vmatprep.subr.mxu0 0.0
    %118 = vmatpush1.msra.mxu0 0.0
    %119 = vmatprep.subr.mxu0 0.0
    %120 = vmatpush1.msra.mxu0 0.0
    %121 = vmatprep.subr.mxu0 0.0
    %122 = vmatpush1.msra.mxu0 0.0
    %123 = vmatprep.subr.mxu0 0.0
    %124 = vmatpush1.msra.mxu0 0.0
    %125 = vmatprep.subr.mxu0 0.0
    %126 = vmatpush1.msra.mxu0 0.0
    %127 = vmatprep.subr.mxu0 0.0
    %128 = vmatpush1.msra.mxu0 0.0
    %129 = vmatprep.subr.mxu0 0.0
    %130 = vmatpush1.msra.mxu0 0.0
    %131 = vmatprep.subr.mxu0 0.0
    %132 = vmatpush1.msra.mxu0 %v99
    %133 = vmatprep.subr.mxu0 0.0
    %134 = vmatpush2.msra.mxu0 0.0
    %135 = vmatprep.subr.mxu0 0.0
    %136 = vmatpush2.msra.mxu0 0.0
    %137 = vmatprep.subr.mxu0 0.0
    %138 = vmatpush2.msra.mxu0 0.0
    %139 = vmatprep.subr.mxu0 0.0
    %140 = vmatpush2.msra.mxu0 0.0
    %141 = vmatprep.subr.mxu0 0.0
    %142 = vmatpush2.msra.mxu0 0.0
    %143 = vmatprep.subr.mxu0 0.0
    %144 = vmatpush2.msra.mxu0 0.0
    %145 = vmatprep.subr.mxu0 0.0
    %146 = vmatpush2.msra.mxu0 0.0
    %147 = vmatprep.subr.mxu0 0.0
    %148 = vmatpush2.msra.mxu0 0.0
    %149 = vmatprep.subr.mxu0 0.0
    %150 = vmatpush2.msra.mxu0 0.0
    %151 = vmatprep.subr.mxu0 0.0
    %152 = vmatpush2.msra.mxu0 0.0
    %153 = vmatprep.subr.mxu0 0.0
    %154 = vmatpush2.msra.mxu0 0.0
    %155 = vmatprep.subr.mxu0 0.0
    %156 = vmatpush2.msra.mxu0 0.0
    %157 = vmatprep.subr.mxu0 0.0
    %158 = vmatpush2.msra.mxu0 0.0
    %159 = vmatprep.subr.mxu0 0.0
    %160 = vmatpush2.msra.mxu0 0.0
    %161 = vmatprep.subr.mxu0 0.0
    %162 = vmatpush2.msra.mxu0 0.0
    %163 = vmatprep.subr.mxu0 0.0
    %164 = vmatpush2.msra.mxu0 0.0
    %165 = vmatprep.mubr.f32.mxu0 0.0
    %166 = vmatmul.mubr.f32.gmra.mxu0 %v92
    %v167 = vpop.f32.mrf.mxu0
    %v168 = vadd.f32 %v88, %v167
    %v169 = vpop.f32.mrf.mxu0
    %170 = vmatprep.mubr.f32.mxu0 0.0
    %171 = vmatmul.mubr.f32.gmra.mxu0 %v95
    %v172 = vpop.f32.mrf.mxu0
    %v173 = vadd.f32 %v88, %v172
    %v174 = vpop.f32.mrf.mxu0
    %175 = vdwg.mxu0
    %vm176 = vcmask 261120
    %v178 = vsel %vm176, 0.0, 0
    %180 = vmatprep.subr.mxu0 0.0
    %181 = vmatpush1.msra.mxu0 0.0
    %182 = vmatprep.subr.mxu0 0.0
    %183 = vmatpush1.msra.mxu0 0.0
    %184 = vmatprep.subr.mxu0 0.0
    %185 = vmatpush1.msra.mxu0 0.0
    %186 = vmatprep.subr.mxu0 0.0
    %187 = vmatpush1.msra.mxu0 0.0
    %188 = vmatprep.subr.mxu0 0.0
    %189 = vmatpush1.msra.mxu0 0.0
    %190 = vmatprep.subr.mxu0 0.0
    %191 = vmatpush1.msra.mxu0 0.0
    %192 = vmatprep.subr.mxu0 0.0
    %193 = vmatpush1.msra.mxu0 0.0
    %194 = vmatprep.subr.mxu0 0.0
    %195 = vmatpush1.msra.mxu0 0.0
    %196 = vmatprep.subr.mxu0 0.0
    %197 = vmatpush1.msra.mxu0 0.0
    %198 = vmatprep.subr.mxu0 0.0
    %199 = vmatpush1.msra.mxu0 0.0
    %200 = vmatprep.subr.mxu0 0.0
    %201 = vmatpush1.msra.mxu0 0.0
    %202 = vmatprep.subr.mxu0 0.0
    %203 = vmatpush1.msra.mxu0 0.0
    %204 = vmatprep.subr.mxu0 0.0
    %205 = vmatpush1.msra.mxu0 %v65
    %206 = vmatprep.subr.mxu0 0.0
    %207 = vmatpush1.msra.mxu0 %v64
    %208 = vmatprep.subr.mxu0 0.0
    %209 = vmatpush1.msra.mxu0 %v63
    %210 = vmatprep.subr.mxu0 0.0
    %211 = vmatpush1.msra.mxu0 %v62
    %212 = vmatprep.subr.mxu0 0.0
    %213 = vmatpush2.msra.mxu0 0.0
    %214 = vmatprep.subr.mxu0 0.0
    %215 = vmatpush2.msra.mxu0 0.0
    %216 = vmatprep.subr.mxu0 0.0
    %217 = vmatpush2.msra.mxu0 0.0
    %218 = vmatprep.subr.mxu0 0.0
    %219 = vmatpush2.msra.mxu0 0.0
    %220 = vmatprep.subr.mxu0 0.0
    %221 = vmatpush2.msra.mxu0 0.0
    %222 = vmatprep.subr.mxu0 0.0
    %223 = vmatpush2.msra.mxu0 0.0
    %224 = vmatprep.subr.mxu0 0.0
    %225 = vmatpush2.msra.mxu0 0.0
    %226 = vmatprep.subr.mxu0 0.0
    %227 = vmatpush2.msra.mxu0 0.0
    %228 = vmatprep.subr.mxu0 0.0
    %229 = vmatpush2.msra.mxu0 0.0
    %230 = vmatprep.subr.mxu0 0.0
    %231 = vmatpush2.msra.mxu0 0.0
    %232 = vmatprep.subr.mxu0 0.0
    %233 = vmatpush2.msra.mxu0 0.0
    %234 = vmatprep.subr.mxu0 0.0
    %235 = vmatpush2.msra.mxu0 0.0
    %236 = vmatprep.subr.mxu0 0.0
    %237 = vmatpush2.msra.mxu0 0.0
    %238 = vmatprep.subr.mxu0 0.0
    %239 = vmatpush2.msra.mxu0 0.0
    %240 = vmatprep.subr.mxu0 0.0
    %241 = vmatpush2.msra.mxu0 0.0
    %242 = vmatprep.subr.mxu0 0.0
    %243 = vmatpush2.msra.mxu0 0.0
    %244 = vmatprep.mubr.f32.mxu0 0.0
    %245 = vmatmul.mubr.f32.gmra.mxu0 %v178
    %v246 = vpop.f32.mrf.mxu0
    %v247 = vadd.f32 0.0, %v246
    %v248 = vpop.f32.mrf.mxu0
    %249 = vdwg.mxu0
    %v250 = vadd.f32 %v168, %v247
    %v251 = vxor.u32 %v250, 2147483648
    %v252 = vmul.f32 %v251, 1.442695
    %v253 = vpow.pop %v252
    %v254 = vadd.f32 %v253, 1.0
    %v255 = vrcp.pop %v254
    %v256 = vmul.f32 1.0, %v255
    %v257 = vtanh.pop %v250
    %v258 = vmul.f32 %v256, 0.0
    %260 = vrot.lane.b32.xlu0 %v257, 64
    %v261 = vpop.permute.xlu0 %260
    %v263 = vmul.f32 %v256, %v261
    %265 = vrot.lane.b32.xlu0 %v263, 32
    %v266 = vpop.permute.xlu0 %265
    %v268 = vadd.f32 %v258, %v266
    %v269 = vtanh.pop %v268
    %271 = vrot.lane.b32.xlu0 %v269, 64
    %v272 = vpop.permute.xlu0 %271
    %v274 = vmul.f32 %v256, %v272
    %v276 = vlaneseq
    %v277 = vshrl.u32 %v276, 7
    %v278 = vsub.s32 0, %v277
    %v279 = vrot.slane %v75, %v278
    %282 = vrot.lane.b32.xlu0 %v274, 32
    %v283 = vpop.permute.xlu0 %282
    %v284 = vsel %vm176, %v283, 0
    %286 = vmatprep.subr.mxu0 0.0
    %287 = vmatpush1.msra.mxu0 0.0
    %288 = vmatprep.subr.mxu0 0.0
    %289 = vmatpush1.msra.mxu0 0.0
    %290 = vmatprep.subr.mxu0 0.0
    %291 = vmatpush1.msra.mxu0 0.0
    %292 = vmatprep.subr.mxu0 0.0
    %293 = vmatpush1.msra.mxu0 0.0
    %294 = vmatprep.subr.mxu0 0.0
    %295 = vmatpush1.msra.mxu0 0.0
    %296 = vmatprep.subr.mxu0 0.0
    %297 = vmatpush1.msra.mxu0 0.0
    %298 = vmatprep.subr.mxu0 0.0
    %299 = vmatpush1.msra.mxu0 0.0
    %300 = vmatprep.subr.mxu0 0.0
    %301 = vmatpush1.msra.mxu0 0.0
    %302 = vmatprep.subr.mxu0 0.0
    %303 = vmatpush1.msra.mxu0 0.0
    %304 = vmatprep.subr.mxu0 0.0
    %305 = vmatpush1.msra.mxu0 0.0
    %306 = vmatprep.subr.mxu0 0.0
    %307 = vmatpush1.msra.mxu0 0.0
    %308 = vmatprep.subr.mxu0 0.0
    %309 = vmatpush1.msra.mxu0 0.0
    %310 = vmatprep.subr.mxu0 0.0
    %311 = vmatpush1.msra.mxu0 %v70
    %312 = vmatprep.subr.mxu0 0.0
    %313 = vmatpush1.msra.mxu0 %v69
    %314 = vmatprep.subr.mxu0 0.0
    %315 = vmatpush1.msra.mxu0 %v68
    %316 = vmatprep.subr.mxu0 0.0
    %317 = vmatpush1.msra.mxu0 %v67
    %318 = vmatprep.subr.mxu0 0.0
    %319 = vmatpush2.msra.mxu0 0.0
    %320 = vmatprep.subr.mxu0 0.0
    %321 = vmatpush2.msra.mxu0 0.0
    %322 = vmatprep.subr.mxu0 0.0
    %323 = vmatpush2.msra.mxu0 0.0
    %324 = vmatprep.subr.mxu0 0.0
    %325 = vmatpush2.msra.mxu0 0.0
    %326 = vmatprep.subr.mxu0 0.0
    %327 = vmatpush2.msra.mxu0 0.0
    %328 = vmatprep.subr.mxu0 0.0
    %329 = vmatpush2.msra.mxu0 0.0
    %330 = vmatprep.subr.mxu0 0.0
    %331 = vmatpush2.msra.mxu0 0.0
    %332 = vmatprep.subr.mxu0 0.0
    %333 = vmatpush2.msra.mxu0 0.0
    %334 = vmatprep.subr.mxu0 0.0
    %335 = vmatpush2.msra.mxu0 0.0
    %336 = vmatprep.subr.mxu0 0.0
    %337 = vmatpush2.msra.mxu0 0.0
    %338 = vmatprep.subr.mxu0 0.0
    %339 = vmatpush2.msra.mxu0 0.0
    %340 = vmatprep.subr.mxu0 0.0
    %341 = vmatpush2.msra.mxu0 0.0
    %342 = vmatprep.subr.mxu0 0.0
    %343 = vmatpush2.msra.mxu0 0.0
    %344 = vmatprep.subr.mxu0 0.0
    %345 = vmatpush2.msra.mxu0 0.0
    %346 = vmatprep.subr.mxu0 0.0
    %347 = vmatpush2.msra.mxu0 0.0
    %348 = vmatprep.subr.mxu0 0.0
    %349 = vmatpush2.msra.mxu0 0.0
    %350 = vmatprep.mubr.f32.mxu0 0.0
    %351 = vmatmul.mubr.f32.gmra.mxu0 %v284
    %v352 = vpop.f32.mrf.mxu0
    %v353 = vadd.f32 %v279, %v352
    %v354 = vpop.f32.mrf.mxu0
    %355 = vdwg.mxu0
    %356 = vmatprep.subr.mxu0 0.0
    %357 = vmatpush1.msra.mxu0 0.0
    %358 = vmatprep.subr.mxu0 0.0
    %359 = vmatpush1.msra.mxu0 0.0
    %360 = vmatprep.subr.mxu0 0.0
    %361 = vmatpush1.msra.mxu0 0.0
    %362 = vmatprep.subr.mxu0 0.0
    %363 = vmatpush1.msra.mxu0 0.0
    %364 = vmatprep.subr.mxu0 0.0
    %365 = vmatpush1.msra.mxu0 0.0
    %366 = vmatprep.subr.mxu0 0.0
    %367 = vmatpush1.msra.mxu0 0.0
    %368 = vmatprep.subr.mxu0 0.0
    %369 = vmatpush1.msra.mxu0 0.0
    %370 = vmatprep.subr.mxu0 0.0
    %371 = vmatpush1.msra.mxu0 0.0
    %372 = vmatprep.subr.mxu0 0.0
    %373 = vmatpush1.msra.mxu0 0.0
    %374 = vmatprep.subr.mxu0 0.0
    %375 = vmatpush1.msra.mxu0 0.0
    %376 = vmatprep.subr.mxu0 0.0
    %377 = vmatpush1.msra.mxu0 0.0
    %378 = vmatprep.subr.mxu0 0.0
    %379 = vmatpush1.msra.mxu0 0.0
    %380 = vmatprep.subr.mxu0 0.0
    %381 = vmatpush1.msra.mxu0 %v74
    %382 = vmatprep.subr.mxu0 0.0
    %383 = vmatpush1.msra.mxu0 %v73
    %384 = vmatprep.subr.mxu0 0.0
    %385 = vmatpush1.msra.mxu0 %v72
    %386 = vmatprep.subr.mxu0 0.0
    %387 = vmatpush1.msra.mxu0 %v71
    %388 = vmatprep.subr.mxu0 0.0
    %389 = vmatpush2.msra.mxu0 0.0
    %390 = vmatprep.subr.mxu0 0.0
    %391 = vmatpush2.msra.mxu0 0.0
    %392 = vmatprep.subr.mxu0 0.0
    %393 = vmatpush2.msra.mxu0 0.0
    %394 = vmatprep.subr.mxu0 0.0
    %395 = vmatpush2.msra.mxu0 0.0
    %396 = vmatprep.subr.mxu0 0.0
    %397 = vmatpush2.msra.mxu0 0.0
    %398 = vmatprep.subr.mxu0 0.0
    %399 = vmatpush2.msra.mxu0 0.0
    %400 = vmatprep.subr.mxu0 0.0
    %401 = vmatpush2.msra.mxu0 0.0
    %402 = vmatprep.subr.mxu0 0.0
    %403 = vmatpush2.msra.mxu0 0.0
    %404 = vmatprep.subr.mxu0 0.0
    %405 = vmatpush2.msra.mxu0 0.0
    %406 = vmatprep.subr.mxu0 0.0
    %407 = vmatpush2.msra.mxu0 0.0
    %408 = vmatprep.subr.mxu0 0.0
    %409 = vmatpush2.msra.mxu0 0.0
    %410 = vmatprep.subr.mxu0 0.0
    %411 = vmatpush2.msra.mxu0 0.0
    %412 = vmatprep.subr.mxu0 0.0
    %413 = vmatpush2.msra.mxu0 0.0
    %414 = vmatprep.subr.mxu0 0.0
    %415 = vmatpush2.msra.mxu0 0.0
    %416 = vmatprep.subr.mxu0 0.0
    %417 = vmatpush2.msra.mxu0 0.0
    %418 = vmatprep.subr.mxu0 0.0
    %419 = vmatpush2.msra.mxu0 0.0
    %420 = vmatprep.mubr.f32.mxu0 0.0
    %421 = vmatmul.mubr.f32.gmra.mxu0 %v178
    %v422 = vpop.f32.mrf.mxu0
    %v423 = vadd.f32 0.0, %v422
    %v424 = vpop.f32.mrf.mxu0
    %425 = vdwg.mxu0
    %v426 = vadd.f32 %v353, %v423
    %v427 = vxor.u32 %v426, 2147483648
    %v428 = vmul.f32 %v427, 1.442695
    %v429 = vpow.pop %v428
    %v430 = vadd.f32 %v429, 1.0
    %v431 = vrcp.pop %v430
    %v432 = vmul.f32 1.0, %v431
    %v433 = vtanh.pop %v426
    %v434 = vmul.f32 %v432, 0.0
    %436 = vrot.lane.b32.xlu0 %v433, 64
    %v437 = vpop.permute.xlu0 %436
    %v439 = vmul.f32 %v432, %v437
    %441 = vrot.lane.b32.xlu0 %v439, 32
    %v442 = vpop.permute.xlu0 %441
    %v444 = vadd.f32 %v434, %v442
    %v445 = vtanh.pop %v444
    %447 = vrot.lane.b32.xlu0 %v445, 64
    %v448 = vpop.permute.xlu0 %447
    %v450 = vmul.f32 %v432, %v448
    %451 = vmatprep.subr.mxu0 0.0
    %452 = vmatpush1.msra.mxu0 0.0
    %453 = vmatprep.subr.mxu0 0.0
    %454 = vmatpush1.msra.mxu0 0.0
    %455 = vmatprep.subr.mxu0 0.0
    %456 = vmatpush1.msra.mxu0 0.0
    %457 = vmatprep.subr.mxu0 0.0
    %458 = vmatpush1.msra.mxu0 0.0
    %459 = vmatprep.subr.mxu0 0.0
    %460 = vmatpush1.msra.mxu0 0.0
    %461 = vmatprep.subr.mxu0 0.0
    %462 = vmatpush1.msra.mxu0 0.0
    %463 = vmatprep.subr.mxu0 0.0
    %464 = vmatpush1.msra.mxu0 0.0
    %465 = vmatprep.subr.mxu0 0.0
    %466 = vmatpush1.msra.mxu0 0.0
    %467 = vmatprep.subr.mxu0 0.0
    %468 = vmatpush1.msra.mxu0 0.0
    %469 = vmatprep.subr.mxu0 0.0
    %470 = vmatpush1.msra.mxu0 0.0
    %471 = vmatprep.subr.mxu0 0.0
    %472 = vmatpush1.msra.mxu0 0.0
    %473 = vmatprep.subr.mxu0 0.0
    %474 = vmatpush1.msra.mxu0 0.0
    %475 = vmatprep.subr.mxu0 0.0
    %476 = vmatpush1.msra.mxu0 %v65
    %477 = vmatprep.subr.mxu0 0.0
    %478 = vmatpush1.msra.mxu0 %v64
    %479 = vmatprep.subr.mxu0 0.0
    %480 = vmatpush1.msra.mxu0 %v63
    %481 = vmatprep.subr.mxu0 0.0
    %482 = vmatpush1.msra.mxu0 %v62
    %483 = vmatprep.subr.mxu0 0.0
    %484 = vmatpush2.msra.mxu0 0.0
    %485 = vmatprep.subr.mxu0 0.0
    %486 = vmatpush2.msra.mxu0 0.0
    %487 = vmatprep.subr.mxu0 0.0
    %488 = vmatpush2.msra.mxu0 0.0
    %489 = vmatprep.subr.mxu0 0.0
    %490 = vmatpush2.msra.mxu0 0.0
    %491 = vmatprep.subr.mxu0 0.0
    %492 = vmatpush2.msra.mxu0 0.0
    %493 = vmatprep.subr.mxu0 0.0
    %494 = vmatpush2.msra.mxu0 0.0
    %495 = vmatprep.subr.mxu0 0.0
    %496 = vmatpush2.msra.mxu0 0.0
    %497 = vmatprep.subr.mxu0 0.0
    %498 = vmatpush2.msra.mxu0 0.0
    %499 = vmatprep.subr.mxu0 0.0
    %500 = vmatpush2.msra.mxu0 0.0
    %501 = vmatprep.subr.mxu0 0.0
    %502 = vmatpush2.msra.mxu0 0.0
    %503 = vmatprep.subr.mxu0 0.0
    %504 = vmatpush2.msra.mxu0 0.0
    %505 = vmatprep.subr.mxu0 0.0
    %506 = vmatpush2.msra.mxu0 0.0
    %507 = vmatprep.subr.mxu0 0.0
    %508 = vmatpush2.msra.mxu0 0.0
    %509 = vmatprep.subr.mxu0 0.0
    %510 = vmatpush2.msra.mxu0 0.0
    %511 = vmatprep.subr.mxu0 0.0
    %512 = vmatpush2.msra.mxu0 0.0
    %513 = vmatprep.subr.mxu0 0.0
    %514 = vmatpush2.msra.mxu0 0.0
    %515 = vmatprep.mubr.f32.mxu0 0.0
    %516 = vmatmul.mubr.f32.gmra.mxu0 %v284
    %v517 = vpop.f32.mrf.mxu0
    %v518 = vadd.f32 0.0, %v517
    %v519 = vpop.f32.mrf.mxu0
    %520 = vdwg.mxu0
    %v522 = vrot.slane %v518, 6
    %v524 = vadd.f32 %v168, %v522
    %v525 = vxor.u32 %v524, 2147483648
    %v526 = vmul.f32 %v525, 1.442695
    %v527 = vpow.pop %v526
    %v528 = vadd.f32 %v527, 1.0
    %v529 = vrcp.pop %v528
    %v530 = vmul.f32 1.0, %v529
    %v531 = vtanh.pop %v524
    %v533 = vrot.slane %v268, 6
    %v535 = vmul.f32 %v530, %v533
    %537 = vrot.lane.b32.xlu0 %v531, 64
    %v538 = vpop.permute.xlu0 %537
    %v540 = vmul.f32 %v530, %v538
    %542 = vrot.lane.b32.xlu0 %v540, 32
    %v543 = vpop.permute.xlu0 %542
    %v545 = vadd.f32 %v535, %v543
    %v546 = vtanh.pop %v545
    %548 = vrot.lane.b32.xlu0 %v546, 64
    %v549 = vpop.permute.xlu0 %548
    %v551 = vmul.f32 %v530, %v549
    %v553 = vrot.slane %v551, 2
    %554 = vrot.lane.b32.xlu0 %v553, 32
    %v555 = vpop.permute.xlu0 %554
    %v556 = vsel %vm176, %v555, 0
    %558 = vmatprep.subr.mxu0 0.0
    %559 = vmatpush1.msra.mxu0 0.0
    %560 = vmatprep.subr.mxu0 0.0
    %561 = vmatpush1.msra.mxu0 0.0
    %562 = vmatprep.subr.mxu0 0.0
    %563 = vmatpush1.msra.mxu0 0.0
    %564 = vmatprep.subr.mxu0 0.0
    %565 = vmatpush1.msra.mxu0 0.0
    %566 = vmatprep.subr.mxu0 0.0
    %567 = vmatpush1.msra.mxu0 0.0
    %568 = vmatprep.subr.mxu0 0.0
    %569 = vmatpush1.msra.mxu0 0.0
    %570 = vmatprep.subr.mxu0 0.0
    %571 = vmatpush1.msra.mxu0 0.0
    %572 = vmatprep.subr.mxu0 0.0
    %573 = vmatpush1.msra.mxu0 0.0
    %574 = vmatprep.subr.mxu0 0.0
    %575 = vmatpush1.msra.mxu0 0.0
    %576 = vmatprep.subr.mxu0 0.0
    %577 = vmatpush1.msra.mxu0 0.0
    %578 = vmatprep.subr.mxu0 0.0
    %579 = vmatpush1.msra.mxu0 0.0
    %580 = vmatprep.subr.mxu0 0.0
    %581 = vmatpush1.msra.mxu0 0.0
    %582 = vmatprep.subr.mxu0 0.0
    %583 = vmatpush1.msra.mxu0 %v70
    %584 = vmatprep.subr.mxu0 0.0
    %585 = vmatpush1.msra.mxu0 %v69
    %586 = vmatprep.subr.mxu0 0.0
    %587 = vmatpush1.msra.mxu0 %v68
    %588 = vmatprep.subr.mxu0 0.0
    %589 = vmatpush1.msra.mxu0 %v67
    %590 = vmatprep.subr.mxu0 0.0
    %591 = vmatpush2.msra.mxu0 0.0
    %592 = vmatprep.subr.mxu0 0.0
    %593 = vmatpush2.msra.mxu0 0.0
    %594 = vmatprep.subr.mxu0 0.0
    %595 = vmatpush2.msra.mxu0 0.0
    %596 = vmatprep.subr.mxu0 0.0
    %597 = vmatpush2.msra.mxu0 0.0
    %598 = vmatprep.subr.mxu0 0.0
    %599 = vmatpush2.msra.mxu0 0.0
    %600 = vmatprep.subr.mxu0 0.0
    %601 = vmatpush2.msra.mxu0 0.0
    %602 = vmatprep.subr.mxu0 0.0
    %603 = vmatpush2.msra.mxu0 0.0
    %604 = vmatprep.subr.mxu0 0.0
    %605 = vmatpush2.msra.mxu0 0.0
    %606 = vmatprep.subr.mxu0 0.0
    %607 = vmatpush2.msra.mxu0 0.0
    %608 = vmatprep.subr.mxu0 0.0
    %609 = vmatpush2.msra.mxu0 0.0
    %610 = vmatprep.subr.mxu0 0.0
    %611 = vmatpush2.msra.mxu0 0.0
    %612 = vmatprep.subr.mxu0 0.0
    %613 = vmatpush2.msra.mxu0 0.0
    %614 = vmatprep.subr.mxu0 0.0
    %615 = vmatpush2.msra.mxu0 0.0
    %616 = vmatprep.subr.mxu0 0.0
    %617 = vmatpush2.msra.mxu0 0.0
    %618 = vmatprep.subr.mxu0 0.0
    %619 = vmatpush2.msra.mxu0 0.0
    %620 = vmatprep.subr.mxu0 0.0
    %621 = vmatpush2.msra.mxu0 0.0
    %622 = vmatprep.mubr.f32.mxu0 0.0
    %623 = vmatmul.mubr.f32.gmra.mxu0 %v556
    %v624 = vpop.f32.mrf.mxu0
    %v625 = vadd.f32 %v279, %v624
    %v626 = vpop.f32.mrf.mxu0
    %627 = vdwg.mxu0
    %629 = vrot.lane.b32.xlu0 %v450, 32
    %v630 = vpop.permute.xlu0 %629
    %v631 = vsel %vm176, %v630, 0
    %633 = vmatprep.subr.mxu0 0.0
    %634 = vmatpush1.msra.mxu0 0.0
    %635 = vmatprep.subr.mxu0 0.0
    %636 = vmatpush1.msra.mxu0 0.0
    %637 = vmatprep.subr.mxu0 0.0
    %638 = vmatpush1.msra.mxu0 0.0
    %639 = vmatprep.subr.mxu0 0.0
    %640 = vmatpush1.msra.mxu0 0.0
    %641 = vmatprep.subr.mxu0 0.0
    %642 = vmatpush1.msra.mxu0 0.0
    %643 = vmatprep.subr.mxu0 0.0
    %644 = vmatpush1.msra.mxu0 0.0
    %645 = vmatprep.subr.mxu0 0.0
    %646 = vmatpush1.msra.mxu0 0.0
    %647 = vmatprep.subr.mxu0 0.0
    %648 = vmatpush1.msra.mxu0 0.0
    %649 = vmatprep.subr.mxu0 0.0
    %650 = vmatpush1.msra.mxu0 0.0
    %651 = vmatprep.subr.mxu0 0.0
    %652 = vmatpush1.msra.mxu0 0.0
    %653 = vmatprep.subr.mxu0 0.0
    %654 = vmatpush1.msra.mxu0 0.0
    %655 = vmatprep.subr.mxu0 0.0
    %656 = vmatpush1.msra.mxu0 0.0
    %657 = vmatprep.subr.mxu0 0.0
    %658 = vmatpush1.msra.mxu0 %v74
    %659 = vmatprep.subr.mxu0 0.0
    %660 = vmatpush1.msra.mxu0 %v73
    %661 = vmatprep.subr.mxu0 0.0
    %662 = vmatpush1.msra.mxu0 %v72
    %663 = vmatprep.subr.mxu0 0.0
    %664 = vmatpush1.msra.mxu0 %v71
    %665 = vmatprep.subr.mxu0 0.0
    %666 = vmatpush2.msra.mxu0 0.0
    %667 = vmatprep.subr.mxu0 0.0
    %668 = vmatpush2.msra.mxu0 0.0
    %669 = vmatprep.subr.mxu0 0.0
    %670 = vmatpush2.msra.mxu0 0.0
    %671 = vmatprep.subr.mxu0 0.0
    %672 = vmatpush2.msra.mxu0 0.0
    %673 = vmatprep.subr.mxu0 0.0
    %674 = vmatpush2.msra.mxu0 0.0
    %675 = vmatprep.subr.mxu0 0.0
    %676 = vmatpush2.msra.mxu0 0.0
    %677 = vmatprep.subr.mxu0 0.0
    %678 = vmatpush2.msra.mxu0 0.0
    %679 = vmatprep.subr.mxu0 0.0
    %680 = vmatpush2.msra.mxu0 0.0
    %681 = vmatprep.subr.mxu0 0.0
    %682 = vmatpush2.msra.mxu0 0.0
    %683 = vmatprep.subr.mxu0 0.0
    %684 = vmatpush2.msra.mxu0 0.0
    %685 = vmatprep.subr.mxu0 0.0
    %686 = vmatpush2.msra.mxu0 0.0
    %687 = vmatprep.subr.mxu0 0.0
    %688 = vmatpush2.msra.mxu0 0.0
    %689 = vmatprep.subr.mxu0 0.0
    %690 = vmatpush2.msra.mxu0 0.0
    %691 = vmatprep.subr.mxu0 0.0
    %692 = vmatpush2.msra.mxu0 0.0
    %693 = vmatprep.subr.mxu0 0.0
    %694 = vmatpush2.msra.mxu0 0.0
    %695 = vmatprep.subr.mxu0 0.0
    %696 = vmatpush2.msra.mxu0 0.0
    %697 = vmatprep.mubr.f32.mxu0 0.0
    %698 = vmatmul.mubr.f32.gmra.mxu0 %v631
    %v699 = vpop.f32.mrf.mxu0
    %v700 = vadd.f32 0.0, %v699
    %v701 = vpop.f32.mrf.mxu0
    %702 = vdwg.mxu0
    %v703 = vadd.f32 %v625, %v700
    %v704 = vxor.u32 %v703, 2147483648
    %v705 = vmul.f32 %v704, 1.442695
    %v706 = vpow.pop %v705
    %v707 = vadd.f32 %v706, 1.0
    %v708 = vrcp.pop %v707
    %v709 = vmul.f32 1.0, %v708
    %v710 = vtanh.pop %v703
    %v711 = vmul.f32 %v709, %v444
    %713 = vrot.lane.b32.xlu0 %v710, 64
    %v714 = vpop.permute.xlu0 %713
    %v716 = vmul.f32 %v709, %v714
    %718 = vrot.lane.b32.xlu0 %v716, 32
    %v719 = vpop.permute.xlu0 %718
    %v721 = vadd.f32 %v711, %v719
    %v722 = vtanh.pop %v721
    %724 = vrot.lane.b32.xlu0 %v722, 64
    %v725 = vpop.permute.xlu0 %724
    %v727 = vmul.f32 %v709, %v725
    %728 = vmatprep.subr.mxu0 0.0
    %729 = vmatpush1.msra.mxu0 0.0
    %730 = vmatprep.subr.mxu0 0.0
    %731 = vmatpush1.msra.mxu0 0.0
    %732 = vmatprep.subr.mxu0 0.0
    %733 = vmatpush1.msra.mxu0 0.0
    %734 = vmatprep.subr.mxu0 0.0
    %735 = vmatpush1.msra.mxu0 0.0
    %736 = vmatprep.subr.mxu0 0.0
    %737 = vmatpush1.msra.mxu0 0.0
    %738 = vmatprep.subr.mxu0 0.0
    %739 = vmatpush1.msra.mxu0 0.0
    %740 = vmatprep.subr.mxu0 0.0
    %741 = vmatpush1.msra.mxu0 0.0
    %742 = vmatprep.subr.mxu0 0.0
    %743 = vmatpush1.msra.mxu0 0.0
    %744 = vmatprep.subr.mxu0 0.0
    %745 = vmatpush1.msra.mxu0 0.0
    %746 = vmatprep.subr.mxu0 0.0
    %747 = vmatpush1.msra.mxu0 0.0
    %748 = vmatprep.subr.mxu0 0.0
    %749 = vmatpush1.msra.mxu0 0.0
    %750 = vmatprep.subr.mxu0 0.0
    %751 = vmatpush1.msra.mxu0 0.0
    %752 = vmatprep.subr.mxu0 0.0
    %753 = vmatpush1.msra.mxu0 %v65
    %754 = vmatprep.subr.mxu0 0.0
    %755 = vmatpush1.msra.mxu0 %v64
    %756 = vmatprep.subr.mxu0 0.0
    %757 = vmatpush1.msra.mxu0 %v63
    %758 = vmatprep.subr.mxu0 0.0
    %759 = vmatpush1.msra.mxu0 %v62
    %760 = vmatprep.subr.mxu0 0.0
    %761 = vmatpush2.msra.mxu0 0.0
    %762 = vmatprep.subr.mxu0 0.0
    %763 = vmatpush2.msra.mxu0 0.0
    %764 = vmatprep.subr.mxu0 0.0
    %765 = vmatpush2.msra.mxu0 0.0
    %766 = vmatprep.subr.mxu0 0.0
    %767 = vmatpush2.msra.mxu0 0.0
    %768 = vmatprep.subr.mxu0 0.0
    %769 = vmatpush2.msra.mxu0 0.0
    %770 = vmatprep.subr.mxu0 0.0
    %771 = vmatpush2.msra.mxu0 0.0
    %772 = vmatprep.subr.mxu0 0.0
    %773 = vmatpush2.msra.mxu0 0.0
    %774 = vmatprep.subr.mxu0 0.0
    %775 = vmatpush2.msra.mxu0 0.0
    %776 = vmatprep.subr.mxu0 0.0
    %777 = vmatpush2.msra.mxu0 0.0
    %778 = vmatprep.subr.mxu0 0.0
    %779 = vmatpush2.msra.mxu0 0.0
    %780 = vmatprep.subr.mxu0 0.0
    %781 = vmatpush2.msra.mxu0 0.0
    %782 = vmatprep.subr.mxu0 0.0
    %783 = vmatpush2.msra.mxu0 0.0
    %784 = vmatprep.subr.mxu0 0.0
    %785 = vmatpush2.msra.mxu0 0.0
    %786 = vmatprep.subr.mxu0 0.0
    %787 = vmatpush2.msra.mxu0 0.0
    %788 = vmatprep.subr.mxu0 0.0
    %789 = vmatpush2.msra.mxu0 0.0
    %790 = vmatprep.subr.mxu0 0.0
    %791 = vmatpush2.msra.mxu0 0.0
    %792 = vmatprep.mubr.f32.mxu0 0.0
    %793 = vmatmul.mubr.f32.gmra.mxu0 %v556
    %v794 = vpop.f32.mrf.mxu0
    %v795 = vadd.f32 0.0, %v794
    %v796 = vpop.f32.mrf.mxu0
    %797 = vdwg.mxu0
    %v799 = vrot.slane %v795, 4
    %v801 = vadd.f32 %v168, %v799
    %v802 = vxor.u32 %v801, 2147483648
    %v803 = vmul.f32 %v802, 1.442695
    %v804 = vpow.pop %v803
    %v805 = vadd.f32 %v804, 1.0
    %v806 = vrcp.pop %v805
    %v807 = vmul.f32 1.0, %v806
    %v808 = vtanh.pop %v801
    %v810 = vrot.slane %v545, 6
    %v812 = vmul.f32 %v807, %v810
    %814 = vrot.lane.b32.xlu0 %v808, 64
    %v815 = vpop.permute.xlu0 %814
    %v817 = vmul.f32 %v807, %v815
    %819 = vrot.lane.b32.xlu0 %v817, 32
    %v820 = vpop.permute.xlu0 %819
    %v822 = vadd.f32 %v812, %v820
    %v823 = vtanh.pop %v822
    %825 = vrot.lane.b32.xlu0 %v823, 64
    %v826 = vpop.permute.xlu0 %825
    %v828 = vmul.f32 %v807, %v826
    %v830 = vrot.slane %v828, 4
    %831 = vrot.lane.b32.xlu0 %v830, 32
    %v832 = vpop.permute.xlu0 %831
    %v833 = vsel %vm176, %v832, 0
    %835 = vmatprep.subr.mxu0 0.0
    %836 = vmatpush1.msra.mxu0 0.0
    %837 = vmatprep.subr.mxu0 0.0
    %838 = vmatpush1.msra.mxu0 0.0
    %839 = vmatprep.subr.mxu0 0.0
    %840 = vmatpush1.msra.mxu0 0.0
    %841 = vmatprep.subr.mxu0 0.0
    %842 = vmatpush1.msra.mxu0 0.0
    %843 = vmatprep.subr.mxu0 0.0
    %844 = vmatpush1.msra.mxu0 0.0
    %845 = vmatprep.subr.mxu0 0.0
    %846 = vmatpush1.msra.mxu0 0.0
    %847 = vmatprep.subr.mxu0 0.0
    %848 = vmatpush1.msra.mxu0 0.0
    %849 = vmatprep.subr.mxu0 0.0
    %850 = vmatpush1.msra.mxu0 0.0
    %851 = vmatprep.subr.mxu0 0.0
    %852 = vmatpush1.msra.mxu0 0.0
    %853 = vmatprep.subr.mxu0 0.0
    %854 = vmatpush1.msra.mxu0 0.0
    %855 = vmatprep.subr.mxu0 0.0
    %856 = vmatpush1.msra.mxu0 0.0
    %857 = vmatprep.subr.mxu0 0.0
    %858 = vmatpush1.msra.mxu0 0.0
    %859 = vmatprep.subr.mxu0 0.0
    %860 = vmatpush1.msra.mxu0 %v70
    %861 = vmatprep.subr.mxu0 0.0
    %862 = vmatpush1.msra.mxu0 %v69
    %863 = vmatprep.subr.mxu0 0.0
    %864 = vmatpush1.msra.mxu0 %v68
    %865 = vmatprep.subr.mxu0 0.0
    %866 = vmatpush1.msra.mxu0 %v67
    %867 = vmatprep.subr.mxu0 0.0
    %868 = vmatpush2.msra.mxu0 0.0
    %869 = vmatprep.subr.mxu0 0.0
    %870 = vmatpush2.msra.mxu0 0.0
    %871 = vmatprep.subr.mxu0 0.0
    %872 = vmatpush2.msra.mxu0 0.0
    %873 = vmatprep.subr.mxu0 0.0
    %874 = vmatpush2.msra.mxu0 0.0
    %875 = vmatprep.subr.mxu0 0.0
    %876 = vmatpush2.msra.mxu0 0.0
    %877 = vmatprep.subr.mxu0 0.0
    %878 = vmatpush2.msra.mxu0 0.0
    %879 = vmatprep.subr.mxu0 0.0
    %880 = vmatpush2.msra.mxu0 0.0
    %881 = vmatprep.subr.mxu0 0.0
    %882 = vmatpush2.msra.mxu0 0.0
    %883 = vmatprep.subr.mxu0 0.0
    %884 = vmatpush2.msra.mxu0 0.0
    %885 = vmatprep.subr.mxu0 0.0
    %886 = vmatpush2.msra.mxu0 0.0
    %887 = vmatprep.subr.mxu0 0.0
    %888 = vmatpush2.msra.mxu0 0.0
    %889 = vmatprep.subr.mxu0 0.0
    %890 = vmatpush2.msra.mxu0 0.0
    %891 = vmatprep.subr.mxu0 0.0
    %892 = vmatpush2.msra.mxu0 0.0
    %893 = vmatprep.subr.mxu0 0.0
    %894 = vmatpush2.msra.mxu0 0.0
    %895 = vmatprep.subr.mxu0 0.0
    %896 = vmatpush2.msra.mxu0 0.0
    %897 = vmatprep.subr.mxu0 0.0
    %898 = vmatpush2.msra.mxu0 0.0
    %899 = vmatprep.mubr.f32.mxu0 0.0
    %900 = vmatmul.mubr.f32.gmra.mxu0 %v833
    %v901 = vpop.f32.mrf.mxu0
    %v902 = vadd.f32 %v279, %v901
    %v903 = vpop.f32.mrf.mxu0
    %904 = vdwg.mxu0
    %906 = vrot.lane.b32.xlu0 %v727, 32
    %v907 = vpop.permute.xlu0 %906
    %v908 = vsel %vm176, %v907, 0
    %910 = vmatprep.subr.mxu0 0.0
    %911 = vmatpush1.msra.mxu0 0.0
    %912 = vmatprep.subr.mxu0 0.0
    %913 = vmatpush1.msra.mxu0 0.0
    %914 = vmatprep.subr.mxu0 0.0
    %915 = vmatpush1.msra.mxu0 0.0
    %916 = vmatprep.subr.mxu0 0.0
    %917 = vmatpush1.msra.mxu0 0.0
    %918 = vmatprep.subr.mxu0 0.0
    %919 = vmatpush1.msra.mxu0 0.0
    %920 = vmatprep.subr.mxu0 0.0
    %921 = vmatpush1.msra.mxu0 0.0
    %922 = vmatprep.subr.mxu0 0.0
    %923 = vmatpush1.msra.mxu0 0.0
    %924 = vmatprep.subr.mxu0 0.0
    %925 = vmatpush1.msra.mxu0 0.0
    %926 = vmatprep.subr.mxu0 0.0
    %927 = vmatpush1.msra.mxu0 0.0
    %928 = vmatprep.subr.mxu0 0.0
    %929 = vmatpush1.msra.mxu0 0.0
    %930 = vmatprep.subr.mxu0 0.0
    %931 = vmatpush1.msra.mxu0 0.0
    %932 = vmatprep.subr.mxu0 0.0
    %933 = vmatpush1.msra.mxu0 0.0
    %934 = vmatprep.subr.mxu0 0.0
    %935 = vmatpush1.msra.mxu0 %v74
    %936 = vmatprep.subr.mxu0 0.0
    %937 = vmatpush1.msra.mxu0 %v73
    %938 = vmatprep.subr.mxu0 0.0
    %939 = vmatpush1.msra.mxu0 %v72
    %940 = vmatprep.subr.mxu0 0.0
    %941 = vmatpush1.msra.mxu0 %v71
    %942 = vmatprep.subr.mxu0 0.0
    %943 = vmatpush2.msra.mxu0 0.0
    %944 = vmatprep.subr.mxu0 0.0
    %945 = vmatpush2.msra.mxu0 0.0
    %946 = vmatprep.subr.mxu0 0.0
    %947 = vmatpush2.msra.mxu0 0.0
    %948 = vmatprep.subr.mxu0 0.0
    %949 = vmatpush2.msra.mxu0 0.0
    %950 = vmatprep.subr.mxu0 0.0
    %951 = vmatpush2.msra.mxu0 0.0
    %952 = vmatprep.subr.mxu0 0.0
    %953 = vmatpush2.msra.mxu0 0.0
    %954 = vmatprep.subr.mxu0 0.0
    %955 = vmatpush2.msra.mxu0 0.0
    %956 = vmatprep.subr.mxu0 0.0
    %957 = vmatpush2.msra.mxu0 0.0
    %958 = vmatprep.subr.mxu0 0.0
    %959 = vmatpush2.msra.mxu0 0.0
    %960 = vmatprep.subr.mxu0 0.0
    %961 = vmatpush2.msra.mxu0 0.0
    %962 = vmatprep.subr.mxu0 0.0
    %963 = vmatpush2.msra.mxu0 0.0
    %964 = vmatprep.subr.mxu0 0.0
    %965 = vmatpush2.msra.mxu0 0.0
    %966 = vmatprep.subr.mxu0 0.0
    %967 = vmatpush2.msra.mxu0 0.0
    %968 = vmatprep.subr.mxu0 0.0
    %969 = vmatpush2.msra.mxu0 0.0
    %970 = vmatprep.subr.mxu0 0.0
    %971 = vmatpush2.msra.mxu0 0.0
    %972 = vmatprep.subr.mxu0 0.0
    %973 = vmatpush2.msra.mxu0 0.0
    %974 = vmatprep.mubr.f32.mxu0 0.0
    %975 = vmatmul.mubr.f32.gmra.mxu0 %v908
    %v976 = vpop.f32.mrf.mxu0
    %v977 = vadd.f32 0.0, %v976
    %v978 = vpop.f32.mrf.mxu0
    %979 = vdwg.mxu0
    %v980 = vadd.f32 %v902, %v977
    %v981 = vxor.u32 %v980, 2147483648
    %v982 = vmul.f32 %v981, 1.442695
    %v983 = vpow.pop %v982
    %v984 = vadd.f32 %v983, 1.0
    %v985 = vrcp.pop %v984
    %v986 = vmul.f32 1.0, %v985
    %v987 = vtanh.pop %v980
    %v988 = vmul.f32 %v986, %v721
    %990 = vrot.lane.b32.xlu0 %v987, 64
    %v991 = vpop.permute.xlu0 %990
    %v993 = vmul.f32 %v986, %v991
    %995 = vrot.lane.b32.xlu0 %v993, 32
    %v996 = vpop.permute.xlu0 %995
    %v998 = vadd.f32 %v988, %v996
    %v999 = vtanh.pop %v998
    %1001 = vrot.lane.b32.xlu0 %v999, 64
    %v1002 = vpop.permute.xlu0 %1001
    %v1004 = vmul.f32 %v986, %v1002
    %1005 = vmatprep.subr.mxu0 0.0
    %1006 = vmatpush1.msra.mxu0 0.0
    %1007 = vmatprep.subr.mxu0 0.0
    %1008 = vmatpush1.msra.mxu0 0.0
    %1009 = vmatprep.subr.mxu0 0.0
    %1010 = vmatpush1.msra.mxu0 0.0
    %1011 = vmatprep.subr.mxu0 0.0
    %1012 = vmatpush1.msra.mxu0 0.0
    %1013 = vmatprep.subr.mxu0 0.0
    %1014 = vmatpush1.msra.mxu0 0.0
    %1015 = vmatprep.subr.mxu0 0.0
    %1016 = vmatpush1.msra.mxu0 0.0
    %1017 = vmatprep.subr.mxu0 0.0
    %1018 = vmatpush1.msra.mxu0 0.0
    %1019 = vmatprep.subr.mxu0 0.0
    %1020 = vmatpush1.msra.mxu0 0.0
    %1021 = vmatprep.subr.mxu0 0.0
    %1022 = vmatpush1.msra.mxu0 0.0
    %1023 = vmatprep.subr.mxu0 0.0
    %1024 = vmatpush1.msra.mxu0 0.0
    %1025 = vmatprep.subr.mxu0 0.0
    %1026 = vmatpush1.msra.mxu0 0.0
    %1027 = vmatprep.subr.mxu0 0.0
    %1028 = vmatpush1.msra.mxu0 0.0
    %1029 = vmatprep.subr.mxu0 0.0
    %1030 = vmatpush1.msra.mxu0 %v65
    %1031 = vmatprep.subr.mxu0 0.0
    %1032 = vmatpush1.msra.mxu0 %v64
    %1033 = vmatprep.subr.mxu0 0.0
    %1034 = vmatpush1.msra.mxu0 %v63
    %1035 = vmatprep.subr.mxu0 0.0
    %1036 = vmatpush1.msra.mxu0 %v62
    %1037 = vmatprep.subr.mxu0 0.0
    %1038 = vmatpush2.msra.mxu0 0.0
    %1039 = vmatprep.subr.mxu0 0.0
    %1040 = vmatpush2.msra.mxu0 0.0
    %1041 = vmatprep.subr.mxu0 0.0
    %1042 = vmatpush2.msra.mxu0 0.0
    %1043 = vmatprep.subr.mxu0 0.0
    %1044 = vmatpush2.msra.mxu0 0.0
    %1045 = vmatprep.subr.mxu0 0.0
    %1046 = vmatpush2.msra.mxu0 0.0
    %1047 = vmatprep.subr.mxu0 0.0
    %1048 = vmatpush2.msra.mxu0 0.0
    %1049 = vmatprep.subr.mxu0 0.0
    %1050 = vmatpush2.msra.mxu0 0.0
    %1051 = vmatprep.subr.mxu0 0.0
    %1052 = vmatpush2.msra.mxu0 0.0
    %1053 = vmatprep.subr.mxu0 0.0
    %1054 = vmatpush2.msra.mxu0 0.0
    %1055 = vmatprep.subr.mxu0 0.0
    %1056 = vmatpush2.msra.mxu0 0.0
    %1057 = vmatprep.subr.mxu0 0.0
    %1058 = vmatpush2.msra.mxu0 0.0
    %1059 = vmatprep.subr.mxu0 0.0
    %1060 = vmatpush2.msra.mxu0 0.0
    %1061 = vmatprep.subr.mxu0 0.0
    %1062 = vmatpush2.msra.mxu0 0.0
    %1063 = vmatprep.subr.mxu0 0.0
    %1064 = vmatpush2.msra.mxu0 0.0
    %1065 = vmatprep.subr.mxu0 0.0
    %1066 = vmatpush2.msra.mxu0 0.0
    %1067 = vmatprep.subr.mxu0 0.0
    %1068 = vmatpush2.msra.mxu0 0.0
    %1069 = vmatprep.mubr.f32.mxu0 0.0
    %1070 = vmatmul.mubr.f32.gmra.mxu0 %v833
    %v1071 = vpop.f32.mrf.mxu0
    %v1072 = vadd.f32 0.0, %v1071
    %v1073 = vpop.f32.mrf.mxu0
    %1074 = vdwg.mxu0
    %v1076 = vrot.slane %v1072, 2
    %v1078 = vadd.f32 %v168, %v1076
    %v1079 = vxor.u32 %v1078, 2147483648
    %v1080 = vmul.f32 %v1079, 1.442695
    %v1081 = vpow.pop %v1080
    %v1082 = vadd.f32 %v1081, 1.0
    %v1083 = vrcp.pop %v1082
    %v1084 = vmul.f32 1.0, %v1083
    %v1085 = vtanh.pop %v1078
    %v1087 = vrot.slane %v822, 6
    %v1089 = vmul.f32 %v1084, %v1087
    %1091 = vrot.lane.b32.xlu0 %v1085, 64
    %v1092 = vpop.permute.xlu0 %1091
    %v1094 = vmul.f32 %v1084, %v1092
    %1096 = vrot.lane.b32.xlu0 %v1094, 32
    %v1097 = vpop.permute.xlu0 %1096
    %v1099 = vadd.f32 %v1089, %v1097
    %v1100 = vtanh.pop %v1099
    %1102 = vrot.lane.b32.xlu0 %v1100, 64
    %v1103 = vpop.permute.xlu0 %1102
    %v1105 = vmul.f32 %v1084, %v1103
    %v1107 = vrot.slane %v1105, 6
    %1108 = vrot.lane.b32.xlu0 %v1107, 32
    %v1109 = vpop.permute.xlu0 %1108
    %v1110 = vsel %vm176, %v1109, 0
    %1112 = vmatprep.subr.mxu0 0.0
    %1113 = vmatpush1.msra.mxu0 0.0
    %1114 = vmatprep.subr.mxu0 0.0
    %1115 = vmatpush1.msra.mxu0 0.0
    %1116 = vmatprep.subr.mxu0 0.0
    %1117 = vmatpush1.msra.mxu0 0.0
    %1118 = vmatprep.subr.mxu0 0.0
    %1119 = vmatpush1.msra.mxu0 0.0
    %1120 = vmatprep.subr.mxu0 0.0
    %1121 = vmatpush1.msra.mxu0 0.0
    %1122 = vmatprep.subr.mxu0 0.0
    %1123 = vmatpush1.msra.mxu0 0.0
    %1124 = vmatprep.subr.mxu0 0.0
    %1125 = vmatpush1.msra.mxu0 0.0
    %1126 = vmatprep.subr.mxu0 0.0
    %1127 = vmatpush1.msra.mxu0 0.0
    %1128 = vmatprep.subr.mxu0 0.0
    %1129 = vmatpush1.msra.mxu0 0.0
    %1130 = vmatprep.subr.mxu0 0.0
    %1131 = vmatpush1.msra.mxu0 0.0
    %1132 = vmatprep.subr.mxu0 0.0
    %1133 = vmatpush1.msra.mxu0 0.0
    %1134 = vmatprep.subr.mxu0 0.0
    %1135 = vmatpush1.msra.mxu0 0.0
    %1136 = vmatprep.subr.mxu0 0.0
    %1137 = vmatpush1.msra.mxu0 %v70
    %1138 = vmatprep.subr.mxu0 0.0
    %1139 = vmatpush1.msra.mxu0 %v69
    %1140 = vmatprep.subr.mxu0 0.0
    %1141 = vmatpush1.msra.mxu0 %v68
    %1142 = vmatprep.subr.mxu0 0.0
    %1143 = vmatpush1.msra.mxu0 %v67
    %1144 = vmatprep.subr.mxu0 0.0
    %1145 = vmatpush2.msra.mxu0 0.0
    %1146 = vmatprep.subr.mxu0 0.0
    %1147 = vmatpush2.msra.mxu0 0.0
    %1148 = vmatprep.subr.mxu0 0.0
    %1149 = vmatpush2.msra.mxu0 0.0
    %1150 = vmatprep.subr.mxu0 0.0
    %1151 = vmatpush2.msra.mxu0 0.0
    %1152 = vmatprep.subr.mxu0 0.0
    %1153 = vmatpush2.msra.mxu0 0.0
    %1154 = vmatprep.subr.mxu0 0.0
    %1155 = vmatpush2.msra.mxu0 0.0
    %1156 = vmatprep.subr.mxu0 0.0
    %1157 = vmatpush2.msra.mxu0 0.0
    %1158 = vmatprep.subr.mxu0 0.0
    %1159 = vmatpush2.msra.mxu0 0.0
    %1160 = vmatprep.subr.mxu0 0.0
    %1161 = vmatpush2.msra.mxu0 0.0
    %1162 = vmatprep.subr.mxu0 0.0
    %1163 = vmatpush2.msra.mxu0 0.0
    %1164 = vmatprep.subr.mxu0 0.0
    %1165 = vmatpush2.msra.mxu0 0.0
    %1166 = vmatprep.subr.mxu0 0.0
    %1167 = vmatpush2.msra.mxu0 0.0
    %1168 = vmatprep.subr.mxu0 0.0
    %1169 = vmatpush2.msra.mxu0 0.0
    %1170 = vmatprep.subr.mxu0 0.0
    %1171 = vmatpush2.msra.mxu0 0.0
    %1172 = vmatprep.subr.mxu0 0.0
    %1173 = vmatpush2.msra.mxu0 0.0
    %1174 = vmatprep.subr.mxu0 0.0
    %1175 = vmatpush2.msra.mxu0 0.0
    %1176 = vmatprep.mubr.f32.mxu0 0.0
    %1177 = vmatmul.mubr.f32.gmra.mxu0 %v1110
    %v1178 = vpop.f32.mrf.mxu0
    %v1179 = vadd.f32 %v279, %v1178
    %v1180 = vpop.f32.mrf.mxu0
    %1181 = vdwg.mxu0
    %1183 = vrot.lane.b32.xlu0 %v1004, 32
    %v1184 = vpop.permute.xlu0 %1183
    %v1185 = vsel %vm176, %v1184, 0
    %1187 = vmatprep.subr.mxu0 0.0
    %1188 = vmatpush1.msra.mxu0 0.0
    %1189 = vmatprep.subr.mxu0 0.0
    %1190 = vmatpush1.msra.mxu0 0.0
    %1191 = vmatprep.subr.mxu0 0.0
    %1192 = vmatpush1.msra.mxu0 0.0
    %1193 = vmatprep.subr.mxu0 0.0
    %1194 = vmatpush1.msra.mxu0 0.0
    %1195 = vmatprep.subr.mxu0 0.0
    %1196 = vmatpush1.msra.mxu0 0.0
    %1197 = vmatprep.subr.mxu0 0.0
    %1198 = vmatpush1.msra.mxu0 0.0
    %1199 = vmatprep.subr.mxu0 0.0
    %1200 = vmatpush1.msra.mxu0 0.0
    %1201 = vmatprep.subr.mxu0 0.0
    %1202 = vmatpush1.msra.mxu0 0.0
    %1203 = vmatprep.subr.mxu0 0.0
    %1204 = vmatpush1.msra.mxu0 0.0
    %1205 = vmatprep.subr.mxu0 0.0
    %1206 = vmatpush1.msra.mxu0 0.0
    %1207 = vmatprep.subr.mxu0 0.0
    %1208 = vmatpush1.msra.mxu0 0.0
    %1209 = vmatprep.subr.mxu0 0.0
    %1210 = vmatpush1.msra.mxu0 0.0
    %1211 = vmatprep.subr.mxu0 0.0
    %1212 = vmatpush1.msra.mxu0 %v74
    %1213 = vmatprep.subr.mxu0 0.0
    %1214 = vmatpush1.msra.mxu0 %v73
    %1215 = vmatprep.subr.mxu0 0.0
    %1216 = vmatpush1.msra.mxu0 %v72
    %1217 = vmatprep.subr.mxu0 0.0
    %1218 = vmatpush1.msra.mxu0 %v71
    %1219 = vmatprep.subr.mxu0 0.0
    %1220 = vmatpush2.msra.mxu0 0.0
    %1221 = vmatprep.subr.mxu0 0.0
    %1222 = vmatpush2.msra.mxu0 0.0
    %1223 = vmatprep.subr.mxu0 0.0
    %1224 = vmatpush2.msra.mxu0 0.0
    %1225 = vmatprep.subr.mxu0 0.0
    %1226 = vmatpush2.msra.mxu0 0.0
    %1227 = vmatprep.subr.mxu0 0.0
    %1228 = vmatpush2.msra.mxu0 0.0
    %1229 = vmatprep.subr.mxu0 0.0
    %1230 = vmatpush2.msra.mxu0 0.0
    %1231 = vmatprep.subr.mxu0 0.0
    %1232 = vmatpush2.msra.mxu0 0.0
    %1233 = vmatprep.subr.mxu0 0.0
    %1234 = vmatpush2.msra.mxu0 0.0
    %1235 = vmatprep.subr.mxu0 0.0
    %1236 = vmatpush2.msra.mxu0 0.0
    %1237 = vmatprep.subr.mxu0 0.0
    %1238 = vmatpush2.msra.mxu0 0.0
    %1239 = vmatprep.subr.mxu0 0.0
    %1240 = vmatpush2.msra.mxu0 0.0
    %1241 = vmatprep.subr.mxu0 0.0
    %1242 = vmatpush2.msra.mxu0 0.0
    %1243 = vmatprep.subr.mxu0 0.0
    %1244 = vmatpush2.msra.mxu0 0.0
    %1245 = vmatprep.subr.mxu0 0.0
    %1246 = vmatpush2.msra.mxu0 0.0
    %1247 = vmatprep.subr.mxu0 0.0
    %1248 = vmatpush2.msra.mxu0 0.0
    %1249 = vmatprep.subr.mxu0 0.0
    %1250 = vmatpush2.msra.mxu0 0.0
    %1251 = vmatprep.mubr.f32.mxu0 0.0
    %1252 = vmatmul.mubr.f32.gmra.mxu0 %v1185
    %v1253 = vpop.f32.mrf.mxu0
    %v1254 = vadd.f32 0.0, %v1253
    %v1255 = vpop.f32.mrf.mxu0
    %1256 = vdwg.mxu0
    %v1257 = vadd.f32 %v1179, %v1254
    %v1258 = vxor.u32 %v1257, 2147483648
    %v1259 = vmul.f32 %v1258, 1.442695
    %v1260 = vpow.pop %v1259
    %v1261 = vadd.f32 %v1260, 1.0
    %v1262 = vrcp.pop %v1261
    %v1263 = vmul.f32 1.0, %v1262
    %v1264 = vtanh.pop %v1257
    %v1265 = vmul.f32 %v1263, %v998
    %1267 = vrot.lane.b32.xlu0 %v1264, 64
    %v1268 = vpop.permute.xlu0 %1267
    %v1270 = vmul.f32 %v1263, %v1268
    %1272 = vrot.lane.b32.xlu0 %v1270, 32
    %v1273 = vpop.permute.xlu0 %1272
    %v1275 = vadd.f32 %v1265, %v1273
    %v1276 = vtanh.pop %v1275
    %1278 = vrot.lane.b32.xlu0 %v1276, 64
    %v1279 = vpop.permute.xlu0 %1278
    %v1281 = vmul.f32 %v1263, %v1279
    %1282 = vmatprep.subr.mxu0 0.0
    %1283 = vmatpush1.msra.mxu0 0.0
    %1284 = vmatprep.subr.mxu0 0.0
    %1285 = vmatpush1.msra.mxu0 0.0
    %1286 = vmatprep.subr.mxu0 0.0
    %1287 = vmatpush1.msra.mxu0 0.0
    %1288 = vmatprep.subr.mxu0 0.0
    %1289 = vmatpush1.msra.mxu0 0.0
    %1290 = vmatprep.subr.mxu0 0.0
    %1291 = vmatpush1.msra.mxu0 0.0
    %1292 = vmatprep.subr.mxu0 0.0
    %1293 = vmatpush1.msra.mxu0 0.0
    %1294 = vmatprep.subr.mxu0 0.0
    %1295 = vmatpush1.msra.mxu0 0.0
    %1296 = vmatprep.subr.mxu0 0.0
    %1297 = vmatpush1.msra.mxu0 0.0
    %1298 = vmatprep.subr.mxu0 0.0
    %1299 = vmatpush1.msra.mxu0 0.0
    %1300 = vmatprep.subr.mxu0 0.0
    %1301 = vmatpush1.msra.mxu0 0.0
    %1302 = vmatprep.subr.mxu0 0.0
    %1303 = vmatpush1.msra.mxu0 0.0
    %1304 = vmatprep.subr.mxu0 0.0
    %1305 = vmatpush1.msra.mxu0 0.0
    %1306 = vmatprep.subr.mxu0 0.0
    %1307 = vmatpush1.msra.mxu0 %v65
    %1308 = vmatprep.subr.mxu0 0.0
    %1309 = vmatpush1.msra.mxu0 %v64
    %1310 = vmatprep.subr.mxu0 0.0
    %1311 = vmatpush1.msra.mxu0 %v63
    %1312 = vmatprep.subr.mxu0 0.0
    %1313 = vmatpush1.msra.mxu0 %v62
    %1314 = vmatprep.subr.mxu0 0.0
    %1315 = vmatpush2.msra.mxu0 0.0
    %1316 = vmatprep.subr.mxu0 0.0
    %1317 = vmatpush2.msra.mxu0 0.0
    %1318 = vmatprep.subr.mxu0 0.0
    %1319 = vmatpush2.msra.mxu0 0.0
    %1320 = vmatprep.subr.mxu0 0.0
    %1321 = vmatpush2.msra.mxu0 0.0
    %1322 = vmatprep.subr.mxu0 0.0
    %1323 = vmatpush2.msra.mxu0 0.0
    %1324 = vmatprep.subr.mxu0 0.0
    %1325 = vmatpush2.msra.mxu0 0.0
    %1326 = vmatprep.subr.mxu0 0.0
    %1327 = vmatpush2.msra.mxu0 0.0
    %1328 = vmatprep.subr.mxu0 0.0
    %1329 = vmatpush2.msra.mxu0 0.0
    %1330 = vmatprep.subr.mxu0 0.0
    %1331 = vmatpush2.msra.mxu0 0.0
    %1332 = vmatprep.subr.mxu0 0.0
    %1333 = vmatpush2.msra.mxu0 0.0
    %1334 = vmatprep.subr.mxu0 0.0
    %1335 = vmatpush2.msra.mxu0 0.0
    %1336 = vmatprep.subr.mxu0 0.0
    %1337 = vmatpush2.msra.mxu0 0.0
    %1338 = vmatprep.subr.mxu0 0.0
    %1339 = vmatpush2.msra.mxu0 0.0
    %1340 = vmatprep.subr.mxu0 0.0
    %1341 = vmatpush2.msra.mxu0 0.0
    %1342 = vmatprep.subr.mxu0 0.0
    %1343 = vmatpush2.msra.mxu0 0.0
    %1344 = vmatprep.subr.mxu0 0.0
    %1345 = vmatpush2.msra.mxu0 0.0
    %1346 = vmatprep.mubr.f32.mxu0 0.0
    %1347 = vmatmul.mubr.f32.gmra.mxu0 %v1110
    %v1348 = vpop.f32.mrf.mxu0
    %v1349 = vadd.f32 0.0, %v1348
    %v1350 = vpop.f32.mrf.mxu0
    %1351 = vdwg.mxu0
    %v1352 = vadd.f32 %v173, %v1349
    %v1353 = vxor.u32 %v1352, 2147483648
    %v1354 = vmul.f32 %v1353, 1.442695
    %v1355 = vpow.pop %v1354
    %v1356 = vadd.f32 %v1355, 1.0
    %v1357 = vrcp.pop %v1356
    %v1358 = vmul.f32 1.0, %v1357
    %v1359 = vtanh.pop %v1352
    %v1361 = vrot.slane %v1099, 6
    %v1363 = vmul.f32 %v1358, %v1361
    %1365 = vrot.lane.b32.xlu0 %v1359, 64
    %v1366 = vpop.permute.xlu0 %1365
    %v1368 = vmul.f32 %v1358, %v1366
    %1370 = vrot.lane.b32.xlu0 %v1368, 32
    %v1371 = vpop.permute.xlu0 %1370
    %v1373 = vadd.f32 %v1363, %v1371
    %v1374 = vtanh.pop %v1373
    %1376 = vrot.lane.b32.xlu0 %v1374, 64
    %v1377 = vpop.permute.xlu0 %1376
    %v1379 = vmul.f32 %v1358, %v1377
    %1381 = vrot.lane.b32.xlu0 %v1379, 32
    %v1382 = vpop.permute.xlu0 %1381
    %v1383 = vsel %vm176, %v1382, 0
    %1385 = vmatprep.subr.mxu0 0.0
    %1386 = vmatpush1.msra.mxu0 0.0
    %1387 = vmatprep.subr.mxu0 0.0
    %1388 = vmatpush1.msra.mxu0 0.0
    %1389 = vmatprep.subr.mxu0 0.0
    %1390 = vmatpush1.msra.mxu0 0.0
    %1391 = vmatprep.subr.mxu0 0.0
    %1392 = vmatpush1.msra.mxu0 0.0
    %1393 = vmatprep.subr.mxu0 0.0
    %1394 = vmatpush1.msra.mxu0 0.0
    %1395 = vmatprep.subr.mxu0 0.0
    %1396 = vmatpush1.msra.mxu0 0.0
    %1397 = vmatprep.subr.mxu0 0.0
    %1398 = vmatpush1.msra.mxu0 0.0
    %1399 = vmatprep.subr.mxu0 0.0
    %1400 = vmatpush1.msra.mxu0 0.0
    %1401 = vmatprep.subr.mxu0 0.0
    %1402 = vmatpush1.msra.mxu0 0.0
    %1403 = vmatprep.subr.mxu0 0.0
    %1404 = vmatpush1.msra.mxu0 0.0
    %1405 = vmatprep.subr.mxu0 0.0
    %1406 = vmatpush1.msra.mxu0 0.0
    %1407 = vmatprep.subr.mxu0 0.0
    %1408 = vmatpush1.msra.mxu0 0.0
    %1409 = vmatprep.subr.mxu0 0.0
    %1410 = vmatpush1.msra.mxu0 %v70
    %1411 = vmatprep.subr.mxu0 0.0
    %1412 = vmatpush1.msra.mxu0 %v69
    %1413 = vmatprep.subr.mxu0 0.0
    %1414 = vmatpush1.msra.mxu0 %v68
    %1415 = vmatprep.subr.mxu0 0.0
    %1416 = vmatpush1.msra.mxu0 %v67
    %1417 = vmatprep.subr.mxu0 0.0
    %1418 = vmatpush2.msra.mxu0 0.0
    %1419 = vmatprep.subr.mxu0 0.0
    %1420 = vmatpush2.msra.mxu0 0.0
    %1421 = vmatprep.subr.mxu0 0.0
    %1422 = vmatpush2.msra.mxu0 0.0
    %1423 = vmatprep.subr.mxu0 0.0
    %1424 = vmatpush2.msra.mxu0 0.0
    %1425 = vmatprep.subr.mxu0 0.0
    %1426 = vmatpush2.msra.mxu0 0.0
    %1427 = vmatprep.subr.mxu0 0.0
    %1428 = vmatpush2.msra.mxu0 0.0
    %1429 = vmatprep.subr.mxu0 0.0
    %1430 = vmatpush2.msra.mxu0 0.0
    %1431 = vmatprep.subr.mxu0 0.0
    %1432 = vmatpush2.msra.mxu0 0.0
    %1433 = vmatprep.subr.mxu0 0.0
    %1434 = vmatpush2.msra.mxu0 0.0
    %1435 = vmatprep.subr.mxu0 0.0
    %1436 = vmatpush2.msra.mxu0 0.0
    %1437 = vmatprep.subr.mxu0 0.0
    %1438 = vmatpush2.msra.mxu0 0.0
    %1439 = vmatprep.subr.mxu0 0.0
    %1440 = vmatpush2.msra.mxu0 0.0
    %1441 = vmatprep.subr.mxu0 0.0
    %1442 = vmatpush2.msra.mxu0 0.0
    %1443 = vmatprep.subr.mxu0 0.0
    %1444 = vmatpush2.msra.mxu0 0.0
    %1445 = vmatprep.subr.mxu0 0.0
    %1446 = vmatpush2.msra.mxu0 0.0
    %1447 = vmatprep.subr.mxu0 0.0
    %1448 = vmatpush2.msra.mxu0 0.0
    %1449 = vmatprep.mubr.f32.mxu0 0.0
    %1450 = vmatmul.mubr.f32.gmra.mxu0 %v1383
    %v1451 = vpop.f32.mrf.mxu0
    %v1452 = vadd.f32 %v279, %v1451
    %v1453 = vpop.f32.mrf.mxu0
    %1454 = vdwg.mxu0
    %1456 = vrot.lane.b32.xlu0 %v1281, 32
    %v1457 = vpop.permute.xlu0 %1456
    %v1458 = vsel %vm176, %v1457, 0
    %1460 = vmatprep.subr.mxu0 0.0
    %1461 = vmatpush1.msra.mxu0 0.0
    %1462 = vmatprep.subr.mxu0 0.0
    %1463 = vmatpush1.msra.mxu0 0.0
    %1464 = vmatprep.subr.mxu0 0.0
    %1465 = vmatpush1.msra.mxu0 0.0
    %1466 = vmatprep.subr.mxu0 0.0
    %1467 = vmatpush1.msra.mxu0 0.0
    %1468 = vmatprep.subr.mxu0 0.0
    %1469 = vmatpush1.msra.mxu0 0.0
    %1470 = vmatprep.subr.mxu0 0.0
    %1471 = vmatpush1.msra.mxu0 0.0
    %1472 = vmatprep.subr.mxu0 0.0
    %1473 = vmatpush1.msra.mxu0 0.0
    %1474 = vmatprep.subr.mxu0 0.0
    %1475 = vmatpush1.msra.mxu0 0.0
    %1476 = vmatprep.subr.mxu0 0.0
    %1477 = vmatpush1.msra.mxu0 0.0
    %1478 = vmatprep.subr.mxu0 0.0
    %1479 = vmatpush1.msra.mxu0 0.0
    %1480 = vmatprep.subr.mxu0 0.0
    %1481 = vmatpush1.msra.mxu0 0.0
    %1482 = vmatprep.subr.mxu0 0.0
    %1483 = vmatpush1.msra.mxu0 0.0
    %1484 = vmatprep.subr.mxu0 0.0
    %1485 = vmatpush1.msra.mxu0 %v74
    %1486 = vmatprep.subr.mxu0 0.0
    %1487 = vmatpush1.msra.mxu0 %v73
    %1488 = vmatprep.subr.mxu0 0.0
    %1489 = vmatpush1.msra.mxu0 %v72
    %1490 = vmatprep.subr.mxu0 0.0
    %1491 = vmatpush1.msra.mxu0 %v71
    %1492 = vmatprep.subr.mxu0 0.0
    %1493 = vmatpush2.msra.mxu0 0.0
    %1494 = vmatprep.subr.mxu0 0.0
    %1495 = vmatpush2.msra.mxu0 0.0
    %1496 = vmatprep.subr.mxu0 0.0
    %1497 = vmatpush2.msra.mxu0 0.0
    %1498 = vmatprep.subr.mxu0 0.0
    %1499 = vmatpush2.msra.mxu0 0.0
    %1500 = vmatprep.subr.mxu0 0.0
    %1501 = vmatpush2.msra.mxu0 0.0
    %1502 = vmatprep.subr.mxu0 0.0
    %1503 = vmatpush2.msra.mxu0 0.0
    %1504 = vmatprep.subr.mxu0 0.0
    %1505 = vmatpush2.msra.mxu0 0.0
    %1506 = vmatprep.subr.mxu0 0.0
    %1507 = vmatpush2.msra.mxu0 0.0
    %1508 = vmatprep.subr.mxu0 0.0
    %1509 = vmatpush2.msra.mxu0 0.0
    %1510 = vmatprep.subr.mxu0 0.0
    %1511 = vmatpush2.msra.mxu0 0.0
    %1512 = vmatprep.subr.mxu0 0.0
    %1513 = vmatpush2.msra.mxu0 0.0
    %1514 = vmatprep.subr.mxu0 0.0
    %1515 = vmatpush2.msra.mxu0 0.0
    %1516 = vmatprep.subr.mxu0 0.0
    %1517 = vmatpush2.msra.mxu0 0.0
    %1518 = vmatprep.subr.mxu0 0.0
    %1519 = vmatpush2.msra.mxu0 0.0
    %1520 = vmatprep.subr.mxu0 0.0
    %1521 = vmatpush2.msra.mxu0 0.0
    %1522 = vmatprep.subr.mxu0 0.0
    %1523 = vmatpush2.msra.mxu0 0.0
    %1524 = vmatprep.mubr.f32.mxu0 0.0
    %1525 = vmatmul.mubr.f32.gmra.mxu0 %v1458
    %v1526 = vpop.f32.mrf.mxu0
    %v1527 = vadd.f32 0.0, %v1526
    %v1528 = vpop.f32.mrf.mxu0
    %1529 = vdwg.mxu0
    %v1530 = vadd.f32 %v1452, %v1527
    %v1531 = vxor.u32 %v1530, 2147483648
    %v1532 = vmul.f32 %v1531, 1.442695
    %v1533 = vpow.pop %v1532
    %v1534 = vadd.f32 %v1533, 1.0
    %v1535 = vrcp.pop %v1534
    %v1536 = vmul.f32 1.0, %v1535
    %v1537 = vtanh.pop %v1530
    %v1538 = vmul.f32 %v1536, %v1275
    %1540 = vrot.lane.b32.xlu0 %v1537, 64
    %v1541 = vpop.permute.xlu0 %1540
    %v1543 = vmul.f32 %v1536, %v1541
    %1545 = vrot.lane.b32.xlu0 %v1543, 32
    %v1546 = vpop.permute.xlu0 %1545
    %v1548 = vadd.f32 %v1538, %v1546
    %v1549 = vtanh.pop %v1548
    %1551 = vrot.lane.b32.xlu0 %v1549, 64
    %v1552 = vpop.permute.xlu0 %1551
    %v1554 = vmul.f32 %v1536, %v1552
    %1555 = vmatprep.subr.mxu0 0.0
    %1556 = vmatpush1.msra.mxu0 0.0
    %1557 = vmatprep.subr.mxu0 0.0
    %1558 = vmatpush1.msra.mxu0 0.0
    %1559 = vmatprep.subr.mxu0 0.0
    %1560 = vmatpush1.msra.mxu0 0.0
    %1561 = vmatprep.subr.mxu0 0.0
    %1562 = vmatpush1.msra.mxu0 0.0
    %1563 = vmatprep.subr.mxu0 0.0
    %1564 = vmatpush1.msra.mxu0 0.0
    %1565 = vmatprep.subr.mxu0 0.0
    %1566 = vmatpush1.msra.mxu0 0.0
    %1567 = vmatprep.subr.mxu0 0.0
    %1568 = vmatpush1.msra.mxu0 0.0
    %1569 = vmatprep.subr.mxu0 0.0
    %1570 = vmatpush1.msra.mxu0 0.0
    %1571 = vmatprep.subr.mxu0 0.0
    %1572 = vmatpush1.msra.mxu0 0.0
    %1573 = vmatprep.subr.mxu0 0.0
    %1574 = vmatpush1.msra.mxu0 0.0
    %1575 = vmatprep.subr.mxu0 0.0
    %1576 = vmatpush1.msra.mxu0 0.0
    %1577 = vmatprep.subr.mxu0 0.0
    %1578 = vmatpush1.msra.mxu0 0.0
    %1579 = vmatprep.subr.mxu0 0.0
    %1580 = vmatpush1.msra.mxu0 %v65
    %1581 = vmatprep.subr.mxu0 0.0
    %1582 = vmatpush1.msra.mxu0 %v64
    %1583 = vmatprep.subr.mxu0 0.0
    %1584 = vmatpush1.msra.mxu0 %v63
    %1585 = vmatprep.subr.mxu0 0.0
    %1586 = vmatpush1.msra.mxu0 %v62
    %1587 = vmatprep.subr.mxu0 0.0
    %1588 = vmatpush2.msra.mxu0 0.0
    %1589 = vmatprep.subr.mxu0 0.0
    %1590 = vmatpush2.msra.mxu0 0.0
    %1591 = vmatprep.subr.mxu0 0.0
    %1592 = vmatpush2.msra.mxu0 0.0
    %1593 = vmatprep.subr.mxu0 0.0
    %1594 = vmatpush2.msra.mxu0 0.0
    %1595 = vmatprep.subr.mxu0 0.0
    %1596 = vmatpush2.msra.mxu0 0.0
    %1597 = vmatprep.subr.mxu0 0.0
    %1598 = vmatpush2.msra.mxu0 0.0
    %1599 = vmatprep.subr.mxu0 0.0
    %1600 = vmatpush2.msra.mxu0 0.0
    %1601 = vmatprep.subr.mxu0 0.0
    %1602 = vmatpush2.msra.mxu0 0.0
    %1603 = vmatprep.subr.mxu0 0.0
    %1604 = vmatpush2.msra.mxu0 0.0
    %1605 = vmatprep.subr.mxu0 0.0
    %1606 = vmatpush2.msra.mxu0 0.0
    %1607 = vmatprep.subr.mxu0 0.0
    %1608 = vmatpush2.msra.mxu0 0.0
    %1609 = vmatprep.subr.mxu0 0.0
    %1610 = vmatpush2.msra.mxu0 0.0
    %1611 = vmatprep.subr.mxu0 0.0
    %1612 = vmatpush2.msra.mxu0 0.0
    %1613 = vmatprep.subr.mxu0 0.0
    %1614 = vmatpush2.msra.mxu0 0.0
    %1615 = vmatprep.subr.mxu0 0.0
    %1616 = vmatpush2.msra.mxu0 0.0
    %1617 = vmatprep.subr.mxu0 0.0
    %1618 = vmatpush2.msra.mxu0 0.0
    %1619 = vmatprep.mubr.f32.mxu0 0.0
    %1620 = vmatmul.mubr.f32.gmra.mxu0 %v1383
    %v1621 = vpop.f32.mrf.mxu0
    %v1622 = vadd.f32 0.0, %v1621
    %v1623 = vpop.f32.mrf.mxu0
    %1624 = vdwg.mxu0
    %v1626 = vrot.slane %v1622, 6
    %v1628 = vadd.f32 %v173, %v1626
    %v1629 = vxor.u32 %v1628, 2147483648
    %v1630 = vmul.f32 %v1629, 1.442695
    %v1631 = vpow.pop %v1630
    %v1632 = vadd.f32 %v1631, 1.0
    %v1633 = vrcp.pop %v1632
    %v1634 = vmul.f32 1.0, %v1633
    %v1635 = vtanh.pop %v1628
    %v1637 = vrot.slane %v1373, 6
    %v1639 = vmul.f32 %v1634, %v1637
    %1641 = vrot.lane.b32.xlu0 %v1635, 64
    %v1642 = vpop.permute.xlu0 %1641
    %v1644 = vmul.f32 %v1634, %v1642
    %1646 = vrot.lane.b32.xlu0 %v1644, 32
    %v1647 = vpop.permute.xlu0 %1646
    %v1649 = vadd.f32 %v1639, %v1647
    %v1650 = vtanh.pop %v1649
    %1652 = vrot.lane.b32.xlu0 %v1650, 64
    %v1653 = vpop.permute.xlu0 %1652
    %v1655 = vmul.f32 %v1634, %v1653
    %v1657 = vrot.slane %v1655, 2
    %1658 = vrot.lane.b32.xlu0 %v1657, 32
    %v1659 = vpop.permute.xlu0 %1658
    %v1660 = vsel %vm176, %v1659, 0
    %1662 = vmatprep.subr.mxu0 0.0
    %1663 = vmatpush1.msra.mxu0 0.0
    %1664 = vmatprep.subr.mxu0 0.0
    %1665 = vmatpush1.msra.mxu0 0.0
    %1666 = vmatprep.subr.mxu0 0.0
    %1667 = vmatpush1.msra.mxu0 0.0
    %1668 = vmatprep.subr.mxu0 0.0
    %1669 = vmatpush1.msra.mxu0 0.0
    %1670 = vmatprep.subr.mxu0 0.0
    %1671 = vmatpush1.msra.mxu0 0.0
    %1672 = vmatprep.subr.mxu0 0.0
    %1673 = vmatpush1.msra.mxu0 0.0
    %1674 = vmatprep.subr.mxu0 0.0
    %1675 = vmatpush1.msra.mxu0 0.0
    %1676 = vmatprep.subr.mxu0 0.0
    %1677 = vmatpush1.msra.mxu0 0.0
    %1678 = vmatprep.subr.mxu0 0.0
    %1679 = vmatpush1.msra.mxu0 0.0
    %1680 = vmatprep.subr.mxu0 0.0
    %1681 = vmatpush1.msra.mxu0 0.0
    %1682 = vmatprep.subr.mxu0 0.0
    %1683 = vmatpush1.msra.mxu0 0.0
    %1684 = vmatprep.subr.mxu0 0.0
    %1685 = vmatpush1.msra.mxu0 0.0
    %1686 = vmatprep.subr.mxu0 0.0
    %1687 = vmatpush1.msra.mxu0 %v70
    %1688 = vmatprep.subr.mxu0 0.0
    %1689 = vmatpush1.msra.mxu0 %v69
    %1690 = vmatprep.subr.mxu0 0.0
    %1691 = vmatpush1.msra.mxu0 %v68
    %1692 = vmatprep.subr.mxu0 0.0
    %1693 = vmatpush1.msra.mxu0 %v67
    %1694 = vmatprep.subr.mxu0 0.0
    %1695 = vmatpush2.msra.mxu0 0.0
    %1696 = vmatprep.subr.mxu0 0.0
    %1697 = vmatpush2.msra.mxu0 0.0
    %1698 = vmatprep.subr.mxu0 0.0
    %1699 = vmatpush2.msra.mxu0 0.0
    %1700 = vmatprep.subr.mxu0 0.0
    %1701 = vmatpush2.msra.mxu0 0.0
    %1702 = vmatprep.subr.mxu0 0.0
    %1703 = vmatpush2.msra.mxu0 0.0
    %1704 = vmatprep.subr.mxu0 0.0
    %1705 = vmatpush2.msra.mxu0 0.0
    %1706 = vmatprep.subr.mxu0 0.0
    %1707 = vmatpush2.msra.mxu0 0.0
    %1708 = vmatprep.subr.mxu0 0.0
    %1709 = vmatpush2.msra.mxu0 0.0
    %1710 = vmatprep.subr.mxu0 0.0
    %1711 = vmatpush2.msra.mxu0 0.0
    %1712 = vmatprep.subr.mxu0 0.0
    %1713 = vmatpush2.msra.mxu0 0.0
    %1714 = vmatprep.subr.mxu0 0.0
    %1715 = vmatpush2.msra.mxu0 0.0
    %1716 = vmatprep.subr.mxu0 0.0
    %1717 = vmatpush2.msra.mxu0 0.0
    %1718 = vmatprep.subr.mxu0 0.0
    %1719 = vmatpush2.msra.mxu0 0.0
    %1720 = vmatprep.subr.mxu0 0.0
    %1721 = vmatpush2.msra.mxu0 0.0
    %1722 = vmatprep.subr.mxu0 0.0
    %1723 = vmatpush2.msra.mxu0 0.0
    %1724 = vmatprep.subr.mxu0 0.0
    %1725 = vmatpush2.msra.mxu0 0.0
    %1726 = vmatprep.mubr.f32.mxu0 0.0
    %1727 = vmatmul.mubr.f32.gmra.mxu0 %v1660
    %v1728 = vpop.f32.mrf.mxu0
    %v1729 = vadd.f32 %v279, %v1728
    %v1730 = vpop.f32.mrf.mxu0
    %1731 = vdwg.mxu0
    %1733 = vrot.lane.b32.xlu0 %v1554, 32
    %v1734 = vpop.permute.xlu0 %1733
    %v1735 = vsel %vm176, %v1734, 0
    %1737 = vmatprep.subr.mxu0 0.0
    %1738 = vmatpush1.msra.mxu0 0.0
    %1739 = vmatprep.subr.mxu0 0.0
    %1740 = vmatpush1.msra.mxu0 0.0
    %1741 = vmatprep.subr.mxu0 0.0
    %1742 = vmatpush1.msra.mxu0 0.0
    %1743 = vmatprep.subr.mxu0 0.0
    %1744 = vmatpush1.msra.mxu0 0.0
    %1745 = vmatprep.subr.mxu0 0.0
    %1746 = vmatpush1.msra.mxu0 0.0
    %1747 = vmatprep.subr.mxu0 0.0
    %1748 = vmatpush1.msra.mxu0 0.0
    %1749 = vmatprep.subr.mxu0 0.0
    %1750 = vmatpush1.msra.mxu0 0.0
    %1751 = vmatprep.subr.mxu0 0.0
    %1752 = vmatpush1.msra.mxu0 0.0
    %1753 = vmatprep.subr.mxu0 0.0
    %1754 = vmatpush1.msra.mxu0 0.0
    %1755 = vmatprep.subr.mxu0 0.0
    %1756 = vmatpush1.msra.mxu0 0.0
    %1757 = vmatprep.subr.mxu0 0.0
    %1758 = vmatpush1.msra.mxu0 0.0
    %1759 = vmatprep.subr.mxu0 0.0
    %1760 = vmatpush1.msra.mxu0 0.0
    %1761 = vmatprep.subr.mxu0 0.0
    %1762 = vmatpush1.msra.mxu0 %v74
    %1763 = vmatprep.subr.mxu0 0.0
    %1764 = vmatpush1.msra.mxu0 %v73
    %1765 = vmatprep.subr.mxu0 0.0
    %1766 = vmatpush1.msra.mxu0 %v72
    %1767 = vmatprep.subr.mxu0 0.0
    %1768 = vmatpush1.msra.mxu0 %v71
    %1769 = vmatprep.subr.mxu0 0.0
    %1770 = vmatpush2.msra.mxu0 0.0
    %1771 = vmatprep.subr.mxu0 0.0
    %1772 = vmatpush2.msra.mxu0 0.0
    %1773 = vmatprep.subr.mxu0 0.0
    %1774 = vmatpush2.msra.mxu0 0.0
    %1775 = vmatprep.subr.mxu0 0.0
    %1776 = vmatpush2.msra.mxu0 0.0
    %1777 = vmatprep.subr.mxu0 0.0
    %1778 = vmatpush2.msra.mxu0 0.0
    %1779 = vmatprep.subr.mxu0 0.0
    %1780 = vmatpush2.msra.mxu0 0.0
    %1781 = vmatprep.subr.mxu0 0.0
    %1782 = vmatpush2.msra.mxu0 0.0
    %1783 = vmatprep.subr.mxu0 0.0
    %1784 = vmatpush2.msra.mxu0 0.0
    %1785 = vmatprep.subr.mxu0 0.0
    %1786 = vmatpush2.msra.mxu0 0.0
    %1787 = vmatprep.subr.mxu0 0.0
    %1788 = vmatpush2.msra.mxu0 0.0
    %1789 = vmatprep.subr.mxu0 0.0
    %1790 = vmatpush2.msra.mxu0 0.0
    %1791 = vmatprep.subr.mxu0 0.0
    %1792 = vmatpush2.msra.mxu0 0.0
    %1793 = vmatprep.subr.mxu0 0.0
    %1794 = vmatpush2.msra.mxu0 0.0
    %1795 = vmatprep.subr.mxu0 0.0
    %1796 = vmatpush2.msra.mxu0 0.0
    %1797 = vmatprep.subr.mxu0 0.0
    %1798 = vmatpush2.msra.mxu0 0.0
    %1799 = vmatprep.subr.mxu0 0.0
    %1800 = vmatpush2.msra.mxu0 0.0
    %1801 = vmatprep.mubr.f32.mxu0 0.0
    %1802 = vmatmul.mubr.f32.gmra.mxu0 %v1735
    %v1803 = vpop.f32.mrf.mxu0
    %v1804 = vadd.f32 0.0, %v1803
    %v1805 = vpop.f32.mrf.mxu0
    %1806 = vdwg.mxu0
    %v1807 = vadd.f32 %v1729, %v1804
    %v1808 = vxor.u32 %v1807, 2147483648
    %v1809 = vmul.f32 %v1808, 1.442695
    %v1810 = vpow.pop %v1809
    %v1811 = vadd.f32 %v1810, 1.0
    %v1812 = vrcp.pop %v1811
    %v1813 = vmul.f32 1.0, %v1812
    %v1814 = vtanh.pop %v1807
    %v1815 = vmul.f32 %v1813, %v1548
    %1817 = vrot.lane.b32.xlu0 %v1814, 64
    %v1818 = vpop.permute.xlu0 %1817
    %v1820 = vmul.f32 %v1813, %v1818
    %1822 = vrot.lane.b32.xlu0 %v1820, 32
    %v1823 = vpop.permute.xlu0 %1822
    %v1825 = vadd.f32 %v1815, %v1823
    %v1826 = vtanh.pop %v1825
    %1828 = vrot.lane.b32.xlu0 %v1826, 64
    %v1829 = vpop.permute.xlu0 %1828
    %v1831 = vmul.f32 %v1813, %v1829
    %1832 = vmatprep.subr.mxu0 0.0
    %1833 = vmatpush1.msra.mxu0 0.0
    %1834 = vmatprep.subr.mxu0 0.0
    %1835 = vmatpush1.msra.mxu0 0.0
    %1836 = vmatprep.subr.mxu0 0.0
    %1837 = vmatpush1.msra.mxu0 0.0
    %1838 = vmatprep.subr.mxu0 0.0
    %1839 = vmatpush1.msra.mxu0 0.0
    %1840 = vmatprep.subr.mxu0 0.0
    %1841 = vmatpush1.msra.mxu0 0.0
    %1842 = vmatprep.subr.mxu0 0.0
    %1843 = vmatpush1.msra.mxu0 0.0
    %1844 = vmatprep.subr.mxu0 0.0
    %1845 = vmatpush1.msra.mxu0 0.0
    %1846 = vmatprep.subr.mxu0 0.0
    %1847 = vmatpush1.msra.mxu0 0.0
    %1848 = vmatprep.subr.mxu0 0.0
    %1849 = vmatpush1.msra.mxu0 0.0
    %1850 = vmatprep.subr.mxu0 0.0
    %1851 = vmatpush1.msra.mxu0 0.0
    %1852 = vmatprep.subr.mxu0 0.0
    %1853 = vmatpush1.msra.mxu0 0.0
    %1854 = vmatprep.subr.mxu0 0.0
    %1855 = vmatpush1.msra.mxu0 0.0
    %1856 = vmatprep.subr.mxu0 0.0
    %1857 = vmatpush1.msra.mxu0 %v65
    %1858 = vmatprep.subr.mxu0 0.0
    %1859 = vmatpush1.msra.mxu0 %v64
    %1860 = vmatprep.subr.mxu0 0.0
    %1861 = vmatpush1.msra.mxu0 %v63
    %1862 = vmatprep.subr.mxu0 0.0
    %1863 = vmatpush1.msra.mxu0 %v62
    %1864 = vmatprep.subr.mxu0 0.0
    %1865 = vmatpush2.msra.mxu0 0.0
    %1866 = vmatprep.subr.mxu0 0.0
    %1867 = vmatpush2.msra.mxu0 0.0
    %1868 = vmatprep.subr.mxu0 0.0
    %1869 = vmatpush2.msra.mxu0 0.0
    %1870 = vmatprep.subr.mxu0 0.0
    %1871 = vmatpush2.msra.mxu0 0.0
    %1872 = vmatprep.subr.mxu0 0.0
    %1873 = vmatpush2.msra.mxu0 0.0
    %1874 = vmatprep.subr.mxu0 0.0
    %1875 = vmatpush2.msra.mxu0 0.0
    %1876 = vmatprep.subr.mxu0 0.0
    %1877 = vmatpush2.msra.mxu0 0.0
    %1878 = vmatprep.subr.mxu0 0.0
    %1879 = vmatpush2.msra.mxu0 0.0
    %1880 = vmatprep.subr.mxu0 0.0
    %1881 = vmatpush2.msra.mxu0 0.0
    %1882 = vmatprep.subr.mxu0 0.0
    %1883 = vmatpush2.msra.mxu0 0.0
    %1884 = vmatprep.subr.mxu0 0.0
    %1885 = vmatpush2.msra.mxu0 0.0
    %1886 = vmatprep.subr.mxu0 0.0
    %1887 = vmatpush2.msra.mxu0 0.0
    %1888 = vmatprep.subr.mxu0 0.0
    %1889 = vmatpush2.msra.mxu0 0.0
    %1890 = vmatprep.subr.mxu0 0.0
    %1891 = vmatpush2.msra.mxu0 0.0
    %1892 = vmatprep.subr.mxu0 0.0
    %1893 = vmatpush2.msra.mxu0 0.0
    %1894 = vmatprep.subr.mxu0 0.0
    %1895 = vmatpush2.msra.mxu0 0.0
    %1896 = vmatprep.mubr.f32.mxu0 0.0
    %1897 = vmatmul.mubr.f32.gmra.mxu0 %v1660
    %v1898 = vpop.f32.mrf.mxu0
    %v1899 = vadd.f32 0.0, %v1898
    %v1900 = vpop.f32.mrf.mxu0
    %1901 = vdwg.mxu0
    %v1903 = vrot.slane %v1899, 4
    %v1905 = vadd.f32 %v173, %v1903
    %v1906 = vxor.u32 %v1905, 2147483648
    %v1907 = vmul.f32 %v1906, 1.442695
    %v1908 = vpow.pop %v1907
    %v1909 = vadd.f32 %v1908, 1.0
    %v1910 = vrcp.pop %v1909
    %v1911 = vmul.f32 1.0, %v1910
    %v1912 = vtanh.pop %v1905
    %v1914 = vrot.slane %v1649, 6
    %v1916 = vmul.f32 %v1911, %v1914
    %1918 = vrot.lane.b32.xlu0 %v1912, 64
    %v1919 = vpop.permute.xlu0 %1918
    %v1921 = vmul.f32 %v1911, %v1919
    %1923 = vrot.lane.b32.xlu0 %v1921, 32
    %v1924 = vpop.permute.xlu0 %1923
    %v1926 = vadd.f32 %v1916, %v1924
    %v1927 = vtanh.pop %v1926
    %1929 = vrot.lane.b32.xlu0 %v1927, 64
    %v1930 = vpop.permute.xlu0 %1929
    %v1932 = vmul.f32 %v1911, %v1930
    %v1934 = vrot.slane %v1932, 4
    %1935 = vrot.lane.b32.xlu0 %v1934, 32
    %v1936 = vpop.permute.xlu0 %1935
    %v1937 = vsel %vm176, %v1936, 0
    %1939 = vmatprep.subr.mxu0 0.0
    %1940 = vmatpush1.msra.mxu0 0.0
    %1941 = vmatprep.subr.mxu0 0.0
    %1942 = vmatpush1.msra.mxu0 0.0
    %1943 = vmatprep.subr.mxu0 0.0
    %1944 = vmatpush1.msra.mxu0 0.0
    %1945 = vmatprep.subr.mxu0 0.0
    %1946 = vmatpush1.msra.mxu0 0.0
    %1947 = vmatprep.subr.mxu0 0.0
    %1948 = vmatpush1.msra.mxu0 0.0
    %1949 = vmatprep.subr.mxu0 0.0
    %1950 = vmatpush1.msra.mxu0 0.0
    %1951 = vmatprep.subr.mxu0 0.0
    %1952 = vmatpush1.msra.mxu0 0.0
    %1953 = vmatprep.subr.mxu0 0.0
    %1954 = vmatpush1.msra.mxu0 0.0
    %1955 = vmatprep.subr.mxu0 0.0
    %1956 = vmatpush1.msra.mxu0 0.0
    %1957 = vmatprep.subr.mxu0 0.0
    %1958 = vmatpush1.msra.mxu0 0.0
    %1959 = vmatprep.subr.mxu0 0.0
    %1960 = vmatpush1.msra.mxu0 0.0
    %1961 = vmatprep.subr.mxu0 0.0
    %1962 = vmatpush1.msra.mxu0 0.0
    %1963 = vmatprep.subr.mxu0 0.0
    %1964 = vmatpush1.msra.mxu0 %v70
    %1965 = vmatprep.subr.mxu0 0.0
    %1966 = vmatpush1.msra.mxu0 %v69
    %1967 = vmatprep.subr.mxu0 0.0
    %1968 = vmatpush1.msra.mxu0 %v68
    %1969 = vmatprep.subr.mxu0 0.0
    %1970 = vmatpush1.msra.mxu0 %v67
    %1971 = vmatprep.subr.mxu0 0.0
    %1972 = vmatpush2.msra.mxu0 0.0
    %1973 = vmatprep.subr.mxu0 0.0
    %1974 = vmatpush2.msra.mxu0 0.0
    %1975 = vmatprep.subr.mxu0 0.0
    %1976 = vmatpush2.msra.mxu0 0.0
    %1977 = vmatprep.subr.mxu0 0.0
    %1978 = vmatpush2.msra.mxu0 0.0
    %1979 = vmatprep.subr.mxu0 0.0
    %1980 = vmatpush2.msra.mxu0 0.0
    %1981 = vmatprep.subr.mxu0 0.0
    %1982 = vmatpush2.msra.mxu0 0.0
    %1983 = vmatprep.subr.mxu0 0.0
    %1984 = vmatpush2.msra.mxu0 0.0
    %1985 = vmatprep.subr.mxu0 0.0
    %1986 = vmatpush2.msra.mxu0 0.0
    %1987 = vmatprep.subr.mxu0 0.0
    %1988 = vmatpush2.msra.mxu0 0.0
    %1989 = vmatprep.subr.mxu0 0.0
    %1990 = vmatpush2.msra.mxu0 0.0
    %1991 = vmatprep.subr.mxu0 0.0
    %1992 = vmatpush2.msra.mxu0 0.0
    %1993 = vmatprep.subr.mxu0 0.0
    %1994 = vmatpush2.msra.mxu0 0.0
    %1995 = vmatprep.subr.mxu0 0.0
    %1996 = vmatpush2.msra.mxu0 0.0
    %1997 = vmatprep.subr.mxu0 0.0
    %1998 = vmatpush2.msra.mxu0 0.0
    %1999 = vmatprep.subr.mxu0 0.0
    %2000 = vmatpush2.msra.mxu0 0.0
    %2001 = vmatprep.subr.mxu0 0.0
    %2002 = vmatpush2.msra.mxu0 0.0
    %2003 = vmatprep.mubr.f32.mxu0 0.0
    %2004 = vmatmul.mubr.f32.gmra.mxu0 %v1937
    %v2005 = vpop.f32.mrf.mxu0
    %v2006 = vadd.f32 %v279, %v2005
    %v2007 = vpop.f32.mrf.mxu0
    %2008 = vdwg.mxu0
    %2010 = vrot.lane.b32.xlu0 %v1831, 32
    %v2011 = vpop.permute.xlu0 %2010
    %v2012 = vsel %vm176, %v2011, 0
    %2014 = vmatprep.subr.mxu0 0.0
    %2015 = vmatpush1.msra.mxu0 0.0
    %2016 = vmatprep.subr.mxu0 0.0
    %2017 = vmatpush1.msra.mxu0 0.0
    %2018 = vmatprep.subr.mxu0 0.0
    %2019 = vmatpush1.msra.mxu0 0.0
    %2020 = vmatprep.subr.mxu0 0.0
    %2021 = vmatpush1.msra.mxu0 0.0
    %2022 = vmatprep.subr.mxu0 0.0
    %2023 = vmatpush1.msra.mxu0 0.0
    %2024 = vmatprep.subr.mxu0 0.0
    %2025 = vmatpush1.msra.mxu0 0.0
    %2026 = vmatprep.subr.mxu0 0.0
    %2027 = vmatpush1.msra.mxu0 0.0
    %2028 = vmatprep.subr.mxu0 0.0
    %2029 = vmatpush1.msra.mxu0 0.0
    %2030 = vmatprep.subr.mxu0 0.0
    %2031 = vmatpush1.msra.mxu0 0.0
    %2032 = vmatprep.subr.mxu0 0.0
    %2033 = vmatpush1.msra.mxu0 0.0
    %2034 = vmatprep.subr.mxu0 0.0
    %2035 = vmatpush1.msra.mxu0 0.0
    %2036 = vmatprep.subr.mxu0 0.0
    %2037 = vmatpush1.msra.mxu0 0.0
    %2038 = vmatprep.subr.mxu0 0.0
    %2039 = vmatpush1.msra.mxu0 %v74
    %2040 = vmatprep.subr.mxu0 0.0
    %2041 = vmatpush1.msra.mxu0 %v73
    %2042 = vmatprep.subr.mxu0 0.0
    %2043 = vmatpush1.msra.mxu0 %v72
    %2044 = vmatprep.subr.mxu0 0.0
    %2045 = vmatpush1.msra.mxu0 %v71
    %2046 = vmatprep.subr.mxu0 0.0
    %2047 = vmatpush2.msra.mxu0 0.0
    %2048 = vmatprep.subr.mxu0 0.0
    %2049 = vmatpush2.msra.mxu0 0.0
    %2050 = vmatprep.subr.mxu0 0.0
    %2051 = vmatpush2.msra.mxu0 0.0
    %2052 = vmatprep.subr.mxu0 0.0
    %2053 = vmatpush2.msra.mxu0 0.0
    %2054 = vmatprep.subr.mxu0 0.0
    %2055 = vmatpush2.msra.mxu0 0.0
    %2056 = vmatprep.subr.mxu0 0.0
    %2057 = vmatpush2.msra.mxu0 0.0
    %2058 = vmatprep.subr.mxu0 0.0
    %2059 = vmatpush2.msra.mxu0 0.0
    %2060 = vmatprep.subr.mxu0 0.0
    %2061 = vmatpush2.msra.mxu0 0.0
    %2062 = vmatprep.subr.mxu0 0.0
    %2063 = vmatpush2.msra.mxu0 0.0
    %2064 = vmatprep.subr.mxu0 0.0
    %2065 = vmatpush2.msra.mxu0 0.0
    %2066 = vmatprep.subr.mxu0 0.0
    %2067 = vmatpush2.msra.mxu0 0.0
    %2068 = vmatprep.subr.mxu0 0.0
    %2069 = vmatpush2.msra.mxu0 0.0
    %2070 = vmatprep.subr.mxu0 0.0
    %2071 = vmatpush2.msra.mxu0 0.0
    %2072 = vmatprep.subr.mxu0 0.0
    %2073 = vmatpush2.msra.mxu0 0.0
    %2074 = vmatprep.subr.mxu0 0.0
    %2075 = vmatpush2.msra.mxu0 0.0
    %2076 = vmatprep.subr.mxu0 0.0
    %2077 = vmatpush2.msra.mxu0 0.0
    %2078 = vmatprep.mubr.f32.mxu0 0.0
    %2079 = vmatmul.mubr.f32.gmra.mxu0 %v2012
    %v2080 = vpop.f32.mrf.mxu0
    %v2081 = vadd.f32 0.0, %v2080
    %v2082 = vpop.f32.mrf.mxu0
    %2083 = vdwg.mxu0
    %v2084 = vadd.f32 %v2006, %v2081
    %v2085 = vxor.u32 %v2084, 2147483648
    %v2086 = vmul.f32 %v2085, 1.442695
    %v2087 = vpow.pop %v2086
    %v2088 = vadd.f32 %v2087, 1.0
    %v2089 = vrcp.pop %v2088
    %v2090 = vmul.f32 1.0, %v2089
    %v2091 = vtanh.pop %v2084
    %v2092 = vmul.f32 %v2090, %v1825
    %2094 = vrot.lane.b32.xlu0 %v2091, 64
    %v2095 = vpop.permute.xlu0 %2094
    %v2097 = vmul.f32 %v2090, %v2095
    %2099 = vrot.lane.b32.xlu0 %v2097, 32
    %v2100 = vpop.permute.xlu0 %2099
    %v2102 = vadd.f32 %v2092, %v2100
    %v2103 = vtanh.pop %v2102
    %2105 = vrot.lane.b32.xlu0 %v2103, 64
    %v2106 = vpop.permute.xlu0 %2105
    %v2108 = vmul.f32 %v2090, %v2106
    %2109 = vmatprep.subr.mxu0 0.0
    %2110 = vmatpush1.msra.mxu0 0.0
    %2111 = vmatprep.subr.mxu0 0.0
    %2112 = vmatpush1.msra.mxu0 0.0
    %2113 = vmatprep.subr.mxu0 0.0
    %2114 = vmatpush1.msra.mxu0 0.0
    %2115 = vmatprep.subr.mxu0 0.0
    %2116 = vmatpush1.msra.mxu0 0.0
    %2117 = vmatprep.subr.mxu0 0.0
    %2118 = vmatpush1.msra.mxu0 0.0
    %2119 = vmatprep.subr.mxu0 0.0
    %2120 = vmatpush1.msra.mxu0 0.0
    %2121 = vmatprep.subr.mxu0 0.0
    %2122 = vmatpush1.msra.mxu0 0.0
    %2123 = vmatprep.subr.mxu0 0.0
    %2124 = vmatpush1.msra.mxu0 0.0
    %2125 = vmatprep.subr.mxu0 0.0
    %2126 = vmatpush1.msra.mxu0 0.0
    %2127 = vmatprep.subr.mxu0 0.0
    %2128 = vmatpush1.msra.mxu0 0.0
    %2129 = vmatprep.subr.mxu0 0.0
    %2130 = vmatpush1.msra.mxu0 0.0
    %2131 = vmatprep.subr.mxu0 0.0
    %2132 = vmatpush1.msra.mxu0 0.0
    %2133 = vmatprep.subr.mxu0 0.0
    %2134 = vmatpush1.msra.mxu0 %v65
    %2135 = vmatprep.subr.mxu0 0.0
    %2136 = vmatpush1.msra.mxu0 %v64
    %2137 = vmatprep.subr.mxu0 0.0
    %2138 = vmatpush1.msra.mxu0 %v63
    %2139 = vmatprep.subr.mxu0 0.0
    %2140 = vmatpush1.msra.mxu0 %v62
    %2141 = vmatprep.subr.mxu0 0.0
    %2142 = vmatpush2.msra.mxu0 0.0
    %2143 = vmatprep.subr.mxu0 0.0
    %2144 = vmatpush2.msra.mxu0 0.0
    %2145 = vmatprep.subr.mxu0 0.0
    %2146 = vmatpush2.msra.mxu0 0.0
    %2147 = vmatprep.subr.mxu0 0.0
    %2148 = vmatpush2.msra.mxu0 0.0
    %2149 = vmatprep.subr.mxu0 0.0
    %2150 = vmatpush2.msra.mxu0 0.0
    %2151 = vmatprep.subr.mxu0 0.0
    %2152 = vmatpush2.msra.mxu0 0.0
    %2153 = vmatprep.subr.mxu0 0.0
    %2154 = vmatpush2.msra.mxu0 0.0
    %2155 = vmatprep.subr.mxu0 0.0
    %2156 = vmatpush2.msra.mxu0 0.0
    %2157 = vmatprep.subr.mxu0 0.0
    %2158 = vmatpush2.msra.mxu0 0.0
    %2159 = vmatprep.subr.mxu0 0.0
    %2160 = vmatpush2.msra.mxu0 0.0
    %2161 = vmatprep.subr.mxu0 0.0
    %2162 = vmatpush2.msra.mxu0 0.0
    %2163 = vmatprep.subr.mxu0 0.0
    %2164 = vmatpush2.msra.mxu0 0.0
    %2165 = vmatprep.subr.mxu0 0.0
    %2166 = vmatpush2.msra.mxu0 0.0
    %2167 = vmatprep.subr.mxu0 0.0
    %2168 = vmatpush2.msra.mxu0 0.0
    %2169 = vmatprep.subr.mxu0 0.0
    %2170 = vmatpush2.msra.mxu0 0.0
    %2171 = vmatprep.subr.mxu0 0.0
    %2172 = vmatpush2.msra.mxu0 0.0
    %2173 = vmatprep.mubr.f32.mxu0 0.0
    %2174 = vmatmul.mubr.f32.gmra.mxu0 %v1937
    %v2175 = vpop.f32.mrf.mxu0
    %v2176 = vadd.f32 0.0, %v2175
    %v2177 = vpop.f32.mrf.mxu0
    %2178 = vdwg.mxu0
    %v2180 = vrot.slane %v2176, 2
    %v2182 = vadd.f32 %v173, %v2180
    %v2183 = vxor.u32 %v2182, 2147483648
    %v2184 = vmul.f32 %v2183, 1.442695
    %v2185 = vpow.pop %v2184
    %v2186 = vadd.f32 %v2185, 1.0
    %v2187 = vrcp.pop %v2186
    %v2188 = vmul.f32 1.0, %v2187
    %v2189 = vtanh.pop %v2182
    %v2191 = vrot.slane %v1926, 6
    %v2193 = vmul.f32 %v2188, %v2191
    %2195 = vrot.lane.b32.xlu0 %v2189, 64
    %v2196 = vpop.permute.xlu0 %2195
    %v2198 = vmul.f32 %v2188, %v2196
    %2200 = vrot.lane.b32.xlu0 %v2198, 32
    %v2201 = vpop.permute.xlu0 %2200
    %v2203 = vadd.f32 %v2193, %v2201
    %v2204 = vtanh.pop %v2203
    %2206 = vrot.lane.b32.xlu0 %v2204, 64
    %v2207 = vpop.permute.xlu0 %2206
    %v2209 = vmul.f32 %v2188, %v2207
    %v2211 = vrot.slane %v2209, 6
    %2212 = vrot.lane.b32.xlu0 %v2211, 32
    %v2213 = vpop.permute.xlu0 %2212
    %v2214 = vsel %vm176, %v2213, 0
    %2216 = vmatprep.subr.mxu0 0.0
    %2217 = vmatpush1.msra.mxu0 0.0
    %2218 = vmatprep.subr.mxu0 0.0
    %2219 = vmatpush1.msra.mxu0 0.0
    %2220 = vmatprep.subr.mxu0 0.0
    %2221 = vmatpush1.msra.mxu0 0.0
    %2222 = vmatprep.subr.mxu0 0.0
    %2223 = vmatpush1.msra.mxu0 0.0
    %2224 = vmatprep.subr.mxu0 0.0
    %2225 = vmatpush1.msra.mxu0 0.0
    %2226 = vmatprep.subr.mxu0 0.0
    %2227 = vmatpush1.msra.mxu0 0.0
    %2228 = vmatprep.subr.mxu0 0.0
    %2229 = vmatpush1.msra.mxu0 0.0
    %2230 = vmatprep.subr.mxu0 0.0
    %2231 = vmatpush1.msra.mxu0 0.0
    %2232 = vmatprep.subr.mxu0 0.0
    %2233 = vmatpush1.msra.mxu0 0.0
    %2234 = vmatprep.subr.mxu0 0.0
    %2235 = vmatpush1.msra.mxu0 0.0
    %2236 = vmatprep.subr.mxu0 0.0
    %2237 = vmatpush1.msra.mxu0 0.0
    %2238 = vmatprep.subr.mxu0 0.0
    %2239 = vmatpush1.msra.mxu0 0.0
    %2240 = vmatprep.subr.mxu0 0.0
    %2241 = vmatpush1.msra.mxu0 %v70
    %2242 = vmatprep.subr.mxu0 0.0
    %2243 = vmatpush1.msra.mxu0 %v69
    %2244 = vmatprep.subr.mxu0 0.0
    %2245 = vmatpush1.msra.mxu0 %v68
    %2246 = vmatprep.subr.mxu0 0.0
    %2247 = vmatpush1.msra.mxu0 %v67
    %2248 = vmatprep.subr.mxu0 0.0
    %2249 = vmatpush2.msra.mxu0 0.0
    %2250 = vmatprep.subr.mxu0 0.0
    %2251 = vmatpush2.msra.mxu0 0.0
    %2252 = vmatprep.subr.mxu0 0.0
    %2253 = vmatpush2.msra.mxu0 0.0
    %2254 = vmatprep.subr.mxu0 0.0
    %2255 = vmatpush2.msra.mxu0 0.0
    %2256 = vmatprep.subr.mxu0 0.0
    %2257 = vmatpush2.msra.mxu0 0.0
    %2258 = vmatprep.subr.mxu0 0.0
    %2259 = vmatpush2.msra.mxu0 0.0
    %2260 = vmatprep.subr.mxu0 0.0
    %2261 = vmatpush2.msra.mxu0 0.0
    %2262 = vmatprep.subr.mxu0 0.0
    %2263 = vmatpush2.msra.mxu0 0.0
    %2264 = vmatprep.subr.mxu0 0.0
    %2265 = vmatpush2.msra.mxu0 0.0
    %2266 = vmatprep.subr.mxu0 0.0
    %2267 = vmatpush2.msra.mxu0 0.0
    %2268 = vmatprep.subr.mxu0 0.0
    %2269 = vmatpush2.msra.mxu0 0.0
    %2270 = vmatprep.subr.mxu0 0.0
    %2271 = vmatpush2.msra.mxu0 0.0
    %2272 = vmatprep.subr.mxu0 0.0
    %2273 = vmatpush2.msra.mxu0 0.0
    %2274 = vmatprep.subr.mxu0 0.0
    %2275 = vmatpush2.msra.mxu0 0.0
    %2276 = vmatprep.subr.mxu0 0.0
    %2277 = vmatpush2.msra.mxu0 0.0
    %2278 = vmatprep.subr.mxu0 0.0
    %2279 = vmatpush2.msra.mxu0 0.0
    %2280 = vmatprep.mubr.f32.mxu0 0.0
    %2281 = vmatmul.mubr.f32.gmra.mxu0 %v2214
    %v2282 = vpop.f32.mrf.mxu0
    %v2283 = vadd.f32 %v279, %v2282
    %v2284 = vpop.f32.mrf.mxu0
    %2285 = vdwg.mxu0
    %2287 = vrot.lane.b32.xlu0 %v2108, 32
    %v2288 = vpop.permute.xlu0 %2287
    %v2289 = vsel %vm176, %v2288, 0
    %2291 = vmatprep.subr.mxu0 0.0
    %2292 = vmatpush1.msra.mxu0 0.0
    %2293 = vmatprep.subr.mxu0 0.0
    %2294 = vmatpush1.msra.mxu0 0.0
    %2295 = vmatprep.subr.mxu0 0.0
    %2296 = vmatpush1.msra.mxu0 0.0
    %2297 = vmatprep.subr.mxu0 0.0
    %2298 = vmatpush1.msra.mxu0 0.0
    %2299 = vmatprep.subr.mxu0 0.0
    %2300 = vmatpush1.msra.mxu0 0.0
    %2301 = vmatprep.subr.mxu0 0.0
    %2302 = vmatpush1.msra.mxu0 0.0
    %2303 = vmatprep.subr.mxu0 0.0
    %2304 = vmatpush1.msra.mxu0 0.0
    %2305 = vmatprep.subr.mxu0 0.0
    %2306 = vmatpush1.msra.mxu0 0.0
    %2307 = vmatprep.subr.mxu0 0.0
    %2308 = vmatpush1.msra.mxu0 0.0
    %2309 = vmatprep.subr.mxu0 0.0
    %2310 = vmatpush1.msra.mxu0 0.0
    %2311 = vmatprep.subr.mxu0 0.0
    %2312 = vmatpush1.msra.mxu0 0.0
    %2313 = vmatprep.subr.mxu0 0.0
    %2314 = vmatpush1.msra.mxu0 0.0
    %2315 = vmatprep.subr.mxu0 0.0
    %2316 = vmatpush1.msra.mxu0 %v74
    %2317 = vmatprep.subr.mxu0 0.0
    %2318 = vmatpush1.msra.mxu0 %v73
    %2319 = vmatprep.subr.mxu0 0.0
    %2320 = vmatpush1.msra.mxu0 %v72
    %2321 = vmatprep.subr.mxu0 0.0
    %2322 = vmatpush1.msra.mxu0 %v71
    %2323 = vmatprep.subr.mxu0 0.0
    %2324 = vmatpush2.msra.mxu0 0.0
    %2325 = vmatprep.subr.mxu0 0.0
    %2326 = vmatpush2.msra.mxu0 0.0
    %2327 = vmatprep.subr.mxu0 0.0
    %2328 = vmatpush2.msra.mxu0 0.0
    %2329 = vmatprep.subr.mxu0 0.0
    %2330 = vmatpush2.msra.mxu0 0.0
    %2331 = vmatprep.subr.mxu0 0.0
    %2332 = vmatpush2.msra.mxu0 0.0
    %2333 = vmatprep.subr.mxu0 0.0
    %2334 = vmatpush2.msra.mxu0 0.0
    %2335 = vmatprep.subr.mxu0 0.0
    %2336 = vmatpush2.msra.mxu0 0.0
    %2337 = vmatprep.subr.mxu0 0.0
    %2338 = vmatpush2.msra.mxu0 0.0
    %2339 = vmatprep.subr.mxu0 0.0
    %2340 = vmatpush2.msra.mxu0 0.0
    %2341 = vmatprep.subr.mxu0 0.0
    %2342 = vmatpush2.msra.mxu0 0.0
    %2343 = vmatprep.subr.mxu0 0.0
    %2344 = vmatpush2.msra.mxu0 0.0
    %2345 = vmatprep.subr.mxu0 0.0
    %2346 = vmatpush2.msra.mxu0 0.0
    %2347 = vmatprep.subr.mxu0 0.0
    %2348 = vmatpush2.msra.mxu0 0.0
    %2349 = vmatprep.subr.mxu0 0.0
    %2350 = vmatpush2.msra.mxu0 0.0
    %2351 = vmatprep.subr.mxu0 0.0
    %2352 = vmatpush2.msra.mxu0 0.0
    %2353 = vmatprep.subr.mxu0 0.0
    %2354 = vmatpush2.msra.mxu0 0.0
    %2355 = vmatprep.mubr.f32.mxu0 0.0
    %2356 = vmatmul.mubr.f32.gmra.mxu0 %v2289
    %v2357 = vpop.f32.mrf.mxu0
    %v2358 = vadd.f32 0.0, %v2357
    %v2359 = vpop.f32.mrf.mxu0
    %2360 = vdwg.mxu0
    %v2361 = vadd.f32 %v2283, %v2358
    %v2362 = vxor.u32 %v2361, 2147483648
    %v2363 = vmul.f32 %v2362, 1.442695
    %v2364 = vpow.pop %v2363
    %v2365 = vadd.f32 %v2364, 1.0
    %v2366 = vrcp.pop %v2365
    %v2367 = vmul.f32 1.0, %v2366
    %v2368 = vtanh.pop %v2361
    %v2369 = vmul.f32 %v2367, %v2102
    %2371 = vrot.lane.b32.xlu0 %v2368, 64
    %v2372 = vpop.permute.xlu0 %2371
    %v2374 = vmul.f32 %v2367, %v2372
    %2376 = vrot.lane.b32.xlu0 %v2374, 32
    %v2377 = vpop.permute.xlu0 %2376
    %v2379 = vadd.f32 %v2369, %v2377
    %v2380 = vtanh.pop %v2379
    %2382 = vrot.lane.b32.xlu0 %v2380, 64
    %v2383 = vpop.permute.xlu0 %2382
    %v2385 = vmul.f32 %v2367, %v2383
    %2387 = vset.pattern.permute.xlu0 0
    %2388 = vperm.xlu0 %2387, %v81
    %v2389 = vpop.permute.xlu0 %2388
    %v2391 = vlaneseq
    %v2392 = vshrl.u32 %v2391, 7
    %v2393 = vsub.s32 3, %v2392
    %v2394 = vrot.slane %v61, %v2393
    %v2395 = vmul.f32 %v2389, %v2394
    %2396 = vmatprep.subr.mxu0 0.0
    %2397 = vmatpush1.msra.mxu0 0.0
    %2398 = vmatprep.subr.mxu0 0.0
    %2399 = vmatpush1.msra.mxu0 0.0
    %2400 = vmatprep.subr.mxu0 0.0
    %2401 = vmatpush1.msra.mxu0 0.0
    %2402 = vmatprep.subr.mxu0 0.0
    %2403 = vmatpush1.msra.mxu0 0.0
    %2404 = vmatprep.subr.mxu0 0.0
    %2405 = vmatpush1.msra.mxu0 0.0
    %2406 = vmatprep.subr.mxu0 0.0
    %2407 = vmatpush1.msra.mxu0 0.0
    %2408 = vmatprep.subr.mxu0 0.0
    %2409 = vmatpush1.msra.mxu0 0.0
    %2410 = vmatprep.subr.mxu0 0.0
    %2411 = vmatpush1.msra.mxu0 0.0
    %2412 = vmatprep.subr.mxu0 0.0
    %2413 = vmatpush1.msra.mxu0 0.0
    %2414 = vmatprep.subr.mxu0 0.0
    %2415 = vmatpush1.msra.mxu0 0.0
    %2416 = vmatprep.subr.mxu0 0.0
    %2417 = vmatpush1.msra.mxu0 0.0
    %2418 = vmatprep.subr.mxu0 0.0
    %2419 = vmatpush1.msra.mxu0 0.0
    %2420 = vmatprep.subr.mxu0 0.0
    %2421 = vmatpush1.msra.mxu0 %v65
    %2422 = vmatprep.subr.mxu0 0.0
    %2423 = vmatpush1.msra.mxu0 %v64
    %2424 = vmatprep.subr.mxu0 0.0
    %2425 = vmatpush1.msra.mxu0 %v63
    %2426 = vmatprep.subr.mxu0 0.0
    %2427 = vmatpush1.msra.mxu0 %v62
    %2428 = vmatprep.subr.mxu0 0.0
    %2429 = vmatpush2.msra.mxu0 0.0
    %2430 = vmatprep.subr.mxu0 0.0
    %2431 = vmatpush2.msra.mxu0 0.0
    %2432 = vmatprep.subr.mxu0 0.0
    %2433 = vmatpush2.msra.mxu0 0.0
    %2434 = vmatprep.subr.mxu0 0.0
    %2435 = vmatpush2.msra.mxu0 0.0
    %2436 = vmatprep.subr.mxu0 0.0
    %2437 = vmatpush2.msra.mxu0 0.0
    %2438 = vmatprep.subr.mxu0 0.0
    %2439 = vmatpush2.msra.mxu0 0.0
    %2440 = vmatprep.subr.mxu0 0.0
    %2441 = vmatpush2.msra.mxu0 0.0
    %2442 = vmatprep.subr.mxu0 0.0
    %2443 = vmatpush2.msra.mxu0 0.0
    %2444 = vmatprep.subr.mxu0 0.0
    %2445 = vmatpush2.msra.mxu0 0.0
    %2446 = vmatprep.subr.mxu0 0.0
    %2447 = vmatpush2.msra.mxu0 0.0
    %2448 = vmatprep.subr.mxu0 0.0
    %2449 = vmatpush2.msra.mxu0 0.0
    %2450 = vmatprep.subr.mxu0 0.0
    %2451 = vmatpush2.msra.mxu0 0.0
    %2452 = vmatprep.subr.mxu0 0.0
    %2453 = vmatpush2.msra.mxu0 0.0
    %2454 = vmatprep.subr.mxu0 0.0
    %2455 = vmatpush2.msra.mxu0 0.0
    %2456 = vmatprep.subr.mxu0 0.0
    %2457 = vmatpush2.msra.mxu0 0.0
    %2458 = vmatprep.subr.mxu0 0.0
    %2459 = vmatpush2.msra.mxu0 0.0
    %2460 = vmatprep.mubr.f32.mxu0 0.0
    %2461 = vmatmul.mubr.f32.gmra.mxu0 %v2214
    %v2462 = vpop.f32.mrf.mxu0
    %v2463 = vadd.f32 0.0, %v2462
    %v2464 = vpop.f32.mrf.mxu0
    %2465 = vdwg.mxu0
    %v2467 = vrot.slane %v2463, 2
    %v2469 = vadd.f32 %v173, %v2467
    %v2470 = vxor.u32 %v2469, 2147483648
    %v2471 = vmul.f32 %v2470, 1.442695
    %v2472 = vpow.pop %v2471
    %v2473 = vadd.f32 %v2472, 1.0
    %v2474 = vrcp.pop %v2473
    %v2475 = vmul.f32 1.0, %v2474
    %v2476 = vtanh.pop %v2469
    %v2477 = vmul.f32 %v2475, %v2203
    %2479 = vrot.lane.b32.xlu0 %v2476, 64
    %v2480 = vpop.permute.xlu0 %2479
    %v2482 = vmul.f32 %v2475, %v2480
    %2484 = vrot.lane.b32.xlu0 %v2482, 32
    %v2485 = vpop.permute.xlu0 %2484
    %v2487 = vadd.f32 %v2477, %v2485
    %v2488 = vtanh.pop %v2487
    %2490 = vrot.lane.b32.xlu0 %v2488, 64
    %v2491 = vpop.permute.xlu0 %2490
    %v2493 = vmul.f32 %v2475, %v2491
    %v2495 = vrot.slane %v2493, 6
    %2496 = vrot.lane.b32.xlu0 %v2495, 32
    %v2497 = vpop.permute.xlu0 %2496
    %v2498 = vsel %vm176, %v2497, 0
    %2500 = vmatprep.subr.mxu0 0.0
    %2501 = vmatpush1.msra.mxu0 0.0
    %2502 = vmatprep.subr.mxu0 0.0
    %2503 = vmatpush1.msra.mxu0 0.0
    %2504 = vmatprep.subr.mxu0 0.0
    %2505 = vmatpush1.msra.mxu0 0.0
    %2506 = vmatprep.subr.mxu0 0.0
    %2507 = vmatpush1.msra.mxu0 0.0
    %2508 = vmatprep.subr.mxu0 0.0
    %2509 = vmatpush1.msra.mxu0 0.0
    %2510 = vmatprep.subr.mxu0 0.0
    %2511 = vmatpush1.msra.mxu0 0.0
    %2512 = vmatprep.subr.mxu0 0.0
    %2513 = vmatpush1.msra.mxu0 0.0
    %2514 = vmatprep.subr.mxu0 0.0
    %2515 = vmatpush1.msra.mxu0 0.0
    %2516 = vmatprep.subr.mxu0 0.0
    %2517 = vmatpush1.msra.mxu0 0.0
    %2518 = vmatprep.subr.mxu0 0.0
    %2519 = vmatpush1.msra.mxu0 0.0
    %2520 = vmatprep.subr.mxu0 0.0
    %2521 = vmatpush1.msra.mxu0 0.0
    %2522 = vmatprep.subr.mxu0 0.0
    %2523 = vmatpush1.msra.mxu0 0.0
    %2524 = vmatprep.subr.mxu0 0.0
    %2525 = vmatpush1.msra.mxu0 %v70
    %2526 = vmatprep.subr.mxu0 0.0
    %2527 = vmatpush1.msra.mxu0 %v69
    %2528 = vmatprep.subr.mxu0 0.0
    %2529 = vmatpush1.msra.mxu0 %v68
    %2530 = vmatprep.subr.mxu0 0.0
    %2531 = vmatpush1.msra.mxu0 %v67
    %2532 = vmatprep.subr.mxu0 0.0
    %2533 = vmatpush2.msra.mxu0 0.0
    %2534 = vmatprep.subr.mxu0 0.0
    %2535 = vmatpush2.msra.mxu0 0.0
    %2536 = vmatprep.subr.mxu0 0.0
    %2537 = vmatpush2.msra.mxu0 0.0
    %2538 = vmatprep.subr.mxu0 0.0
    %2539 = vmatpush2.msra.mxu0 0.0
    %2540 = vmatprep.subr.mxu0 0.0
    %2541 = vmatpush2.msra.mxu0 0.0
    %2542 = vmatprep.subr.mxu0 0.0
    %2543 = vmatpush2.msra.mxu0 0.0
    %2544 = vmatprep.subr.mxu0 0.0
    %2545 = vmatpush2.msra.mxu0 0.0
    %2546 = vmatprep.subr.mxu0 0.0
    %2547 = vmatpush2.msra.mxu0 0.0
    %2548 = vmatprep.subr.mxu0 0.0
    %2549 = vmatpush2.msra.mxu0 0.0
    %2550 = vmatprep.subr.mxu0 0.0
    %2551 = vmatpush2.msra.mxu0 0.0
    %2552 = vmatprep.subr.mxu0 0.0
    %2553 = vmatpush2.msra.mxu0 0.0
    %2554 = vmatprep.subr.mxu0 0.0
    %2555 = vmatpush2.msra.mxu0 0.0
    %2556 = vmatprep.subr.mxu0 0.0
    %2557 = vmatpush2.msra.mxu0 0.0
    %2558 = vmatprep.subr.mxu0 0.0
    %2559 = vmatpush2.msra.mxu0 0.0
    %2560 = vmatprep.subr.mxu0 0.0
    %2561 = vmatpush2.msra.mxu0 0.0
    %2562 = vmatprep.subr.mxu0 0.0
    %2563 = vmatpush2.msra.mxu0 0.0
    %2564 = vmatprep.mubr.f32.mxu0 0.0
    %2565 = vmatmul.mubr.f32.gmra.mxu0 %v2498
    %v2566 = vpop.f32.mrf.mxu0
    %v2567 = vadd.f32 %v279, %v2566
    %v2568 = vpop.f32.mrf.mxu0
    %2569 = vdwg.mxu0
    %2571 = vrot.lane.b32.xlu0 %v2385, 32
    %v2572 = vpop.permute.xlu0 %2571
    %v2573 = vsel %vm176, %v2572, 0
    %2575 = vmatprep.subr.mxu0 0.0
    %2576 = vmatpush1.msra.mxu0 0.0
    %2577 = vmatprep.subr.mxu0 0.0
    %2578 = vmatpush1.msra.mxu0 0.0
    %2579 = vmatprep.subr.mxu0 0.0
    %2580 = vmatpush1.msra.mxu0 0.0
    %2581 = vmatprep.subr.mxu0 0.0
    %2582 = vmatpush1.msra.mxu0 0.0
    %2583 = vmatprep.subr.mxu0 0.0
    %2584 = vmatpush1.msra.mxu0 0.0
    %2585 = vmatprep.subr.mxu0 0.0
    %2586 = vmatpush1.msra.mxu0 0.0
    %2587 = vmatprep.subr.mxu0 0.0
    %2588 = vmatpush1.msra.mxu0 0.0
    %2589 = vmatprep.subr.mxu0 0.0
    %2590 = vmatpush1.msra.mxu0 0.0
    %2591 = vmatprep.subr.mxu0 0.0
    %2592 = vmatpush1.msra.mxu0 0.0
    %2593 = vmatprep.subr.mxu0 0.0
    %2594 = vmatpush1.msra.mxu0 0.0
    %2595 = vmatprep.subr.mxu0 0.0
    %2596 = vmatpush1.msra.mxu0 0.0
    %2597 = vmatprep.subr.mxu0 0.0
    %2598 = vmatpush1.msra.mxu0 0.0
    %2599 = vmatprep.subr.mxu0 0.0
    %2600 = vmatpush1.msra.mxu0 %v74
    %2601 = vmatprep.subr.mxu0 0.0
    %2602 = vmatpush1.msra.mxu0 %v73
    %2603 = vmatprep.subr.mxu0 0.0
    %2604 = vmatpush1.msra.mxu0 %v72
    %2605 = vmatprep.subr.mxu0 0.0
    %2606 = vmatpush1.msra.mxu0 %v71
    %2607 = vmatprep.subr.mxu0 0.0
    %2608 = vmatpush2.msra.mxu0 0.0
    %2609 = vmatprep.subr.mxu0 0.0
    %2610 = vmatpush2.msra.mxu0 0.0
    %2611 = vmatprep.subr.mxu0 0.0
    %2612 = vmatpush2.msra.mxu0 0.0
    %2613 = vmatprep.subr.mxu0 0.0
    %2614 = vmatpush2.msra.mxu0 0.0
    %2615 = vmatprep.subr.mxu0 0.0
    %2616 = vmatpush2.msra.mxu0 0.0
    %2617 = vmatprep.subr.mxu0 0.0
    %2618 = vmatpush2.msra.mxu0 0.0
    %2619 = vmatprep.subr.mxu0 0.0
    %2620 = vmatpush2.msra.mxu0 0.0
    %2621 = vmatprep.subr.mxu0 0.0
    %2622 = vmatpush2.msra.mxu0 0.0
    %2623 = vmatprep.subr.mxu0 0.0
    %2624 = vmatpush2.msra.mxu0 0.0
    %2625 = vmatprep.subr.mxu0 0.0
    %2626 = vmatpush2.msra.mxu0 0.0
    %2627 = vmatprep.subr.mxu0 0.0
    %2628 = vmatpush2.msra.mxu0 0.0
    %2629 = vmatprep.subr.mxu0 0.0
    %2630 = vmatpush2.msra.mxu0 0.0
    %2631 = vmatprep.subr.mxu0 0.0
    %2632 = vmatpush2.msra.mxu0 0.0
    %2633 = vmatprep.subr.mxu0 0.0
    %2634 = vmatpush2.msra.mxu0 0.0
    %2635 = vmatprep.subr.mxu0 0.0
    %2636 = vmatpush2.msra.mxu0 0.0
    %2637 = vmatprep.subr.mxu0 0.0
    %2638 = vmatpush2.msra.mxu0 0.0
    %2639 = vmatprep.mubr.f32.mxu0 0.0
    %2640 = vmatmul.mubr.f32.gmra.mxu0 %v2573
    %v2641 = vpop.f32.mrf.mxu0
    %v2642 = vadd.f32 0.0, %v2641
    %v2643 = vpop.f32.mrf.mxu0
    %2644 = vdwg.mxu0
    %v2645 = vadd.f32 %v2567, %v2642
    %v2646 = vxor.u32 %v2645, 2147483648
    %v2647 = vmul.f32 %v2646, 1.442695
    %v2648 = vpow.pop %v2647
    %v2649 = vadd.f32 %v2648, 1.0
    %v2650 = vrcp.pop %v2649
    %v2651 = vmul.f32 1.0, %v2650
    %v2652 = vtanh.pop %v2645
    %v2653 = vmul.f32 %v2651, %v2379
    %2655 = vrot.lane.b32.xlu0 %v2652, 64
    %v2656 = vpop.permute.xlu0 %2655
    %v2658 = vmul.f32 %v2651, %v2656
    %2660 = vrot.lane.b32.xlu0 %v2658, 32
    %v2661 = vpop.permute.xlu0 %2660
    %v2663 = vadd.f32 %v2653, %v2661
    %v2664 = vtanh.pop %v2663
    %2666 = vrot.lane.b32.xlu0 %v2664, 64
    %v2667 = vpop.permute.xlu0 %2666
    %v2669 = vmul.f32 %v2651, %v2667
    %v2671 = vlaneseq
    %v2672 = vshrl.u32 %v2671, 7
    %v2673 = vsub.s32 0, %v2672
    %v2674 = vrot.slane %v80, %v2673
    %2677 = vrot.lane.b32.xlu0 %v2669, 32
    %v2678 = vpop.permute.xlu0 %2677
    %v2679 = vsel %vm176, %v2678, 0
    %2681 = vmatprep.subr.mxu0 0.0
    %2682 = vmatpush1.msra.mxu0 0.0
    %2683 = vmatprep.subr.mxu0 0.0
    %2684 = vmatpush1.msra.mxu0 0.0
    %2685 = vmatprep.subr.mxu0 0.0
    %2686 = vmatpush1.msra.mxu0 0.0
    %2687 = vmatprep.subr.mxu0 0.0
    %2688 = vmatpush1.msra.mxu0 0.0
    %2689 = vmatprep.subr.mxu0 0.0
    %2690 = vmatpush1.msra.mxu0 0.0
    %2691 = vmatprep.subr.mxu0 0.0
    %2692 = vmatpush1.msra.mxu0 0.0
    %2693 = vmatprep.subr.mxu0 0.0
    %2694 = vmatpush1.msra.mxu0 0.0
    %2695 = vmatprep.subr.mxu0 0.0
    %2696 = vmatpush1.msra.mxu0 0.0
    %2697 = vmatprep.subr.mxu0 0.0
    %2698 = vmatpush1.msra.mxu0 0.0
    %2699 = vmatprep.subr.mxu0 0.0
    %2700 = vmatpush1.msra.mxu0 0.0
    %2701 = vmatprep.subr.mxu0 0.0
    %2702 = vmatpush1.msra.mxu0 0.0
    %2703 = vmatprep.subr.mxu0 0.0
    %2704 = vmatpush1.msra.mxu0 0.0
    %2705 = vmatprep.subr.mxu0 0.0
    %2706 = vmatpush1.msra.mxu0 %v79
    %2707 = vmatprep.subr.mxu0 0.0
    %2708 = vmatpush1.msra.mxu0 %v78
    %2709 = vmatprep.subr.mxu0 0.0
    %2710 = vmatpush1.msra.mxu0 %v77
    %2711 = vmatprep.subr.mxu0 0.0
    %2712 = vmatpush1.msra.mxu0 %v76
    %2713 = vmatprep.subr.mxu0 0.0
    %2714 = vmatpush2.msra.mxu0 0.0
    %2715 = vmatprep.subr.mxu0 0.0
    %2716 = vmatpush2.msra.mxu0 0.0
    %2717 = vmatprep.subr.mxu0 0.0
    %2718 = vmatpush2.msra.mxu0 0.0
    %2719 = vmatprep.subr.mxu0 0.0
    %2720 = vmatpush2.msra.mxu0 0.0
    %2721 = vmatprep.subr.mxu0 0.0
    %2722 = vmatpush2.msra.mxu0 0.0
    %2723 = vmatprep.subr.mxu0 0.0
    %2724 = vmatpush2.msra.mxu0 0.0
    %2725 = vmatprep.subr.mxu0 0.0
    %2726 = vmatpush2.msra.mxu0 0.0
    %2727 = vmatprep.subr.mxu0 0.0
    %2728 = vmatpush2.msra.mxu0 0.0
    %2729 = vmatprep.subr.mxu0 0.0
    %2730 = vmatpush2.msra.mxu0 0.0
    %2731 = vmatprep.subr.mxu0 0.0
    %2732 = vmatpush2.msra.mxu0 0.0
    %2733 = vmatprep.subr.mxu0 0.0
    %2734 = vmatpush2.msra.mxu0 0.0
    %2735 = vmatprep.subr.mxu0 0.0
    %2736 = vmatpush2.msra.mxu0 0.0
    %2737 = vmatprep.subr.mxu0 0.0
    %2738 = vmatpush2.msra.mxu0 0.0
    %2739 = vmatprep.subr.mxu0 0.0
    %2740 = vmatpush2.msra.mxu0 0.0
    %2741 = vmatprep.subr.mxu0 0.0
    %2742 = vmatpush2.msra.mxu0 0.0
    %2743 = vmatprep.subr.mxu0 0.0
    %2744 = vmatpush2.msra.mxu0 0.0
    %2745 = vmatprep.mubr.f32.mxu0 0.0
    %2746 = vmatmul.mubr.f32.gmra.mxu0 %v2679
    %v2747 = vpop.f32.mrf.mxu0
    %v2748 = vadd.f32 %v2674, %v2747
    %v2749 = vpop.f32.mrf.mxu0
    %2750 = vdwg.mxu0
    %vm2751 = vcmask 23552
    %v2753 = vsel %vm2751, %v2748, 0
    %vm2755 = vcmask 1042432
    %v2756 = vsel %vm2755, %v61, 0
    %2758 = vmatprep.subr.mxu0 0.0
    %2759 = vmatpush1.msra.mxu0 0.0
    %2760 = vmatprep.subr.mxu0 0.0
    %2761 = vmatpush1.msra.mxu0 0.0
    %2762 = vmatprep.subr.mxu0 0.0
    %2763 = vmatpush1.msra.mxu0 0.0
    %2764 = vmatprep.subr.mxu0 0.0
    %2765 = vmatpush1.msra.mxu0 0.0
    %2766 = vmatprep.subr.mxu0 0.0
    %2767 = vmatpush1.msra.mxu0 0.0
    %2768 = vmatprep.subr.mxu0 0.0
    %2769 = vmatpush1.msra.mxu0 0.0
    %2770 = vmatprep.subr.mxu0 0.0
    %2771 = vmatpush1.msra.mxu0 0.0
    %2772 = vmatprep.subr.mxu0 0.0
    %2773 = vmatpush1.msra.mxu0 0.0
    %2774 = vmatprep.subr.mxu0 0.0
    %2775 = vmatpush1.msra.mxu0 0.0
    %2776 = vmatprep.subr.mxu0 0.0
    %2777 = vmatpush1.msra.mxu0 0.0
    %2778 = vmatprep.subr.mxu0 0.0
    %2779 = vmatpush1.msra.mxu0 0.0
    %2780 = vmatprep.subr.mxu0 0.0
    %2781 = vmatpush1.msra.mxu0 0.0
    %2782 = vmatprep.subr.mxu0 0.0
    %2783 = vmatpush1.msra.mxu0 0.0
    %2784 = vmatprep.subr.mxu0 0.0
    %2785 = vmatpush1.msra.mxu0 0.0
    %2786 = vmatprep.subr.mxu0 0.0
    %2787 = vmatpush1.msra.mxu0 0.0
    %2788 = vmatprep.subr.mxu0 0.0
    %2789 = vmatpush1.msra.mxu0 %v2756
    %2790 = vmatprep.subr.mxu0 0.0
    %2791 = vmatpush2.msra.mxu0 0.0
    %2792 = vmatprep.subr.mxu0 0.0
    %2793 = vmatpush2.msra.mxu0 0.0
    %2794 = vmatprep.subr.mxu0 0.0
    %2795 = vmatpush2.msra.mxu0 0.0
    %2796 = vmatprep.subr.mxu0 0.0
    %2797 = vmatpush2.msra.mxu0 0.0
    %2798 = vmatprep.subr.mxu0 0.0
    %2799 = vmatpush2.msra.mxu0 0.0
    %2800 = vmatprep.subr.mxu0 0.0
    %2801 = vmatpush2.msra.mxu0 0.0
    %2802 = vmatprep.subr.mxu0 0.0
    %2803 = vmatpush2.msra.mxu0 0.0
    %2804 = vmatprep.subr.mxu0 0.0
    %2805 = vmatpush2.msra.mxu0 0.0
    %2806 = vmatprep.subr.mxu0 0.0
    %2807 = vmatpush2.msra.mxu0 0.0
    %2808 = vmatprep.subr.mxu0 0.0
    %2809 = vmatpush2.msra.mxu0 0.0
    %2810 = vmatprep.subr.mxu0 0.0
    %2811 = vmatpush2.msra.mxu0 0.0
    %2812 = vmatprep.subr.mxu0 0.0
    %2813 = vmatpush2.msra.mxu0 0.0
    %2814 = vmatprep.subr.mxu0 0.0
    %2815 = vmatpush2.msra.mxu0 0.0
    %2816 = vmatprep.subr.mxu0 0.0
    %2817 = vmatpush2.msra.mxu0 0.0
    %2818 = vmatprep.subr.mxu0 0.0
    %2819 = vmatpush2.msra.mxu0 0.0
    %2820 = vmatprep.subr.mxu0 0.0
    %2821 = vmatpush2.msra.mxu0 0.0
    %2822 = vmatprep.mubr.f32.mxu0 0.0
    %2823 = vmatmul.mubr.f32.gmra.mxu0 %v2753
    %v2824 = vpop.f32.mrf.mxu0
    %v2825 = vadd.f32 %v2395, %v2824
    %v2826 = vpop.f32.mrf.mxu0
    %2827 = vdwg.mxu0
    %v2828 = vadd.f32 %v2825, %v88
    %2829 = vmatprep.subr.mxu0 0.0
    %2830 = vmatpush1.msra.mxu0 0.0
    %2831 = vmatprep.subr.mxu0 0.0
    %2832 = vmatpush1.msra.mxu0 0.0
    %2833 = vmatprep.subr.mxu0 0.0
    %2834 = vmatpush1.msra.mxu0 0.0
    %2835 = vmatprep.subr.mxu0 0.0
    %2836 = vmatpush1.msra.mxu0 0.0
    %2837 = vmatprep.subr.mxu0 0.0
    %2838 = vmatpush1.msra.mxu0 0.0
    %2839 = vmatprep.subr.mxu0 0.0
    %2840 = vmatpush1.msra.mxu0 0.0
    %2841 = vmatprep.subr.mxu0 0.0
    %2842 = vmatpush1.msra.mxu0 0.0
    %2843 = vmatprep.subr.mxu0 0.0
    %2844 = vmatpush1.msra.mxu0 0.0
    %2845 = vmatprep.subr.mxu0 0.0
    %2846 = vmatpush1.msra.mxu0 0.0
    %2847 = vmatprep.subr.mxu0 0.0
    %2848 = vmatpush1.msra.mxu0 0.0
    %2849 = vmatprep.subr.mxu0 0.0
    %2850 = vmatpush1.msra.mxu0 0.0
    %2851 = vmatprep.subr.mxu0 0.0
    %2852 = vmatpush1.msra.mxu0 0.0
    %2853 = vmatprep.subr.mxu0 0.0
    %2854 = vmatpush1.msra.mxu0 %v65
    %2855 = vmatprep.subr.mxu0 0.0
    %2856 = vmatpush1.msra.mxu0 %v64
    %2857 = vmatprep.subr.mxu0 0.0
    %2858 = vmatpush1.msra.mxu0 %v63
    %2859 = vmatprep.subr.mxu0 0.0
    %2860 = vmatpush1.msra.mxu0 %v62
    %2861 = vmatprep.subr.mxu0 0.0
    %2862 = vmatpush2.msra.mxu0 0.0
    %2863 = vmatprep.subr.mxu0 0.0
    %2864 = vmatpush2.msra.mxu0 0.0
    %2865 = vmatprep.subr.mxu0 0.0
    %2866 = vmatpush2.msra.mxu0 0.0
    %2867 = vmatprep.subr.mxu0 0.0
    %2868 = vmatpush2.msra.mxu0 0.0
    %2869 = vmatprep.subr.mxu0 0.0
    %2870 = vmatpush2.msra.mxu0 0.0
    %2871 = vmatprep.subr.mxu0 0.0
    %2872 = vmatpush2.msra.mxu0 0.0
    %2873 = vmatprep.subr.mxu0 0.0
    %2874 = vmatpush2.msra.mxu0 0.0
    %2875 = vmatprep.subr.mxu0 0.0
    %2876 = vmatpush2.msra.mxu0 0.0
    %2877 = vmatprep.subr.mxu0 0.0
    %2878 = vmatpush2.msra.mxu0 0.0
    %2879 = vmatprep.subr.mxu0 0.0
    %2880 = vmatpush2.msra.mxu0 0.0
    %2881 = vmatprep.subr.mxu0 0.0
    %2882 = vmatpush2.msra.mxu0 0.0
    %2883 = vmatprep.subr.mxu0 0.0
    %2884 = vmatpush2.msra.mxu0 0.0
    %2885 = vmatprep.subr.mxu0 0.0
    %2886 = vmatpush2.msra.mxu0 0.0
    %2887 = vmatprep.subr.mxu0 0.0
    %2888 = vmatpush2.msra.mxu0 0.0
    %2889 = vmatprep.subr.mxu0 0.0
    %2890 = vmatpush2.msra.mxu0 0.0
    %2891 = vmatprep.subr.mxu0 0.0
    %2892 = vmatpush2.msra.mxu0 0.0
    %2893 = vmatprep.mubr.f32.mxu0 0.0
    %2894 = vmatmul.mubr.f32.gmra.mxu0 %v2498
    %v2895 = vpop.f32.mrf.mxu0
    %v2896 = vadd.f32 0.0, %v2895
    %v2897 = vpop.f32.mrf.mxu0
    %2898 = vdwg.mxu0
    %v2899 = vadd.f32 %v2828, %v2896
    %v2900 = vxor.u32 %v2899, 2147483648
    %v2901 = vmul.f32 %v2900, 1.442695
    %v2902 = vpow.pop %v2901
    %v2903 = vadd.f32 %v2902, 1.0
    %v2904 = vrcp.pop %v2903
    %v2905 = vmul.f32 1.0, %v2904
    %v2906 = vtanh.pop %v2899
    %v2908 = vrot.slane %v2487, 6
    %v2910 = vmul.f32 %v2905, %v2908
    %2912 = vrot.lane.b32.xlu0 %v2906, 64
    %v2913 = vpop.permute.xlu0 %2912
    %v2915 = vmul.f32 %v2905, %v2913
    %2917 = vrot.lane.b32.xlu0 %v2915, 32
    %v2918 = vpop.permute.xlu0 %2917
    %v2920 = vadd.f32 %v2910, %v2918
    %v2921 = vtanh.pop %v2920
    %2923 = vrot.lane.b32.xlu0 %v2921, 64
    %v2924 = vpop.permute.xlu0 %2923
    %v2926 = vmul.f32 %v2905, %v2924
    %2928 = vrot.lane.b32.xlu0 %v2926, 32
    %v2929 = vpop.permute.xlu0 %2928
    %v2930 = vsel %vm176, %v2929, 0
    %2932 = vmatprep.subr.mxu0 0.0
    %2933 = vmatpush1.msra.mxu0 0.0
    %2934 = vmatprep.subr.mxu0 0.0
    %2935 = vmatpush1.msra.mxu0 0.0
    %2936 = vmatprep.subr.mxu0 0.0
    %2937 = vmatpush1.msra.mxu0 0.0
    %2938 = vmatprep.subr.mxu0 0.0
    %2939 = vmatpush1.msra.mxu0 0.0
    %2940 = vmatprep.subr.mxu0 0.0
    %2941 = vmatpush1.msra.mxu0 0.0
    %2942 = vmatprep.subr.mxu0 0.0
    %2943 = vmatpush1.msra.mxu0 0.0
    %2944 = vmatprep.subr.mxu0 0.0
    %2945 = vmatpush1.msra.mxu0 0.0
    %2946 = vmatprep.subr.mxu0 0.0
    %2947 = vmatpush1.msra.mxu0 0.0
    %2948 = vmatprep.subr.mxu0 0.0
    %2949 = vmatpush1.msra.mxu0 0.0
    %2950 = vmatprep.subr.mxu0 0.0
    %2951 = vmatpush1.msra.mxu0 0.0
    %2952 = vmatprep.subr.mxu0 0.0
    %2953 = vmatpush1.msra.mxu0 0.0
    %2954 = vmatprep.subr.mxu0 0.0
    %2955 = vmatpush1.msra.mxu0 0.0
    %2956 = vmatprep.subr.mxu0 0.0
    %2957 = vmatpush1.msra.mxu0 %v70
    %2958 = vmatprep.subr.mxu0 0.0
    %2959 = vmatpush1.msra.mxu0 %v69
    %2960 = vmatprep.subr.mxu0 0.0
    %2961 = vmatpush1.msra.mxu0 %v68
    %2962 = vmatprep.subr.mxu0 0.0
    %2963 = vmatpush1.msra.mxu0 %v67
    %2964 = vmatprep.subr.mxu0 0.0
    %2965 = vmatpush2.msra.mxu0 0.0
    %2966 = vmatprep.subr.mxu0 0.0
    %2967 = vmatpush2.msra.mxu0 0.0
    %2968 = vmatprep.subr.mxu0 0.0
    %2969 = vmatpush2.msra.mxu0 0.0
    %2970 = vmatprep.subr.mxu0 0.0
    %2971 = vmatpush2.msra.mxu0 0.0
    %2972 = vmatprep.subr.mxu0 0.0
    %2973 = vmatpush2.msra.mxu0 0.0
    %2974 = vmatprep.subr.mxu0 0.0
    %2975 = vmatpush2.msra.mxu0 0.0
    %2976 = vmatprep.subr.mxu0 0.0
    %2977 = vmatpush2.msra.mxu0 0.0
    %2978 = vmatprep.subr.mxu0 0.0
    %2979 = vmatpush2.msra.mxu0 0.0
    %2980 = vmatprep.subr.mxu0 0.0
    %2981 = vmatpush2.msra.mxu0 0.0
    %2982 = vmatprep.subr.mxu0 0.0
    %2983 = vmatpush2.msra.mxu0 0.0
    %2984 = vmatprep.subr.mxu0 0.0
    %2985 = vmatpush2.msra.mxu0 0.0
    %2986 = vmatprep.subr.mxu0 0.0
    %2987 = vmatpush2.msra.mxu0 0.0
    %2988 = vmatprep.subr.mxu0 0.0
    %2989 = vmatpush2.msra.mxu0 0.0
    %2990 = vmatprep.subr.mxu0 0.0
    %2991 = vmatpush2.msra.mxu0 0.0
    %2992 = vmatprep.subr.mxu0 0.0
    %2993 = vmatpush2.msra.mxu0 0.0
    %2994 = vmatprep.subr.mxu0 0.0
    %2995 = vmatpush2.msra.mxu0 0.0
    %2996 = vmatprep.mubr.f32.mxu0 0.0
    %2997 = vmatmul.mubr.f32.gmra.mxu0 %v2930
    %v2998 = vpop.f32.mrf.mxu0
    %v2999 = vadd.f32 %v279, %v2998
    %v3000 = vpop.f32.mrf.mxu0
    %3001 = vdwg.mxu0
    %3002 = vmatprep.subr.mxu0 0.0
    %3003 = vmatpush1.msra.mxu0 0.0
    %3004 = vmatprep.subr.mxu0 0.0
    %3005 = vmatpush1.msra.mxu0 0.0
    %3006 = vmatprep.subr.mxu0 0.0
    %3007 = vmatpush1.msra.mxu0 0.0
    %3008 = vmatprep.subr.mxu0 0.0
    %3009 = vmatpush1.msra.mxu0 0.0
    %3010 = vmatprep.subr.mxu0 0.0
    %3011 = vmatpush1.msra.mxu0 0.0
    %3012 = vmatprep.subr.mxu0 0.0
    %3013 = vmatpush1.msra.mxu0 0.0
    %3014 = vmatprep.subr.mxu0 0.0
    %3015 = vmatpush1.msra.mxu0 0.0
    %3016 = vmatprep.subr.mxu0 0.0
    %3017 = vmatpush1.msra.mxu0 0.0
    %3018 = vmatprep.subr.mxu0 0.0
    %3019 = vmatpush1.msra.mxu0 0.0
    %3020 = vmatprep.subr.mxu0 0.0
    %3021 = vmatpush1.msra.mxu0 0.0
    %3022 = vmatprep.subr.mxu0 0.0
    %3023 = vmatpush1.msra.mxu0 0.0
    %3024 = vmatprep.subr.mxu0 0.0
    %3025 = vmatpush1.msra.mxu0 0.0
    %3026 = vmatprep.subr.mxu0 0.0
    %3027 = vmatpush1.msra.mxu0 %v74
    %3028 = vmatprep.subr.mxu0 0.0
    %3029 = vmatpush1.msra.mxu0 %v73
    %3030 = vmatprep.subr.mxu0 0.0
    %3031 = vmatpush1.msra.mxu0 %v72
    %3032 = vmatprep.subr.mxu0 0.0
    %3033 = vmatpush1.msra.mxu0 %v71
    %3034 = vmatprep.subr.mxu0 0.0
    %3035 = vmatpush2.msra.mxu0 0.0
    %3036 = vmatprep.subr.mxu0 0.0
    %3037 = vmatpush2.msra.mxu0 0.0
    %3038 = vmatprep.subr.mxu0 0.0
    %3039 = vmatpush2.msra.mxu0 0.0
    %3040 = vmatprep.subr.mxu0 0.0
    %3041 = vmatpush2.msra.mxu0 0.0
    %3042 = vmatprep.subr.mxu0 0.0
    %3043 = vmatpush2.msra.mxu0 0.0
    %3044 = vmatprep.subr.mxu0 0.0
    %3045 = vmatpush2.msra.mxu0 0.0
    %3046 = vmatprep.subr.mxu0 0.0
    %3047 = vmatpush2.msra.mxu0 0.0
    %3048 = vmatprep.subr.mxu0 0.0
    %3049 = vmatpush2.msra.mxu0 0.0
    %3050 = vmatprep.subr.mxu0 0.0
    %3051 = vmatpush2.msra.mxu0 0.0
    %3052 = vmatprep.subr.mxu0 0.0
    %3053 = vmatpush2.msra.mxu0 0.0
    %3054 = vmatprep.subr.mxu0 0.0
    %3055 = vmatpush2.msra.mxu0 0.0
    %3056 = vmatprep.subr.mxu0 0.0
    %3057 = vmatpush2.msra.mxu0 0.0
    %3058 = vmatprep.subr.mxu0 0.0
    %3059 = vmatpush2.msra.mxu0 0.0
    %3060 = vmatprep.subr.mxu0 0.0
    %3061 = vmatpush2.msra.mxu0 0.0
    %3062 = vmatprep.subr.mxu0 0.0
    %3063 = vmatpush2.msra.mxu0 0.0
    %3064 = vmatprep.subr.mxu0 0.0
    %3065 = vmatpush2.msra.mxu0 0.0
    %3066 = vmatprep.mubr.f32.mxu0 0.0
    %3067 = vmatmul.mubr.f32.gmra.mxu0 %v2679
    %v3068 = vpop.f32.mrf.mxu0
    %v3069 = vadd.f32 0.0, %v3068
    %v3070 = vpop.f32.mrf.mxu0
    %3071 = vdwg.mxu0
    %v3072 = vadd.f32 %v2999, %v3069
    %v3073 = vxor.u32 %v3072, 2147483648
    %v3074 = vmul.f32 %v3073, 1.442695
    %v3075 = vpow.pop %v3074
    %v3076 = vadd.f32 %v3075, 1.0
    %v3077 = vrcp.pop %v3076
    %v3078 = vmul.f32 1.0, %v3077
    %v3079 = vtanh.pop %v3072
    %v3080 = vmul.f32 %v3078, %v2663
    %3082 = vrot.lane.b32.xlu0 %v3079, 64
    %v3083 = vpop.permute.xlu0 %3082
    %v3085 = vmul.f32 %v3078, %v3083
    %3087 = vrot.lane.b32.xlu0 %v3085, 32
    %v3088 = vpop.permute.xlu0 %3087
    %v3090 = vadd.f32 %v3080, %v3088
    %v3091 = vtanh.pop %v3090
    %3093 = vrot.lane.b32.xlu0 %v3091, 64
    %v3094 = vpop.permute.xlu0 %3093
    %v3096 = vmul.f32 %v3078, %v3094
    %3098 = vrot.lane.b32.xlu0 %v3096, 32
    %v3099 = vpop.permute.xlu0 %3098
    %v3100 = vsel %vm176, %v3099, 0
    %3102 = vmatprep.subr.mxu0 0.0
    %3103 = vmatpush1.msra.mxu0 0.0
    %3104 = vmatprep.subr.mxu0 0.0
    %3105 = vmatpush1.msra.mxu0 0.0
    %3106 = vmatprep.subr.mxu0 0.0
    %3107 = vmatpush1.msra.mxu0 0.0
    %3108 = vmatprep.subr.mxu0 0.0
    %3109 = vmatpush1.msra.mxu0 0.0
    %3110 = vmatprep.subr.mxu0 0.0
    %3111 = vmatpush1.msra.mxu0 0.0
    %3112 = vmatprep.subr.mxu0 0.0
    %3113 = vmatpush1.msra.mxu0 0.0
    %3114 = vmatprep.subr.mxu0 0.0
    %3115 = vmatpush1.msra.mxu0 0.0
    %3116 = vmatprep.subr.mxu0 0.0
    %3117 = vmatpush1.msra.mxu0 0.0
    %3118 = vmatprep.subr.mxu0 0.0
    %3119 = vmatpush1.msra.mxu0 0.0
    %3120 = vmatprep.subr.mxu0 0.0
    %3121 = vmatpush1.msra.mxu0 0.0
    %3122 = vmatprep.subr.mxu0 0.0
    %3123 = vmatpush1.msra.mxu0 0.0
    %3124 = vmatprep.subr.mxu0 0.0
    %3125 = vmatpush1.msra.mxu0 0.0
    %3126 = vmatprep.subr.mxu0 0.0
    %3127 = vmatpush1.msra.mxu0 %v79
    %3128 = vmatprep.subr.mxu0 0.0
    %3129 = vmatpush1.msra.mxu0 %v78
    %3130 = vmatprep.subr.mxu0 0.0
    %3131 = vmatpush1.msra.mxu0 %v77
    %3132 = vmatprep.subr.mxu0 0.0
    %3133 = vmatpush1.msra.mxu0 %v76
    %3134 = vmatprep.subr.mxu0 0.0
    %3135 = vmatpush2.msra.mxu0 0.0
    %3136 = vmatprep.subr.mxu0 0.0
    %3137 = vmatpush2.msra.mxu0 0.0
    %3138 = vmatprep.subr.mxu0 0.0
    %3139 = vmatpush2.msra.mxu0 0.0
    %3140 = vmatprep.subr.mxu0 0.0
    %3141 = vmatpush2.msra.mxu0 0.0
    %3142 = vmatprep.subr.mxu0 0.0
    %3143 = vmatpush2.msra.mxu0 0.0
    %3144 = vmatprep.subr.mxu0 0.0
    %3145 = vmatpush2.msra.mxu0 0.0
    %3146 = vmatprep.subr.mxu0 0.0
    %3147 = vmatpush2.msra.mxu0 0.0
    %3148 = vmatprep.subr.mxu0 0.0
    %3149 = vmatpush2.msra.mxu0 0.0
    %3150 = vmatprep.subr.mxu0 0.0
    %3151 = vmatpush2.msra.mxu0 0.0
    %3152 = vmatprep.subr.mxu0 0.0
    %3153 = vmatpush2.msra.mxu0 0.0
    %3154 = vmatprep.subr.mxu0 0.0
    %3155 = vmatpush2.msra.mxu0 0.0
    %3156 = vmatprep.subr.mxu0 0.0
    %3157 = vmatpush2.msra.mxu0 0.0
    %3158 = vmatprep.subr.mxu0 0.0
    %3159 = vmatpush2.msra.mxu0 0.0
    %3160 = vmatprep.subr.mxu0 0.0
    %3161 = vmatpush2.msra.mxu0 0.0
    %3162 = vmatprep.subr.mxu0 0.0
    %3163 = vmatpush2.msra.mxu0 0.0
    %3164 = vmatprep.subr.mxu0 0.0
    %3165 = vmatpush2.msra.mxu0 0.0
    %3166 = vmatprep.mubr.f32.mxu0 0.0
    %3167 = vmatmul.mubr.f32.gmra.mxu0 %v3100
    %v3168 = vpop.f32.mrf.mxu0
    %v3169 = vadd.f32 %v2674, %v3168
    %v3170 = vpop.f32.mrf.mxu0
    %3171 = vdwg.mxu0
    %v3173 = vrot.slane %v3169, 6
    %vm3175 = vcmask 1041408
    %v3176 = vsel %vm3175, %v2748, %v3173
    %vm3177 = vcmask 19456
    %3178 = vst.msk [vmem:[%s10] sm:$0xf] %vm3177, %v3176
    // Predicated region
    $region50: #{lstm_network_forward.1} parent=1 // pred_check
      _
    $region51: #{lstm_network_forward.1} parent=1 // pred_check_branch
      %3180 = sbr.rel (0) target = $region53
    $region52: #{lstm_network_forward.1} parent=1 // pred_region
      _
    $region53: #{lstm_network_forward.1} parent=1 // pred_fallthru
      _
    // Predicated region
    $region54: #{lstm_network_forward.1} parent=1 // pred_check
      _
    $region55: #{lstm_network_forward.1} parent=1 // pred_check_branch
      %3182 = sbr.rel (0) target = $region57
    $region56: #{lstm_network_forward.1} parent=1 // pred_region
      _
    $region57: #{lstm_network_forward.1} parent=1 // pred_fallthru
      _
    %3183 = vsyncpa [#allocation3], 1
    %3184 = vsyncpa [#allocation5], 1

</llo_original>
